<compile_context>
chip_gen: v7x
topology: tpu7x:2x2x1
jax: 0.10.0
libtpu: 0.0.40
codegen_flags: <defaults>
</compile_context>

<pallas_src>
import functools

import jax
import jax.numpy as jnp
from jax.experimental import pallas as pl
from jax.experimental.pallas import tpu as pltpu

LANE = 128
VMEM_LIMIT = 32 * 1024 * 1024  # safe on v5e/v6e/v7x; tiles here are tiny anyway


def _round_up(x, m):
    return ((x + m - 1) // m) * m


def _pick_tile(m):
    # largest row tile that divides M (keeps double-buffered tiles small and
    # gives the pipeline >1 grid step when M is large)
    for tm in (1024, 512, 256, 128):
        if m % tm == 0 and m >= tm:
            return tm
    return m


# ----------------------------------------------------------------------------
# Pallas kernels
# ----------------------------------------------------------------------------
def _matmul_act_kernel(x_ref, w_ref, o_ref, *, activation):
    # x: (tm, K) bf16 im2col patches, w: (K, C_pad) bf16, accumulate in f32
    y = jnp.dot(x_ref[...], w_ref[...], preferred_element_type=jnp.float32)
    if activation == "leaky_relu":
        y = jnp.where(y > 0, y, 0.2 * y)
    elif activation == "sigmoid":
        # exp on EUP + approximate reciprocal on EUP (no VPU divide);
        # clip keeps the result in [0, 1] despite the approx recip.
        y = pl.reciprocal(1.0 + jnp.exp(-y), approx=True)
        y = jnp.clip(y, 0.0, 1.0)
    o_ref[...] = y.astype(o_ref.dtype)


def matmul_act(x_bf16, w_bf16, activation, out_dtype=jnp.bfloat16):
    M, K = x_bf16.shape
    _, Cp = w_bf16.shape
    tm = _pick_tile(M)
    kernel = functools.partial(_matmul_act_kernel, activation=activation)
    return pl.pallas_call(
        kernel,
        out_shape=jax.ShapeDtypeStruct((M, Cp), out_dtype),
        grid=(M // tm,),
        in_specs=[
            pl.BlockSpec((tm, K), lambda i: (i, 0)),
            pl.BlockSpec((K, Cp), lambda i: (0, 0)),
        ],
        out_specs=pl.BlockSpec((tm, Cp), lambda i: (i, 0)),
        compiler_params=pltpu.CompilerParams(
            dimension_semantics=("parallel",),
            vmem_limit_bytes=VMEM_LIMIT,
        ),
    )(x_bf16, w_bf16)


def _matmul_bn_lrelu_kernel(x_ref, w_ref, g_ref, b_ref, o_ref, *, eps, slope):
    # Fused: conv-as-matmul -> BatchNorm (batch stats, training semantics)
    # -> LeakyReLU, all on one VMEM-resident (M, C_pad) block.
    y = jnp.dot(x_ref[...], w_ref[...], preferred_element_type=jnp.float32)
    m = y.shape[0]
    mean = jnp.sum(y, axis=0, keepdims=True) * (1.0 / m)
    centered = y - mean
    var = jnp.sum(centered * centered, axis=0, keepdims=True) * (1.0 / m)
    norm = centered * jax.lax.rsqrt(var + eps)
    out = norm * g_ref[...] + b_ref[...]
    o_ref[...] = jnp.where(out > 0, out, slope * out).astype(o_ref.dtype)


def matmul_bn_lrelu(x_bf16, w_bf16, gamma_pad, beta_pad,
                    eps=1e-5, slope=0.2, out_dtype=jnp.bfloat16):
    M, K = x_bf16.shape
    _, Cp = w_bf16.shape
    kernel = functools.partial(_matmul_bn_lrelu_kernel, eps=eps, slope=slope)
    return pl.pallas_call(
        kernel,
        out_shape=jax.ShapeDtypeStruct((M, Cp), out_dtype),
        grid=(1,),  # BN needs full-batch stats; whole block fits VMEM easily
        in_specs=[
            pl.BlockSpec((M, K), lambda i: (0, 0)),
            pl.BlockSpec((K, Cp), lambda i: (0, 0)),
            pl.BlockSpec((1, Cp), lambda i: (0, 0)),
            pl.BlockSpec((1, Cp), lambda i: (0, 0)),
        ],
        out_specs=pl.BlockSpec((M, Cp), lambda i: (0, 0)),
        compiler_params=pltpu.CompilerParams(
            dimension_semantics=("arbitrary",),
            vmem_limit_bytes=VMEM_LIMIT,
        ),
    )(x_bf16, w_bf16, gamma_pad, beta_pad)


# ----------------------------------------------------------------------------
# Plain-JAX glue: im2col + weight prep + layer wrappers
# ----------------------------------------------------------------------------
def im2col_nhwc(x, k, stride, pad):
    # XLA glue; operates on bf16 activations to keep the traffic small.
    N, H, W, C = x.shape
    xp = jnp.pad(x, ((0, 0), (pad, pad), (pad, pad), (0, 0)))
    Ho = (H + 2 * pad - k) // stride + 1
    Wo = (W + 2 * pad - k) // stride + 1
    cols = []
    for kh in range(k):
        for kw in range(k):
            cols.append(
                xp[:, kh:kh + stride * Ho:stride, kw:kw + stride * Wo:stride, :]
            )
    # (N, Ho, Wo, C, k*k) with last dim ordered (kh, kw); flatten K in
    # (C_in, kh, kw) order to match torch weight.reshape(C_out, -1)
    patches = jnp.stack(cols, axis=-1).reshape(N * Ho * Wo, C * k * k)
    return patches, (N, Ho, Wo)


def _prep_weight(w_oikk, c_pad):
    # (C_out, C_in, kH, kW) -> (K, C_pad) bf16, zero-padded lanes
    C_out = w_oikk.shape[0]
    w_mat = w_oikk.reshape(C_out, -1).T  # (K, C_out)
    K = w_mat.shape[0]
    w_pad = jnp.zeros((K, c_pad), jnp.float32).at[:, :C_out].set(w_mat)
    return w_pad.astype(jnp.bfloat16)


def conv_act(x_nhwc, w_oikk, stride, pad, activation, out_dtype=jnp.bfloat16):
    C_out, k = w_oikk.shape[0], w_oikk.shape[-1]
    c_pad = _round_up(max(C_out, LANE), LANE)
    patches, (N, Ho, Wo) = im2col_nhwc(x_nhwc, k, stride, pad)
    y = matmul_act(patches.astype(jnp.bfloat16), _prep_weight(w_oikk, c_pad),
                   activation=activation, out_dtype=out_dtype)
    return y[:, :C_out].reshape(N, Ho, Wo, C_out)


def conv_bn_lrelu(x_nhwc, w_oikk, gamma, beta, stride, pad):
    C_out, k = w_oikk.shape[0], w_oikk.shape[-1]
    c_pad = _round_up(max(C_out, LANE), LANE)
    patches, (N, Ho, Wo) = im2col_nhwc(x_nhwc, k, stride, pad)
    g_pad = jnp.zeros((1, c_pad), jnp.float32).at[0, :C_out].set(gamma)
    b_pad = jnp.zeros((1, c_pad), jnp.float32).at[0, :C_out].set(beta)
    y = matmul_bn_lrelu(patches.astype(jnp.bfloat16),
                        _prep_weight(w_oikk, c_pad), g_pad, b_pad)
    return y[:, :C_out].reshape(N, Ho, Wo, C_out)


def init_params(key, output_size, filter_size):
    fs = filter_size
    ks = jax.random.split(key, 5)
    std = 0.02  # DCGAN-style init
    return {
        "w1": jax.random.normal(ks[0], (fs, output_size, 4, 4), jnp.float32) * std,
        "w2": jax.random.normal(ks[1], (fs * 2, fs, 4, 4), jnp.float32) * std,
        "w3": jax.random.normal(ks[2], (fs * 4, fs * 2, 4, 4), jnp.float32) * std,
        "w4": jax.random.normal(ks[3], (fs * 8, fs * 4, 4, 4), jnp.float32) * std,
        "w5": jax.random.normal(ks[4], (1, fs * 8, 4, 4), jnp.float32) * std,
        # BatchNorm2d default init: weight=1, bias=0
        "bn2_g": jnp.ones((fs * 2,), jnp.float32),
        "bn2_b": jnp.zeros((fs * 2,), jnp.float32),
        "bn3_g": jnp.ones((fs * 4,), jnp.float32),
        "bn3_b": jnp.zeros((fs * 4,), jnp.float32),
        "bn4_g": jnp.ones((fs * 8,), jnp.float32),
        "bn4_b": jnp.zeros((fs * 8,), jnp.float32),
    }


def discriminator_forward(params, x_nchw):
    # NCHW (PyTorch) -> NHWC (internal), bf16 activations between layers
    h = jnp.transpose(x_nchw, (0, 2, 3, 1)).astype(jnp.bfloat16)

    # block 1: conv(k4,s2,p1) + LeakyReLU (no BN)
    h = conv_act(h, params["w1"], stride=2, pad=1, activation="leaky_relu")

    # blocks 2-4: conv + BatchNorm(batch stats) + LeakyReLU, fused in one kernel
    for w, g, b in (
        (params["w2"], params["bn2_g"], params["bn2_b"]),
        (params["w3"], params["bn3_g"], params["bn3_b"]),
        (params["w4"], params["bn4_g"], params["bn4_b"]),
    ):
        h = conv_bn_lrelu(h, w, g, b, stride=2, pad=1)

    # block 5: conv(k4,s1,p0) + Sigmoid, f32 output
    h = conv_act(h, params["w5"], stride=1, pad=0, activation="sigmoid",
                 out_dtype=jnp.float32)

    # NHWC -> NCHW  (matches PyTorch output shape (N, 1, 1, 1))
    return jnp.transpose(h, (0, 3, 1, 2))


if __name__ == "__main__":
    # DCGAN discriminator needs 64x64 spatial input for the final 4x4 valid conv.
    batch, in_channels, spatial = 2, 3, 64
    filter_size = 8

    key = jax.random.PRNGKey(0)
    k_x, k_p = jax.random.split(key)
    x = jax.random.normal(k_x, (batch, in_channels, spatial, spatial), jnp.float32)
    params = init_params(k_p, output_size=in_channels, filter_size=filter_size)

    out = jax.jit(discriminator_forward)(params, x)
    out = jax.block_until_ready(out)

    assert out.shape == (batch, 1, 1, 1), out.shape
    assert bool(jnp.all((out >= 0.0) & (out <= 1.0)))
    print("KERNEL_OK")
</pallas_src>

<mosaic_0001>
module attributes {stable_mosaic.version = 11 : i64} {
  func.func @_matmul_act_kernel(%arg0: i32, %arg1: memref<1024x48xbf16, #tpu.memory_space<vmem>>, %arg2: memref<48x128xbf16, #tpu.memory_space<vmem>>, %arg3: memref<1024x128xbf16, #tpu.memory_space<vmem>>) attributes {dimension_semantics = [#tpu.dimension_semantics<parallel>], iteration_bounds = array<i64: 2>, scalar_prefetch = 0 : i64, scratch_operands = 0 : i64, tpu.core_type = #tpu.core_type<tc>, window_params = [{transform_indices = @transform_0, window_bounds = array<i64: 1024, 48>}, {pipeline_mode = #tpu.pipeline_mode<synchronous>, transform_indices = @transform_1, window_bounds = array<i64: 48, 128>}, {transform_indices = @transform_2, window_bounds = array<i64: 1024, 128>}]} {
    %c0 = arith.constant 0 : index
    %c0_0 = arith.constant 0 : index
    %0 = vector.load %arg1[%c0, %c0_0] : memref<1024x48xbf16, #tpu.memory_space<vmem>>, vector<1024x48xbf16>
    %c0_1 = arith.constant 0 : index
    %c0_2 = arith.constant 0 : index
    %1 = vector.load %arg2[%c0_1, %c0_2] : memref<48x128xbf16, #tpu.memory_space<vmem>>, vector<48x128xbf16>
    %cst = arith.constant dense<0.000000e+00> : vector<1024x128xf32>
    %2 = tpu.matmul %0, %1, %cst {dimension_numbers = #tpu.dot_dimension_numbers<[1], [0], [0], [1], [0, 0, 1, 1], [], []>} : vector<1024x48xbf16>, vector<48x128xbf16>, vector<1024x128xf32> -> vector<1024x128xf32>
    %cst_3 = arith.constant 0.000000e+00 : f32
    %3 = vector.broadcast %cst_3 : f32 to vector<1024x128xf32>
    %4 = arith.cmpf ogt, %2, %3 : vector<1024x128xf32>
    %cst_4 = arith.constant 2.000000e-01 : f32
    %5 = vector.broadcast %cst_4 : f32 to vector<1024x128xf32>
    %6 = arith.mulf %5, %2 : vector<1024x128xf32>
    %7 = arith.select %4, %2, %6 : vector<1024x128xi1>, vector<1024x128xf32>
    %8 = arith.truncf %7 : vector<1024x128xf32> to vector<1024x128xbf16>
    %c0_5 = arith.constant 0 : index
    %c0_6 = arith.constant 0 : index
    %9 = vector.load %arg3[%c0_5, %c0_6] : memref<1024x128xbf16, #tpu.memory_space<vmem>>, vector<1024x128xbf16>
    tpu.vector_store %arg3[%c0_5, %c0_6], %8 {strides = array<i32>} : memref<1024x128xbf16, #tpu.memory_space<vmem>>, vector<1024x128xbf16>,
    return
  }
  func.func @transform_0(%arg0: i32) -> (i32, i32) {
    %c0_i32 = arith.constant 0 : i32
    %c0_i32_0 = arith.constant 0 : i32
    return %arg0, %c0_i32 : i32, i32
  }
  func.func @transform_1(%arg0: i32) -> (i32, i32) {
    %c0_i32 = arith.constant 0 : i32
    %c0_i32_0 = arith.constant 0 : i32
    %c0_i32_1 = arith.constant 0 : i32
    return %c0_i32, %c0_i32_0 : i32, i32
  }
  func.func @transform_2(%arg0: i32) -> (i32, i32) {
    %c0_i32 = arith.constant 0 : i32
    %c0_i32_0 = arith.constant 0 : i32
    return %arg0, %c0_i32 : i32, i32
  }
}

module attributes {stable_mosaic.version = 11 : i64} {
  func.func @_matmul_bn_lrelu_kernel(%arg0: i32, %arg1: memref<512x128xbf16, #tpu.memory_space<vmem>>, %arg2: memref<128x128xbf16, #tpu.memory_space<vmem>>, %arg3: memref<1x128xf32, #tpu.memory_space<vmem>>, %arg4: memref<1x128xf32, #tpu.memory_space<vmem>>, %arg5: memref<512x128xbf16, #tpu.memory_space<vmem>>) attributes {dimension_semantics = [#tpu.dimension_semantics<arbitrary>], iteration_bounds = array<i64: 1>, scalar_prefetch = 0 : i64, scratch_operands = 0 : i64, tpu.core_type = #tpu.core_type<tc>, window_params = [{pipeline_mode = #tpu.pipeline_mode<synchronous>, transform_indices = @transform_0, window_bounds = array<i64: 512, 128>}, {pipeline_mode = #tpu.pipeline_mode<synchronous>, transform_indices = @transform_1, window_bounds = array<i64: 128, 128>}, {pipeline_mode = #tpu.pipeline_mode<synchronous>, transform_indices = @transform_2, window_bounds = array<i64: 1, 128>}, {pipeline_mode = #tpu.pipeline_mode<synchronous>, transform_indices = @transform_3, window_bounds = array<i64: 1, 128>}, {pipeline_mode = #tpu.pipeline_mode<synchronous>, transform_indices = @transform_4, window_bounds = array<i64: 512, 128>}]} {
    %c0 = arith.constant 0 : index
    %c0_0 = arith.constant 0 : index
    %0 = vector.load %arg1[%c0, %c0_0] : memref<512x128xbf16, #tpu.memory_space<vmem>>, vector<512x128xbf16>
    %c0_1 = arith.constant 0 : index
    %c0_2 = arith.constant 0 : index
    %1 = vector.load %arg2[%c0_1, %c0_2] : memref<128x128xbf16, #tpu.memory_space<vmem>>, vector<128x128xbf16>
    %cst = arith.constant dense<0.000000e+00> : vector<512x128xf32>
    %2 = tpu.matmul %0, %1, %cst {dimension_numbers = #tpu.dot_dimension_numbers<[1], [0], [0], [1], [0, 0, 1, 1], [], []>} : vector<512x128xbf16>, vector<128x128xbf16>, vector<512x128xf32> -> vector<512x128xf32>
    %cst_3 = arith.constant dense<0.000000e+00> : vector<128xf32>
    %3 = vector.multi_reduction <add>, %2, %cst_3 [0] : vector<512x128xf32> to vector<128xf32>
    %4 = vector.shape_cast %3 : vector<128xf32> to vector<1x128xf32>
    %cst_4 = arith.constant 0.001953125 : f32
    %5 = vector.broadcast %cst_4 : f32 to vector<1x128xf32>
    %6 = arith.mulf %4, %5 : vector<1x128xf32>
    %7 = vector.broadcast %6 : vector<1x128xf32> to vector<512x128xf32>
    %8 = arith.subf %2, %7 : vector<512x128xf32>
    %9 = arith.mulf %8, %8 : vector<512x128xf32>
    %cst_5 = arith.constant dense<0.000000e+00> : vector<128xf32>
    %10 = vector.multi_reduction <add>, %9, %cst_5 [0] : vector<512x128xf32> to vector<128xf32>
    %11 = vector.shape_cast %10 : vector<128xf32> to vector<1x128xf32>
    %cst_6 = arith.constant 0.001953125 : f32
    %12 = vector.broadcast %cst_6 : f32 to vector<1x128xf32>
    %13 = arith.mulf %11, %12 : vector<1x128xf32>
    %cst_7 = arith.constant 9.99999974E-6 : f32
    %14 = vector.broadcast %cst_7 : f32 to vector<1x128xf32>
    %15 = arith.addf %13, %14 : vector<1x128xf32>
    %16 = math.rsqrt %15 : vector<1x128xf32>
    %17 = vector.broadcast %16 : vector<1x128xf32> to vector<512x128xf32>
    %18 = arith.mulf %8, %17 : vector<512x128xf32>
    %c0_8 = arith.constant 0 : index
    %c0_9 = arith.constant 0 : index
    %19 = vector.load %arg3[%c0_8, %c0_9] : memref<1x128xf32, #tpu.memory_space<vmem>>, vector<1x128xf32>
    %20 = vector.broadcast %19 : vector<1x128xf32> to vector<512x128xf32>
    %21 = arith.mulf %18, %20 : vector<512x128xf32>
    %c0_10 = arith.constant 0 : index
    %c0_11 = arith.constant 0 : index
    %22 = vector.load %arg4[%c0_10, %c0_11] : memref<1x128xf32, #tpu.memory_space<vmem>>, vector<1x128xf32>
    %23 = vector.broadcast %22 : vector<1x128xf32> to vector<512x128xf32>
    %24 = arith.addf %21, %23 : vector<512x128xf32>
    %cst_12 = arith.constant 0.000000e+00 : f32
    %25 = vector.broadcast %cst_12 : f32 to vector<512x128xf32>
    %26 = arith.cmpf ogt, %24, %25 : vector<512x128xf32>
    %cst_13 = arith.constant 2.000000e-01 : f32
    %27 = vector.broadcast %cst_13 : f32 to vector<512x128xf32>
    %28 = arith.mulf %27, %24 : vector<512x128xf32>
    %29 = arith.select %26, %24, %28 : vector<512x128xi1>, vector<512x128xf32>
    %30 = arith.truncf %29 : vector<512x128xf32> to vector<512x128xbf16>
    %c0_14 = arith.constant 0 : index
    %c0_15 = arith.constant 0 : index
    %31 = vector.load %arg5[%c0_14, %c0_15] : memref<512x128xbf16, #tpu.memory_space<vmem>>, vector<512x128xbf16>
    tpu.vector_store %arg5[%c0_14, %c0_15], %30 {strides = array<i32>} : memref<512x128xbf16, #tpu.memory_space<vmem>>, vector<512x128xbf16>,
    return
  }
  func.func @transform_0(%arg0: i32) -> (i32, i32) {
    %c0_i32 = arith.constant 0 : i32
    %c0_i32_0 = arith.constant 0 : i32
    %c0_i32_1 = arith.constant 0 : i32
    return %c0_i32, %c0_i32_0 : i32, i32
  }
  func.func @transform_1(%arg0: i32) -> (i32, i32) {
    %c0_i32 = arith.constant 0 : i32
    %c0_i32_0 = arith.constant 0 : i32
    %c0_i32_1 = arith.constant 0 : i32
    return %c0_i32, %c0_i32_0 : i32, i32
  }
  func.func @transform_2(%arg0: i32) -> (i32, i32) {
    %c0_i32 = arith.constant 0 : i32
    %c0_i32_0 = arith.constant 0 : i32
    %c0_i32_1 = arith.constant 0 : i32
    return %c0_i32, %c0_i32_0 : i32, i32
  }
  func.func @transform_3(%arg0: i32) -> (i32, i32) {
    %c0_i32 = arith.constant 0 : i32
    %c0_i32_0 = arith.constant 0 : i32
    %c0_i32_1 = arith.constant 0 : i32
    return %c0_i32, %c0_i32_0 : i32, i32
  }
  func.func @transform_4(%arg0: i32) -> (i32, i32) {
    %c0_i32 = arith.constant 0 : i32
    %c0_i32_0 = arith.constant 0 : i32
    %c0_i32_1 = arith.constant 0 : i32
    return %c0_i32, %c0_i32_0 : i32, i32
  }
}

module attributes {stable_mosaic.version = 11 : i64} {
  func.func @_matmul_bn_lrelu_kernel(%arg0: i32, %arg1: memref<128x256xbf16, #tpu.memory_space<vmem>>, %arg2: memref<256x128xbf16, #tpu.memory_space<vmem>>, %arg3: memref<1x128xf32, #tpu.memory_space<vmem>>, %arg4: memref<1x128xf32, #tpu.memory_space<vmem>>, %arg5: memref<128x128xbf16, #tpu.memory_space<vmem>>) attributes {dimension_semantics = [#tpu.dimension_semantics<arbitrary>], iteration_bounds = array<i64: 1>, scalar_prefetch = 0 : i64, scratch_operands = 0 : i64, tpu.core_type = #tpu.core_type<tc>, window_params = [{pipeline_mode = #tpu.pipeline_mode<synchronous>, transform_indices = @transform_0, window_bounds = array<i64: 128, 256>}, {pipeline_mode = #tpu.pipeline_mode<synchronous>, transform_indices = @transform_1, window_bounds = array<i64: 256, 128>}, {pipeline_mode = #tpu.pipeline_mode<synchronous>, transform_indices = @transform_2, window_bounds = array<i64: 1, 128>}, {pipeline_mode = #tpu.pipeline_mode<synchronous>, transform_indices = @transform_3, window_bounds = array<i64: 1, 128>}, {pipeline_mode = #tpu.pipeline_mode<synchronous>, transform_indices = @transform_4, window_bounds = array<i64: 128, 128>}]} {
    %c0 = arith.constant 0 : index
    %c0_0 = arith.constant 0 : index
    %0 = vector.load %arg1[%c0, %c0_0] : memref<128x256xbf16, #tpu.memory_space<vmem>>, vector<128x256xbf16>
    %c0_1 = arith.constant 0 : index
    %c0_2 = arith.constant 0 : index
    %1 = vector.load %arg2[%c0_1, %c0_2] : memref<256x128xbf16, #tpu.memory_space<vmem>>, vector<256x128xbf16>
    %cst = arith.constant dense<0.000000e+00> : vector<128x128xf32>
    %2 = tpu.matmul %0, %1, %cst {dimension_numbers = #tpu.dot_dimension_numbers<[1], [0], [0], [1], [0, 0, 1, 1], [], []>} : vector<128x256xbf16>, vector<256x128xbf16>, vector<128x128xf32> -> vector<128x128xf32>
    %cst_3 = arith.constant dense<0.000000e+00> : vector<128xf32>
    %3 = vector.multi_reduction <add>, %2, %cst_3 [0] : vector<128x128xf32> to vector<128xf32>
    %4 = vector.shape_cast %3 : vector<128xf32> to vector<1x128xf32>
    %cst_4 = arith.constant 7.812500e-03 : f32
    %5 = vector.broadcast %cst_4 : f32 to vector<1x128xf32>
    %6 = arith.mulf %4, %5 : vector<1x128xf32>
    %7 = vector.broadcast %6 : vector<1x128xf32> to vector<128x128xf32>
    %8 = arith.subf %2, %7 : vector<128x128xf32>
    %9 = arith.mulf %8, %8 : vector<128x128xf32>
    %cst_5 = arith.constant dense<0.000000e+00> : vector<128xf32>
    %10 = vector.multi_reduction <add>, %9, %cst_5 [0] : vector<128x128xf32> to vector<128xf32>
    %11 = vector.shape_cast %10 : vector<128xf32> to vector<1x128xf32>
    %cst_6 = arith.constant 7.812500e-03 : f32
    %12 = vector.broadcast %cst_6 : f32 to vector<1x128xf32>
    %13 = arith.mulf %11, %12 : vector<1x128xf32>
    %cst_7 = arith.constant 9.99999974E-6 : f32
    %14 = vector.broadcast %cst_7 : f32 to vector<1x128xf32>
    %15 = arith.addf %13, %14 : vector<1x128xf32>
    %16 = math.rsqrt %15 : vector<1x128xf32>
    %17 = vector.broadcast %16 : vector<1x128xf32> to vector<128x128xf32>
    %18 = arith.mulf %8, %17 : vector<128x128xf32>
    %c0_8 = arith.constant 0 : index
    %c0_9 = arith.constant 0 : index
    %19 = vector.load %arg3[%c0_8, %c0_9] : memref<1x128xf32, #tpu.memory_space<vmem>>, vector<1x128xf32>
    %20 = vector.broadcast %19 : vector<1x128xf32> to vector<128x128xf32>
    %21 = arith.mulf %18, %20 : vector<128x128xf32>
    %c0_10 = arith.constant 0 : index
    %c0_11 = arith.constant 0 : index
    %22 = vector.load %arg4[%c0_10, %c0_11] : memref<1x128xf32, #tpu.memory_space<vmem>>, vector<1x128xf32>
    %23 = vector.broadcast %22 : vector<1x128xf32> to vector<128x128xf32>
    %24 = arith.addf %21, %23 : vector<128x128xf32>
    %cst_12 = arith.constant 0.000000e+00 : f32
    %25 = vector.broadcast %cst_12 : f32 to vector<128x128xf32>
    %26 = arith.cmpf ogt, %24, %25 : vector<128x128xf32>
    %cst_13 = arith.constant 2.000000e-01 : f32
    %27 = vector.broadcast %cst_13 : f32 to vector<128x128xf32>
    %28 = arith.mulf %27, %24 : vector<128x128xf32>
    %29 = arith.select %26, %24, %28 : vector<128x128xi1>, vector<128x128xf32>
    %30 = arith.truncf %29 : vector<128x128xf32> to vector<128x128xbf16>
    %c0_14 = arith.constant 0 : index
    %c0_15 = arith.constant 0 : index
    %31 = vector.load %arg5[%c0_14, %c0_15] : memref<128x128xbf16, #tpu.memory_space<vmem>>, vector<128x128xbf16>
    tpu.vector_store %arg5[%c0_14, %c0_15], %30 {strides = array<i32>} : memref<128x128xbf16, #tpu.memory_space<vmem>>, vector<128x128xbf16>,
    return
  }
  func.func @transform_0(%arg0: i32) -> (i32, i32) {
    %c0_i32 = arith.constant 0 : i32
    %c0_i32_0 = arith.constant 0 : i32
    %c0_i32_1 = arith.constant 0 : i32
    return %c0_i32, %c0_i32_0 : i32, i32
  }
  func.func @transform_1(%arg0: i32) -> (i32, i32) {
    %c0_i32 = arith.constant 0 : i32
    %c0_i32_0 = arith.constant 0 : i32
    %c0_i32_1 = arith.constant 0 : i32
    return %c0_i32, %c0_i32_0 : i32, i32
  }
  func.func @transform_2(%arg0: i32) -> (i32, i32) {
    %c0_i32 = arith.constant 0 : i32
    %c0_i32_0 = arith.constant 0 : i32
    %c0_i32_1 = arith.constant 0 : i32
    return %c0_i32, %c0_i32_0 : i32, i32
  }
  func.func @transform_3(%arg0: i32) -> (i32, i32) {
    %c0_i32 = arith.constant 0 : i32
    %c0_i32_0 = arith.constant 0 : i32
    %c0_i32_1 = arith.constant 0 : i32
    return %c0_i32, %c0_i32_0 : i32, i32
  }
  func.func @transform_4(%arg0: i32) -> (i32, i32) {
    %c0_i32 = arith.constant 0 : i32
    %c0_i32_0 = arith.constant 0 : i32
    %c0_i32_1 = arith.constant 0 : i32
    return %c0_i32, %c0_i32_0 : i32, i32
  }
}

module attributes {stable_mosaic.version = 11 : i64} {
  func.func @_matmul_bn_lrelu_kernel(%arg0: i32, %arg1: memref<32x512xbf16, #tpu.memory_space<vmem>>, %arg2: memref<512x128xbf16, #tpu.memory_space<vmem>>, %arg3: memref<1x128xf32, #tpu.memory_space<vmem>>, %arg4: memref<1x128xf32, #tpu.memory_space<vmem>>, %arg5: memref<32x128xbf16, #tpu.memory_space<vmem>>) attributes {dimension_semantics = [#tpu.dimension_semantics<arbitrary>], iteration_bounds = array<i64: 1>, scalar_prefetch = 0 : i64, scratch_operands = 0 : i64, tpu.core_type = #tpu.core_type<tc>, window_params = [{pipeline_mode = #tpu.pipeline_mode<synchronous>, transform_indices = @transform_0, window_bounds = array<i64: 32, 512>}, {pipeline_mode = #tpu.pipeline_mode<synchronous>, transform_indices = @transform_1, window_bounds = array<i64: 512, 128>}, {pipeline_mode = #tpu.pipeline_mode<synchronous>, transform_indices = @transform_2, window_bounds = array<i64: 1, 128>}, {pipeline_mode = #tpu.pipeline_mode<synchronous>, transform_indices = @transform_3, window_bounds = array<i64: 1, 128>}, {pipeline_mode = #tpu.pipeline_mode<synchronous>, transform_indices = @transform_4, window_bounds = array<i64: 32, 128>}]} {
    %c0 = arith.constant 0 : index
    %c0_0 = arith.constant 0 : index
    %0 = vector.load %arg1[%c0, %c0_0] : memref<32x512xbf16, #tpu.memory_space<vmem>>, vector<32x512xbf16>
    %c0_1 = arith.constant 0 : index
    %c0_2 = arith.constant 0 : index
    %1 = vector.load %arg2[%c0_1, %c0_2] : memref<512x128xbf16, #tpu.memory_space<vmem>>, vector<512x128xbf16>
    %cst = arith.constant dense<0.000000e+00> : vector<32x128xf32>
    %2 = tpu.matmul %0, %1, %cst {dimension_numbers = #tpu.dot_dimension_numbers<[1], [0], [0], [1], [0, 0, 1, 1], [], []>} : vector<32x512xbf16>, vector<512x128xbf16>, vector<32x128xf32> -> vector<32x128xf32>
    %cst_3 = arith.constant dense<0.000000e+00> : vector<128xf32>
    %3 = vector.multi_reduction <add>, %2, %cst_3 [0] : vector<32x128xf32> to vector<128xf32>
    %4 = vector.shape_cast %3 : vector<128xf32> to vector<1x128xf32>
    %cst_4 = arith.constant 3.125000e-02 : f32
    %5 = vector.broadcast %cst_4 : f32 to vector<1x128xf32>
    %6 = arith.mulf %4, %5 : vector<1x128xf32>
    %7 = vector.broadcast %6 : vector<1x128xf32> to vector<32x128xf32>
    %8 = arith.subf %2, %7 : vector<32x128xf32>
    %9 = arith.mulf %8, %8 : vector<32x128xf32>
    %cst_5 = arith.constant dense<0.000000e+00> : vector<128xf32>
    %10 = vector.multi_reduction <add>, %9, %cst_5 [0] : vector<32x128xf32> to vector<128xf32>
    %11 = vector.shape_cast %10 : vector<128xf32> to vector<1x128xf32>
    %cst_6 = arith.constant 3.125000e-02 : f32
    %12 = vector.broadcast %cst_6 : f32 to vector<1x128xf32>
    %13 = arith.mulf %11, %12 : vector<1x128xf32>
    %cst_7 = arith.constant 9.99999974E-6 : f32
    %14 = vector.broadcast %cst_7 : f32 to vector<1x128xf32>
    %15 = arith.addf %13, %14 : vector<1x128xf32>
    %16 = math.rsqrt %15 : vector<1x128xf32>
    %17 = vector.broadcast %16 : vector<1x128xf32> to vector<32x128xf32>
    %18 = arith.mulf %8, %17 : vector<32x128xf32>
    %c0_8 = arith.constant 0 : index
    %c0_9 = arith.constant 0 : index
    %19 = vector.load %arg3[%c0_8, %c0_9] : memref<1x128xf32, #tpu.memory_space<vmem>>, vector<1x128xf32>
    %20 = vector.broadcast %19 : vector<1x128xf32> to vector<32x128xf32>
    %21 = arith.mulf %18, %20 : vector<32x128xf32>
    %c0_10 = arith.constant 0 : index
    %c0_11 = arith.constant 0 : index
    %22 = vector.load %arg4[%c0_10, %c0_11] : memref<1x128xf32, #tpu.memory_space<vmem>>, vector<1x128xf32>
    %23 = vector.broadcast %22 : vector<1x128xf32> to vector<32x128xf32>
    %24 = arith.addf %21, %23 : vector<32x128xf32>
    %cst_12 = arith.constant 0.000000e+00 : f32
    %25 = vector.broadcast %cst_12 : f32 to vector<32x128xf32>
    %26 = arith.cmpf ogt, %24, %25 : vector<32x128xf32>
    %cst_13 = arith.constant 2.000000e-01 : f32
    %27 = vector.broadcast %cst_13 : f32 to vector<32x128xf32>
    %28 = arith.mulf %27, %24 : vector<32x128xf32>
    %29 = arith.select %26, %24, %28 : vector<32x128xi1>, vector<32x128xf32>
    %30 = arith.truncf %29 : vector<32x128xf32> to vector<32x128xbf16>
    %c0_14 = arith.constant 0 : index
    %c0_15 = arith.constant 0 : index
    %31 = vector.load %arg5[%c0_14, %c0_15] : memref<32x128xbf16, #tpu.memory_space<vmem>>, vector<32x128xbf16>
    tpu.vector_store %arg5[%c0_14, %c0_15], %30 {strides = array<i32>} : memref<32x128xbf16, #tpu.memory_space<vmem>>, vector<32x128xbf16>,
    return
  }
  func.func @transform_0(%arg0: i32) -> (i32, i32) {
    %c0_i32 = arith.constant 0 : i32
    %c0_i32_0 = arith.constant 0 : i32
    %c0_i32_1 = arith.constant 0 : i32
    return %c0_i32, %c0_i32_0 : i32, i32
  }
  func.func @transform_1(%arg0: i32) -> (i32, i32) {
    %c0_i32 = arith.constant 0 : i32
    %c0_i32_0 = arith.constant 0 : i32
    %c0_i32_1 = arith.constant 0 : i32
    return %c0_i32, %c0_i32_0 : i32, i32
  }
  func.func @transform_2(%arg0: i32) -> (i32, i32) {
    %c0_i32 = arith.constant 0 : i32
    %c0_i32_0 = arith.constant 0 : i32
    %c0_i32_1 = arith.constant 0 : i32
    return %c0_i32, %c0_i32_0 : i32, i32
  }
  func.func @transform_3(%arg0: i32) -> (i32, i32) {
    %c0_i32 = arith.constant 0 : i32
    %c0_i32_0 = arith.constant 0 : i32
    %c0_i32_1 = arith.constant 0 : i32
    return %c0_i32, %c0_i32_0 : i32, i32
  }
  func.func @transform_4(%arg0: i32) -> (i32, i32) {
    %c0_i32 = arith.constant 0 : i32
    %c0_i32_0 = arith.constant 0 : i32
    %c0_i32_1 = arith.constant 0 : i32
    return %c0_i32, %c0_i32_0 : i32, i32
  }
}

module attributes {stable_mosaic.version = 11 : i64} {
  func.func @_matmul_act_kernel(%arg0: i32, %arg1: memref<2x1024xbf16, #tpu.memory_space<vmem>>, %arg2: memref<1024x128xbf16, #tpu.memory_space<vmem>>, %arg3: memref<2x128xf32, #tpu.memory_space<vmem>>) attributes {dimension_semantics = [#tpu.dimension_semantics<parallel>], iteration_bounds = array<i64: 1>, scalar_prefetch = 0 : i64, scratch_operands = 0 : i64, tpu.core_type = #tpu.core_type<tc>, window_params = [{transform_indices = @transform_0, window_bounds = array<i64: 2, 1024>}, {pipeline_mode = #tpu.pipeline_mode<synchronous>, transform_indices = @transform_1, window_bounds = array<i64: 1024, 128>}, {transform_indices = @transform_2, window_bounds = array<i64: 2, 128>}]} {
    %c0 = arith.constant 0 : index
    %c0_0 = arith.constant 0 : index
    %0 = vector.load %arg1[%c0, %c0_0] : memref<2x1024xbf16, #tpu.memory_space<vmem>>, vector<2x1024xbf16>
    %c0_1 = arith.constant 0 : index
    %c0_2 = arith.constant 0 : index
    %1 = vector.load %arg2[%c0_1, %c0_2] : memref<1024x128xbf16, #tpu.memory_space<vmem>>, vector<1024x128xbf16>
    %cst = arith.constant dense<0.000000e+00> : vector<2x128xf32>
    %2 = tpu.matmul %0, %1, %cst {dimension_numbers = #tpu.dot_dimension_numbers<[1], [0], [0], [1], [0, 0, 1, 1], [], []>} : vector<2x1024xbf16>, vector<1024x128xbf16>, vector<2x128xf32> -> vector<2x128xf32>
    %cst_3 = arith.constant 0.000000e+00 : f32
    %3 = vector.broadcast %cst_3 : f32 to vector<2x128xf32>
    %4 = arith.subf %3, %2 : vector<2x128xf32>
    %5 = math.exp %4 : vector<2x128xf32>
    %cst_4 = arith.constant 1.000000e+00 : f32
    %6 = vector.broadcast %cst_4 : f32 to vector<2x128xf32>
    %7 = arith.addf %6, %5 : vector<2x128xf32>
    %8 = tpu.reciprocal %7 {approx = true} : vector<2x128xf32> -> vector<2x128xf32>
    %cst_5 = arith.constant 0.000000e+00 : f32
    %cst_6 = arith.constant 1.000000e+00 : f32
    %9 = vector.broadcast %cst_5 : f32 to vector<2x128xf32>
    %10 = arith.maximumf %9, %8 : vector<2x128xf32>
    %11 = vector.broadcast %cst_6 : f32 to vector<2x128xf32>
    %12 = arith.minimumf %11, %10 : vector<2x128xf32>
    %c0_7 = arith.constant 0 : index
    %c0_8 = arith.constant 0 : index
    %13 = vector.load %arg3[%c0_7, %c0_8] : memref<2x128xf32, #tpu.memory_space<vmem>>, vector<2x128xf32>
    tpu.vector_store %arg3[%c0_7, %c0_8], %12 {strides = array<i32>} : memref<2x128xf32, #tpu.memory_space<vmem>>, vector<2x128xf32>,
    return
  }
  func.func @transform_0(%arg0: i32) -> (i32, i32) {
    %c0_i32 = arith.constant 0 : i32
    %c0_i32_0 = arith.constant 0 : i32
    return %arg0, %c0_i32 : i32, i32
  }
  func.func @transform_1(%arg0: i32) -> (i32, i32) {
    %c0_i32 = arith.constant 0 : i32
    %c0_i32_0 = arith.constant 0 : i32
    %c0_i32_1 = arith.constant 0 : i32
    return %c0_i32, %c0_i32_0 : i32, i32
  }
  func.func @transform_2(%arg0: i32) -> (i32, i32) {
    %c0_i32 = arith.constant 0 : i32
    %c0_i32_0 = arith.constant 0 : i32
    return %arg0, %c0_i32 : i32, i32
  }
}

</mosaic_0001>

<llo_original>
// kernel: discriminator_forward.5
$region0: #{discriminator_forward.5}
  #allocation0 [shape = 'u32[]', space=smem, size = 0x4, offset = 0x4, fixed_abs, tag = 'smem constant byte address 0x4 - core index']
  #allocation1 [shape = 'u32[144,128]{1,0:T(1,128)}', space=vmem, size = 0x12000, scoped, tag = 'internal scratch']
  %s0 = inlined_call_operand.vmem [shape: bf16[2048,48], index: 0, kind: input, shape index: {}]
  %s1 = inlined_call_operand.vmem [shape: bf16[48,128], index: 1, kind: input, shape index: {}]
  %s2 = inlined_call_operand.vmem [shape: bf16[2048,128], index: 2, kind: output, shape index: {}]
  %s3 = sld [smem:[#allocation0]]
  $region41: #{discriminator_forward.5} parent=0
    _
  %s5 = ssub.s32 1, %s3
  %s6 = scalar_select 0, %s5, %s3
  loop: start=0, step=1, limit=4
  $region2: #{discriminator_forward.5} parent=0 // loop_pre_header
    _
  $region3: #{discriminator_forward.5} parent=0 // loop_header
    %s8 = sphi 0, %s12
    %p9 = scmp.ge.s32.totalorder %s8, 4
    %s18 = sphi 0, %s20
    %s21 = sphi 0, %s18
    %s22 = sphi 0, %s21
    %s38 = sphi 0, %s22
    %s42 = sphi 0, %s42
    %s44 = sphi 0, %s42
    %s45 = sphi 0, %s44
    %s59 = sphi 0, %s45
    %s65 = sphi 0, %s67
    %s68 = sphi 0, %s65
    %s69 = sphi 0, %s68
    %s85 = sphi 0, %s69
  $region4: #{discriminator_forward.5} parent=0 // loop_header_branch
    %11 = sbr.rel (%p9) target = $region8
  $region5: #{discriminator_forward.5} parent=0 // loop_body
    %s13 = ssub.s32 %s8, 1
    %s14 = ssub.s32 %s8, 2
    %s15 = sadd.s32 %s8, 1
    %s16 = ssub.s32 %s8, %s15
    %p17 = scmp.eq.s32.totalorder %s16, 0
    %s19 = sadd.s32 %s18, 1
    %s20 = scalar_select %p17, %s18, %s19
    %p23 = pneg %p17
    %p24 = scmp.eq.s32.totalorder %s8, 1
    %p25 = por %p23, %p24
    %p26 = scmp.ne.s32.totalorder %s18, %s21
    %p27 = scmp.eq.s32.totalorder %s8, 0
    %p28 = por %p26, %p27
    %p29 = scmp.ne.s32.totalorder %s18, %s21
    %p30 = scmp.eq.s32.totalorder %s13, 1
    %p31 = por %p29, %p30
    %p32 = scmp.ne.s32.totalorder %s21, %s22
    %p33 = scmp.eq.s32.totalorder %s13, 0
    %p34 = por %p32, %p33
    %p35 = scmp.ne.s32.totalorder %s21, %s22
    %p36 = scmp.eq.s32.totalorder %s14, 1
    %p37 = por %p35, %p36
    %p39 = scmp.ne.s32.totalorder %s22, %s38
    %p40 = scmp.eq.s32.totalorder %s14, 0
    %p41 = por %p39, %p40
    %s43 = sadd.s32 %s42, 1
    %p46 = scmp.eq.s32.totalorder %s8, 1
    %p47 = scmp.ne.s32.totalorder %s42, %s44
    %p48 = scmp.eq.s32.totalorder %s8, 0
    %p49 = por %p47, %p48
    %p50 = scmp.ne.s32.totalorder %s42, %s44
    %p51 = scmp.eq.s32.totalorder %s13, 1
    %p52 = por %p50, %p51
    %p53 = scmp.ne.s32.totalorder %s44, %s45
    %p54 = scmp.eq.s32.totalorder %s13, 0
    %p55 = por %p53, %p54
    %p56 = scmp.ne.s32.totalorder %s44, %s45
    %p57 = scmp.eq.s32.totalorder %s14, 1
    %p58 = por %p56, %p57
    %p60 = scmp.ne.s32.totalorder %s45, %s59
    %p61 = scmp.eq.s32.totalorder %s14, 0
    %p62 = por %p60, %p61
    %s63 = ssub.s32 %s8, %s15
    %p64 = scmp.eq.s32.totalorder %s63, 0
    %s66 = sadd.s32 %s65, 1
    %s67 = scalar_select %p64, %s65, %s66
    %p70 = pneg %p64
    %p71 = scmp.eq.s32.totalorder %s8, 1
    %p72 = por %p70, %p71
    %p73 = scmp.ne.s32.totalorder %s65, %s68
    %p74 = scmp.eq.s32.totalorder %s8, 0
    %p75 = por %p73, %p74
    %p76 = scmp.ne.s32.totalorder %s65, %s68
    %p77 = scmp.eq.s32.totalorder %s13, 1
    %p78 = por %p76, %p77
    %p79 = scmp.ne.s32.totalorder %s68, %s69
    %p80 = scmp.eq.s32.totalorder %s13, 0
    %p81 = por %p79, %p80
    %p82 = scmp.ne.s32.totalorder %s68, %s69
    %p83 = scmp.eq.s32.totalorder %s14, 1
    %p84 = por %p82, %p83
    %p86 = scmp.ne.s32.totalorder %s69, %s85
    %p87 = scmp.eq.s32.totalorder %s14, 0
    %p88 = por %p86, %p87
    %p89 = scmp.le.s32.totalorder 1, %s8
    %p90 = scmp.lt.s32.totalorder %s8, 3
    %p91 = pnand %p89, %p90
    %p92 = pneg %p91
    // Predicated region
    $region9: #{discriminator_forward.5} parent=5 // pred_check
      _
    $region10: #{discriminator_forward.5} parent=5 // pred_check_branch
      %94 = sbr.rel (%p91) target = $region12
    $region11: #{discriminator_forward.5} parent=5 // pred_region
      %s95 = ssub.s32 %s8, 1
      // Predicated region
      $region13: #{discriminator_forward.5} parent=11 // pred_check
        %p96 = pneg %p55
      $region14: #{discriminator_forward.5} parent=11 // pred_check_branch
        %98 = sbr.rel (%p96) target = $region16
      $region15: #{discriminator_forward.5} parent=11 // pred_region
        _
      $region16: #{discriminator_forward.5} parent=11 // pred_fallthru
        _
    $region12: #{discriminator_forward.5} parent=5 // pred_fallthru
      _
    %p99 = scmp.lt.s32.totalorder %s8, 2
    // Predicated region
    $region17: #{discriminator_forward.5} parent=5 // pred_check
      %p100 = pneg %p99
    $region18: #{discriminator_forward.5} parent=5 // pred_check_branch
      %102 = sbr.rel (%p100) target = $region20
    $region19: #{discriminator_forward.5} parent=5 // pred_region
      // Predicated region
      $region21: #{discriminator_forward.5} parent=19 // pred_check
        %p103 = pneg %p28
      $region22: #{discriminator_forward.5} parent=19 // pred_check_branch
        %105 = sbr.rel (%p103) target = $region24
      $region23: #{discriminator_forward.5} parent=19 // pred_region
        %s106 = smul.u32 128, %s8
        %p107 = scmp.lt.s32.totalorder %s106, 255
        %s108 = scalar_select %p107, %s106, 255
        %s109 = smul.addr %s108, 4
        %s110 = scalar_lea.vmem %s0, %s109
        %s111 = smul.u32 128, %s8
      $region24: #{discriminator_forward.5} parent=19 // pred_fallthru
        _
    $region20: #{discriminator_forward.5} parent=5 // pred_fallthru
      _
    %p112 = scmp.le.s32.totalorder 1, %s8
    %p113 = scmp.lt.s32.totalorder %s8, 3
    %p114 = pnand %p112, %p113
    %p115 = pneg %p114
    // Predicated region
    $region25: #{discriminator_forward.5} parent=5 // pred_check
      _
    $region26: #{discriminator_forward.5} parent=5 // pred_check_branch
      %117 = sbr.rel (%p114) target = $region28
    $region27: #{discriminator_forward.5} parent=5 // pred_region
      %s118 = ssub.s32 %s8, 1
      %s119 = smul.u32 128, %s13
      %p120 = scmp.lt.s32.totalorder %s119, 255
      %s121 = scalar_select %p120, %s119, 255
      %s122 = smul.addr %s121, 4
      %s123 = scalar_lea.vmem %s0, %s122
      %p124 = pneg %p34
      %p125 = pneg %p31
      %p126 = pneg %p55
      %p127 = pneg %p52
      %p128 = pneg %p81
      %p129 = pneg %p78
      %s130 = smul.u32 128, %s13
      %p131 = scmp.lt.s32.totalorder %s130, 255
      %s132 = scalar_select %p131, %s130, 255
      %s133 = smul.addr %s132, 4
      %s134 = scalar_lea.vmem %s2, %s133
      %s135 = smul.u32 128, %s13
      %p136 = scmp.lt.s32.totalorder %s135, 255
      %s137 = scalar_select %p136, %s135, 255
      %s138 = smul.addr %s137, 4
      %s139 = scalar_lea.vmem %s0, %s138
      %s140 = smul.u32 128, %s13
      %s141 = smul.u32 128, %s13
      %p142 = scmp.lt.s32.totalorder %s141, 255
      %s143 = scalar_select %p142, %s141, 255
      %s144 = smul.addr %s143, 4
      %s145 = scalar_lea.vmem %s2, %s144
      %s146 = smul.u32 128, %s13
      %v148 = vld [vmem:[%s139] sm:$0xf]
      %v149 = vld [vmem:[%s139 + $0x4] sm:$0xf]
      %v150 = vld [vmem:[%s139 + $0x8] sm:$0xf]
      %v151 = vld [vmem:[%s139 + $0xc] sm:$0xf]
      %v152 = vld [vmem:[%s139 + $0x10] sm:$0xf]
      %v153 = vld [vmem:[%s139 + $0x14] sm:$0xf]
      %v154 = vld [vmem:[%s139 + $0x18] sm:$0xf]
      %v155 = vld [vmem:[%s139 + $0x1c] sm:$0xf]
      %v156 = vld [vmem:[%s139 + $0x20] sm:$0xf]
      %v157 = vld [vmem:[%s139 + $0x24] sm:$0xf]
      %v158 = vld [vmem:[%s139 + $0x28] sm:$0xf]
      %v159 = vld [vmem:[%s139 + $0x2c] sm:$0xf]
      %v160 = vld [vmem:[%s139 + $0x30] sm:$0xf]
      %v161 = vld [vmem:[%s139 + $0x34] sm:$0xf]
      %v162 = vld [vmem:[%s139 + $0x38] sm:$0xf]
      %v163 = vld [vmem:[%s139 + $0x3c] sm:$0xf]
      %v164 = vld [vmem:[%s139 + $0x40] sm:$0xf]
      %v165 = vld [vmem:[%s139 + $0x44] sm:$0xf]
      %v166 = vld [vmem:[%s139 + $0x48] sm:$0xf]
      %v167 = vld [vmem:[%s139 + $0x4c] sm:$0xf]
      %v168 = vld [vmem:[%s139 + $0x50] sm:$0xf]
      %v169 = vld [vmem:[%s139 + $0x54] sm:$0xf]
      %v170 = vld [vmem:[%s139 + $0x58] sm:$0xf]
      %v171 = vld [vmem:[%s139 + $0x5c] sm:$0xf]
      %v172 = vld [vmem:[%s139 + $0x60] sm:$0xf]
      %v173 = vld [vmem:[%s139 + $0x64] sm:$0xf]
      %v174 = vld [vmem:[%s139 + $0x68] sm:$0xf]
      %v175 = vld [vmem:[%s139 + $0x6c] sm:$0xf]
      %v176 = vld [vmem:[%s139 + $0x70] sm:$0xf]
      %v177 = vld [vmem:[%s139 + $0x74] sm:$0xf]
      %v178 = vld [vmem:[%s139 + $0x78] sm:$0xf]
      %v179 = vld [vmem:[%s139 + $0x7c] sm:$0xf]
      %v180 = vld [vmem:[%s139 + $0x80] sm:$0xf]
      %v181 = vld [vmem:[%s139 + $0x84] sm:$0xf]
      %v182 = vld [vmem:[%s139 + $0x88] sm:$0xf]
      %v183 = vld [vmem:[%s139 + $0x8c] sm:$0xf]
      %v184 = vld [vmem:[%s139 + $0x90] sm:$0xf]
      %v185 = vld [vmem:[%s139 + $0x94] sm:$0xf]
      %v186 = vld [vmem:[%s139 + $0x98] sm:$0xf]
      %v187 = vld [vmem:[%s139 + $0x9c] sm:$0xf]
      %v188 = vld [vmem:[%s139 + $0xa0] sm:$0xf]
      %v189 = vld [vmem:[%s139 + $0xa4] sm:$0xf]
      %v190 = vld [vmem:[%s139 + $0xa8] sm:$0xf]
      %v191 = vld [vmem:[%s139 + $0xac] sm:$0xf]
      %v192 = vld [vmem:[%s139 + $0xb0] sm:$0xf]
      %v193 = vld [vmem:[%s139 + $0xb4] sm:$0xf]
      %v194 = vld [vmem:[%s139 + $0xb8] sm:$0xf]
      %v195 = vld [vmem:[%s139 + $0xbc] sm:$0xf]
      %v196 = vld [vmem:[%s139 + $0xc0] sm:$0xf]
      %v197 = vld [vmem:[%s139 + $0xc4] sm:$0xf]
      %v198 = vld [vmem:[%s139 + $0xc8] sm:$0xf]
      %v199 = vld [vmem:[%s139 + $0xcc] sm:$0xf]
      %v200 = vld [vmem:[%s139 + $0xd0] sm:$0xf]
      %v201 = vld [vmem:[%s139 + $0xd4] sm:$0xf]
      %v202 = vld [vmem:[%s139 + $0xd8] sm:$0xf]
      %v203 = vld [vmem:[%s139 + $0xdc] sm:$0xf]
      %v204 = vld [vmem:[%s139 + $0xe0] sm:$0xf]
      %v205 = vld [vmem:[%s139 + $0xe4] sm:$0xf]
      %v206 = vld [vmem:[%s139 + $0xe8] sm:$0xf]
      %v207 = vld [vmem:[%s139 + $0xec] sm:$0xf]
      %v208 = vld [vmem:[%s139 + $0xf0] sm:$0xf]
      %v209 = vld [vmem:[%s139 + $0xf4] sm:$0xf]
      %v210 = vld [vmem:[%s139 + $0xf8] sm:$0xf]
      %v211 = vld [vmem:[%s139 + $0xfc] sm:$0xf]
      %v212 = vld [vmem:[%s139 + $0x100] sm:$0xf]
      %v213 = vld [vmem:[%s139 + $0x104] sm:$0xf]
      %v214 = vld [vmem:[%s139 + $0x108] sm:$0xf]
      %v215 = vld [vmem:[%s139 + $0x10c] sm:$0xf]
      %v216 = vld [vmem:[%s139 + $0x110] sm:$0xf]
      %v217 = vld [vmem:[%s139 + $0x114] sm:$0xf]
      %v218 = vld [vmem:[%s139 + $0x118] sm:$0xf]
      %v219 = vld [vmem:[%s139 + $0x11c] sm:$0xf]
      %v220 = vld [vmem:[%s139 + $0x120] sm:$0xf]
      %v221 = vld [vmem:[%s139 + $0x124] sm:$0xf]
      %v222 = vld [vmem:[%s139 + $0x128] sm:$0xf]
      %v223 = vld [vmem:[%s139 + $0x12c] sm:$0xf]
      %v224 = vld [vmem:[%s139 + $0x130] sm:$0xf]
      %v225 = vld [vmem:[%s139 + $0x134] sm:$0xf]
      %v226 = vld [vmem:[%s139 + $0x138] sm:$0xf]
      %v227 = vld [vmem:[%s139 + $0x13c] sm:$0xf]
      %v228 = vld [vmem:[%s139 + $0x140] sm:$0xf]
      %v229 = vld [vmem:[%s139 + $0x144] sm:$0xf]
      %v230 = vld [vmem:[%s139 + $0x148] sm:$0xf]
      %v231 = vld [vmem:[%s139 + $0x14c] sm:$0xf]
      %v232 = vld [vmem:[%s139 + $0x150] sm:$0xf]
      %v233 = vld [vmem:[%s139 + $0x154] sm:$0xf]
      %v234 = vld [vmem:[%s139 + $0x158] sm:$0xf]
      %v235 = vld [vmem:[%s139 + $0x15c] sm:$0xf]
      %v236 = vld [vmem:[%s139 + $0x160] sm:$0xf]
      %v237 = vld [vmem:[%s139 + $0x164] sm:$0xf]
      %v238 = vld [vmem:[%s139 + $0x168] sm:$0xf]
      %v239 = vld [vmem:[%s139 + $0x16c] sm:$0xf]
      %v240 = vld [vmem:[%s139 + $0x170] sm:$0xf]
      %v241 = vld [vmem:[%s139 + $0x174] sm:$0xf]
      %v242 = vld [vmem:[%s139 + $0x178] sm:$0xf]
      %v243 = vld [vmem:[%s139 + $0x17c] sm:$0xf]
      %v244 = vld [vmem:[%s139 + $0x180] sm:$0xf]
      %v245 = vld [vmem:[%s139 + $0x184] sm:$0xf]
      %v246 = vld [vmem:[%s139 + $0x188] sm:$0xf]
      %v247 = vld [vmem:[%s139 + $0x18c] sm:$0xf]
      %v248 = vld [vmem:[%s139 + $0x190] sm:$0xf]
      %v249 = vld [vmem:[%s139 + $0x194] sm:$0xf]
      %v250 = vld [vmem:[%s139 + $0x198] sm:$0xf]
      %v251 = vld [vmem:[%s139 + $0x19c] sm:$0xf]
      %v252 = vld [vmem:[%s139 + $0x1a0] sm:$0xf]
      %v253 = vld [vmem:[%s139 + $0x1a4] sm:$0xf]
      %v254 = vld [vmem:[%s139 + $0x1a8] sm:$0xf]
      %v255 = vld [vmem:[%s139 + $0x1ac] sm:$0xf]
      %v256 = vld [vmem:[%s139 + $0x1b0] sm:$0xf]
      %v257 = vld [vmem:[%s139 + $0x1b4] sm:$0xf]
      %v258 = vld [vmem:[%s139 + $0x1b8] sm:$0xf]
      %v259 = vld [vmem:[%s139 + $0x1bc] sm:$0xf]
      %v260 = vld [vmem:[%s139 + $0x1c0] sm:$0xf]
      %v261 = vld [vmem:[%s139 + $0x1c4] sm:$0xf]
      %v262 = vld [vmem:[%s139 + $0x1c8] sm:$0xf]
      %v263 = vld [vmem:[%s139 + $0x1cc] sm:$0xf]
      %v264 = vld [vmem:[%s139 + $0x1d0] sm:$0xf]
      %v265 = vld [vmem:[%s139 + $0x1d4] sm:$0xf]
      %v266 = vld [vmem:[%s139 + $0x1d8] sm:$0xf]
      %v267 = vld [vmem:[%s139 + $0x1dc] sm:$0xf]
      %v268 = vld [vmem:[%s139 + $0x1e0] sm:$0xf]
      %v269 = vld [vmem:[%s139 + $0x1e4] sm:$0xf]
      %v270 = vld [vmem:[%s139 + $0x1e8] sm:$0xf]
      %v271 = vld [vmem:[%s139 + $0x1ec] sm:$0xf]
      %v272 = vld [vmem:[%s139 + $0x1f0] sm:$0xf]
      %v273 = vld [vmem:[%s139 + $0x1f4] sm:$0xf]
      %v274 = vld [vmem:[%s139 + $0x1f8] sm:$0xf]
      %v275 = vld [vmem:[%s139 + $0x1fc] sm:$0xf]
      %v276 = vld [vmem:[%s1] sm:$0xf]
      %v277 = vld [vmem:[%s1 + $0x4] sm:$0xf]
      %v278 = vld [vmem:[%s1 + $0x8] sm:$0xf]
      %v279 = vld [vmem:[%s1 + $0xc] sm:$0xf]
      %v280 = vld [vmem:[%s1 + $0x10] sm:$0xf]
      %v281 = vld [vmem:[%s1 + $0x14] sm:$0xf]
      %v410 = vunpack.c.l.b16 %v148
      %v411 = vunpack.c.l.b16 %v149
      %v412 = vunpack.c.l.b16 %v150
      %v413 = vunpack.c.l.b16 %v151
      %v414 = vunpack.c.l.b16 %v152
      %v415 = vunpack.c.l.b16 %v153
      %v416 = vunpack.c.l.b16 %v154
      %v417 = vunpack.c.l.b16 %v155
      %v418 = vunpack.c.l.b16 %v156
      %v419 = vunpack.c.l.b16 %v157
      %v420 = vunpack.c.l.b16 %v158
      %v421 = vunpack.c.l.b16 %v159
      %v422 = vunpack.c.l.b16 %v160
      %v423 = vunpack.c.l.b16 %v161
      %v424 = vunpack.c.l.b16 %v162
      %v425 = vunpack.c.l.b16 %v163
      %v426 = vunpack.c.l.b16 %v164
      %v427 = vunpack.c.l.b16 %v165
      %v428 = vunpack.c.l.b16 %v166
      %v429 = vunpack.c.l.b16 %v167
      %v430 = vunpack.c.l.b16 %v168
      %v431 = vunpack.c.l.b16 %v169
      %v432 = vunpack.c.l.b16 %v170
      %v433 = vunpack.c.l.b16 %v171
      %v434 = vunpack.c.l.b16 %v172
      %v435 = vunpack.c.l.b16 %v173
      %v436 = vunpack.c.l.b16 %v174
      %v437 = vunpack.c.l.b16 %v175
      %v438 = vunpack.c.l.b16 %v176
      %v439 = vunpack.c.l.b16 %v177
      %v440 = vunpack.c.l.b16 %v178
      %v441 = vunpack.c.l.b16 %v179
      %v442 = vunpack.c.l.b16 %v180
      %v443 = vunpack.c.l.b16 %v181
      %v444 = vunpack.c.l.b16 %v182
      %v445 = vunpack.c.l.b16 %v183
      %v446 = vunpack.c.l.b16 %v184
      %v447 = vunpack.c.l.b16 %v185
      %v448 = vunpack.c.l.b16 %v186
      %v449 = vunpack.c.l.b16 %v187
      %v450 = vunpack.c.l.b16 %v188
      %v451 = vunpack.c.l.b16 %v189
      %v452 = vunpack.c.l.b16 %v190
      %v453 = vunpack.c.l.b16 %v191
      %v454 = vunpack.c.l.b16 %v192
      %v455 = vunpack.c.l.b16 %v193
      %v456 = vunpack.c.l.b16 %v194
      %v457 = vunpack.c.l.b16 %v195
      %v458 = vunpack.c.l.b16 %v196
      %v459 = vunpack.c.l.b16 %v197
      %v460 = vunpack.c.l.b16 %v198
      %v461 = vunpack.c.l.b16 %v199
      %v462 = vunpack.c.l.b16 %v200
      %v463 = vunpack.c.l.b16 %v201
      %v464 = vunpack.c.l.b16 %v202
      %v465 = vunpack.c.l.b16 %v203
      %v466 = vunpack.c.l.b16 %v204
      %v467 = vunpack.c.l.b16 %v205
      %v468 = vunpack.c.l.b16 %v206
      %v469 = vunpack.c.l.b16 %v207
      %v470 = vunpack.c.l.b16 %v208
      %v471 = vunpack.c.l.b16 %v209
      %v472 = vunpack.c.l.b16 %v210
      %v473 = vunpack.c.l.b16 %v211
      %v474 = vunpack.c.l.b16 %v212
      %v475 = vunpack.c.l.b16 %v213
      %v476 = vunpack.c.l.b16 %v214
      %v477 = vunpack.c.l.b16 %v215
      %v478 = vunpack.c.l.b16 %v216
      %v479 = vunpack.c.l.b16 %v217
      %v480 = vunpack.c.l.b16 %v218
      %v481 = vunpack.c.l.b16 %v219
      %v482 = vunpack.c.l.b16 %v220
      %v483 = vunpack.c.l.b16 %v221
      %v484 = vunpack.c.l.b16 %v222
      %v485 = vunpack.c.l.b16 %v223
      %v486 = vunpack.c.l.b16 %v224
      %v487 = vunpack.c.l.b16 %v225
      %v488 = vunpack.c.l.b16 %v226
      %v489 = vunpack.c.l.b16 %v227
      %v490 = vunpack.c.l.b16 %v228
      %v491 = vunpack.c.l.b16 %v229
      %v492 = vunpack.c.l.b16 %v230
      %v493 = vunpack.c.l.b16 %v231
      %v494 = vunpack.c.l.b16 %v232
      %v495 = vunpack.c.l.b16 %v233
      %v496 = vunpack.c.l.b16 %v234
      %v497 = vunpack.c.l.b16 %v235
      %v498 = vunpack.c.l.b16 %v236
      %v499 = vunpack.c.l.b16 %v237
      %v500 = vunpack.c.l.b16 %v238
      %v501 = vunpack.c.l.b16 %v239
      %v502 = vunpack.c.l.b16 %v240
      %v503 = vunpack.c.l.b16 %v241
      %v504 = vunpack.c.l.b16 %v242
      %v505 = vunpack.c.l.b16 %v243
      %v506 = vunpack.c.l.b16 %v244
      %v507 = vunpack.c.l.b16 %v245
      %v508 = vunpack.c.l.b16 %v246
      %v509 = vunpack.c.l.b16 %v247
      %v510 = vunpack.c.l.b16 %v248
      %v511 = vunpack.c.l.b16 %v249
      %v512 = vunpack.c.l.b16 %v250
      %v513 = vunpack.c.l.b16 %v251
      %v514 = vunpack.c.l.b16 %v252
      %v515 = vunpack.c.l.b16 %v253
      %v516 = vunpack.c.l.b16 %v254
      %v517 = vunpack.c.l.b16 %v255
      %v518 = vunpack.c.l.b16 %v256
      %v519 = vunpack.c.l.b16 %v257
      %v520 = vunpack.c.l.b16 %v258
      %v521 = vunpack.c.l.b16 %v259
      %v522 = vunpack.c.l.b16 %v260
      %v523 = vunpack.c.l.b16 %v261
      %v524 = vunpack.c.l.b16 %v262
      %v525 = vunpack.c.l.b16 %v263
      %v526 = vunpack.c.l.b16 %v264
      %v527 = vunpack.c.l.b16 %v265
      %v528 = vunpack.c.l.b16 %v266
      %v529 = vunpack.c.l.b16 %v267
      %v530 = vunpack.c.l.b16 %v268
      %v531 = vunpack.c.l.b16 %v269
      %v532 = vunpack.c.l.b16 %v270
      %v533 = vunpack.c.l.b16 %v271
      %v534 = vunpack.c.l.b16 %v272
      %v535 = vunpack.c.l.b16 %v273
      %v536 = vunpack.c.l.b16 %v274
      %v537 = vunpack.c.l.b16 %v275
      %v538 = vpack.c.b16 %v411, %v410
      %v539 = vpack.c.b16 %v413, %v412
      %v540 = vpack.c.b16 %v415, %v414
      %v541 = vpack.c.b16 %v417, %v416
      %v542 = vpack.c.b16 %v419, %v418
      %v543 = vpack.c.b16 %v421, %v420
      %v544 = vpack.c.b16 %v423, %v422
      %v545 = vpack.c.b16 %v425, %v424
      %v546 = vpack.c.b16 %v427, %v426
      %v547 = vpack.c.b16 %v429, %v428
      %v548 = vpack.c.b16 %v431, %v430
      %v549 = vpack.c.b16 %v433, %v432
      %v550 = vpack.c.b16 %v435, %v434
      %v551 = vpack.c.b16 %v437, %v436
      %v552 = vpack.c.b16 %v439, %v438
      %v553 = vpack.c.b16 %v441, %v440
      %v554 = vpack.c.b16 %v443, %v442
      %v555 = vpack.c.b16 %v445, %v444
      %v556 = vpack.c.b16 %v447, %v446
      %v557 = vpack.c.b16 %v449, %v448
      %v558 = vpack.c.b16 %v451, %v450
      %v559 = vpack.c.b16 %v453, %v452
      %v560 = vpack.c.b16 %v455, %v454
      %v561 = vpack.c.b16 %v457, %v456
      %v562 = vpack.c.b16 %v459, %v458
      %v563 = vpack.c.b16 %v461, %v460
      %v564 = vpack.c.b16 %v463, %v462
      %v565 = vpack.c.b16 %v465, %v464
      %v566 = vpack.c.b16 %v467, %v466
      %v567 = vpack.c.b16 %v469, %v468
      %v568 = vpack.c.b16 %v471, %v470
      %v569 = vpack.c.b16 %v473, %v472
      %v570 = vpack.c.b16 %v475, %v474
      %v571 = vpack.c.b16 %v477, %v476
      %v572 = vpack.c.b16 %v479, %v478
      %v573 = vpack.c.b16 %v481, %v480
      %v574 = vpack.c.b16 %v483, %v482
      %v575 = vpack.c.b16 %v485, %v484
      %v576 = vpack.c.b16 %v487, %v486
      %v577 = vpack.c.b16 %v489, %v488
      %v578 = vpack.c.b16 %v491, %v490
      %v579 = vpack.c.b16 %v493, %v492
      %v580 = vpack.c.b16 %v495, %v494
      %v581 = vpack.c.b16 %v497, %v496
      %v582 = vpack.c.b16 %v499, %v498
      %v583 = vpack.c.b16 %v501, %v500
      %v584 = vpack.c.b16 %v503, %v502
      %v585 = vpack.c.b16 %v505, %v504
      %v586 = vpack.c.b16 %v507, %v506
      %v587 = vpack.c.b16 %v509, %v508
      %v588 = vpack.c.b16 %v511, %v510
      %v589 = vpack.c.b16 %v513, %v512
      %v590 = vpack.c.b16 %v515, %v514
      %v591 = vpack.c.b16 %v517, %v516
      %v592 = vpack.c.b16 %v519, %v518
      %v593 = vpack.c.b16 %v521, %v520
      %v594 = vpack.c.b16 %v523, %v522
      %v595 = vpack.c.b16 %v525, %v524
      %v596 = vpack.c.b16 %v527, %v526
      %v597 = vpack.c.b16 %v529, %v528
      %v598 = vpack.c.b16 %v531, %v530
      %v599 = vpack.c.b16 %v533, %v532
      %v600 = vpack.c.b16 %v535, %v534
      %v601 = vpack.c.b16 %v537, %v536
      %v608 = vunpack.c.l.b16 %v276
      %v609 = vunpack.c.l.b16 %v277
      %v610 = vunpack.c.l.b16 %v278
      %v611 = vunpack.c.l.b16 %v279
      %v612 = vunpack.c.l.b16 %v280
      %v613 = vunpack.c.l.b16 %v281
      %v614 = vpack.c.b16 %v609, %v608
      %v615 = vpack.c.b16 %v611, %v610
      %v616 = vpack.c.b16 %v613, %v612
      %vm620 = vcmask 392192
      %v622 = vsel %vm620, %v538, 0
      %v625 = vsel %vm620, %v539, 0
      %v628 = vsel %vm620, %v540, 0
      %v631 = vsel %vm620, %v541, 0
      %v634 = vsel %vm620, %v542, 0
      %v637 = vsel %vm620, %v543, 0
      %v640 = vsel %vm620, %v544, 0
      %v643 = vsel %vm620, %v545, 0
      %v646 = vsel %vm620, %v546, 0
      %v649 = vsel %vm620, %v547, 0
      %v652 = vsel %vm620, %v548, 0
      %v655 = vsel %vm620, %v549, 0
      %v658 = vsel %vm620, %v550, 0
      %v661 = vsel %vm620, %v551, 0
      %v664 = vsel %vm620, %v552, 0
      %v667 = vsel %vm620, %v553, 0
      %v670 = vsel %vm620, %v554, 0
      %v673 = vsel %vm620, %v555, 0
      %v676 = vsel %vm620, %v556, 0
      %v679 = vsel %vm620, %v557, 0
      %v682 = vsel %vm620, %v558, 0
      %v685 = vsel %vm620, %v559, 0
      %v688 = vsel %vm620, %v560, 0
      %v691 = vsel %vm620, %v561, 0
      %v694 = vsel %vm620, %v562, 0
      %v697 = vsel %vm620, %v563, 0
      %v700 = vsel %vm620, %v564, 0
      %v703 = vsel %vm620, %v565, 0
      %v706 = vsel %vm620, %v566, 0
      %v709 = vsel %vm620, %v567, 0
      %v712 = vsel %vm620, %v568, 0
      %v715 = vsel %vm620, %v569, 0
      %v718 = vsel %vm620, %v570, 0
      %v721 = vsel %vm620, %v571, 0
      %v724 = vsel %vm620, %v572, 0
      %v727 = vsel %vm620, %v573, 0
      %v730 = vsel %vm620, %v574, 0
      %v733 = vsel %vm620, %v575, 0
      %v736 = vsel %vm620, %v576, 0
      %v739 = vsel %vm620, %v577, 0
      %v742 = vsel %vm620, %v578, 0
      %v745 = vsel %vm620, %v579, 0
      %v748 = vsel %vm620, %v580, 0
      %v751 = vsel %vm620, %v581, 0
      %v754 = vsel %vm620, %v582, 0
      %v757 = vsel %vm620, %v583, 0
      %v760 = vsel %vm620, %v584, 0
      %v763 = vsel %vm620, %v585, 0
      %v766 = vsel %vm620, %v586, 0
      %v769 = vsel %vm620, %v587, 0
      %v772 = vsel %vm620, %v588, 0
      %v775 = vsel %vm620, %v589, 0
      %v778 = vsel %vm620, %v590, 0
      %v781 = vsel %vm620, %v591, 0
      %v784 = vsel %vm620, %v592, 0
      %v787 = vsel %vm620, %v593, 0
      %v790 = vsel %vm620, %v594, 0
      %v793 = vsel %vm620, %v595, 0
      %v796 = vsel %vm620, %v596, 0
      %v799 = vsel %vm620, %v597, 0
      %v802 = vsel %vm620, %v598, 0
      %v805 = vsel %vm620, %v599, 0
      %v808 = vsel %vm620, %v600, 0
      %v811 = vsel %vm620, %v601, 0
      %813 = vmatprep.subr.bf16.mxu0 0
      %814 = vmatpush1.bf16.msra.mxu0 %v614
      %815 = vmatprep.subr.bf16.mxu0 0
      %816 = vmatpush1.bf16.msra.mxu0 %v615
      %817 = vmatprep.subr.bf16.mxu0 0
      %818 = vmatpush1.bf16.msra.mxu0 %v616
      %819 = vmatprep.subr.bf16.mxu0 0
      %820 = vmatpush1.bf16.msra.mxu0 0
      %821 = vmatprep.subr.bf16.mxu0 0
      %822 = vmatpush1.bf16.msra.mxu0 0
      %823 = vmatprep.subr.bf16.mxu0 0
      %824 = vmatpush1.bf16.msra.mxu0 0
      %825 = vmatprep.subr.bf16.mxu0 0
      %826 = vmatpush1.bf16.msra.mxu0 0
      %827 = vmatprep.subr.bf16.mxu0 0
      %828 = vmatpush1.bf16.msra.mxu0 0
      %829 = vmatprep.subr.bf16.mxu0 0
      %830 = vmatpush1.bf16.msra.mxu0 0
      %831 = vmatprep.subr.bf16.mxu0 0
      %832 = vmatpush1.bf16.msra.mxu0 0
      %833 = vmatprep.subr.bf16.mxu0 0
      %834 = vmatpush1.bf16.msra.mxu0 0
      %835 = vmatprep.subr.bf16.mxu0 0
      %836 = vmatpush1.bf16.msra.mxu0 0
      %837 = vmatprep.subr.bf16.mxu0 0
      %838 = vmatpush1.bf16.msra.mxu0 0
      %839 = vmatprep.subr.bf16.mxu0 0
      %840 = vmatpush1.bf16.msra.mxu0 0
      %841 = vmatprep.subr.bf16.mxu0 0
      %842 = vmatpush1.bf16.msra.mxu0 0
      %843 = vmatprep.subr.bf16.mxu0 0
      %844 = vmatpush1.bf16.msra.mxu0 0
      %845 = vmatprep.mubr.bf16.mxu0 0
      %846 = vmatmul.mubr.bf16.gmra.mrb[0].mxu0 %v622
      %v847 = vpop.f32.mrb[0].mxu0
      %v848 = vadd.f32 0.0, %v847
      %v849 = vpop.f32.mrb[0].mxu0
      %v850 = vpop.f32.mrb[0].mxu0
      %v851 = vadd.f32 0.0, %v850
      %v852 = vpop.f32.mrb[0].mxu0
      %853 = vmatprep.mubr.bf16.mxu0 0
      %854 = vmatmul.mubr.bf16.gmra.mrb[0].mxu0 %v625
      %v855 = vpop.f32.mrb[0].mxu0
      %v856 = vadd.f32 0.0, %v855
      %v857 = vpop.f32.mrb[0].mxu0
      %v858 = vpop.f32.mrb[0].mxu0
      %v859 = vadd.f32 0.0, %v858
      %v860 = vpop.f32.mrb[0].mxu0
      %861 = vmatprep.mubr.bf16.mxu0 0
      %862 = vmatmul.mubr.bf16.gmra.mrb[0].mxu0 %v628
      %v863 = vpop.f32.mrb[0].mxu0
      %v864 = vadd.f32 0.0, %v863
      %v865 = vpop.f32.mrb[0].mxu0
      %v866 = vpop.f32.mrb[0].mxu0
      %v867 = vadd.f32 0.0, %v866
      %v868 = vpop.f32.mrb[0].mxu0
      %869 = vmatprep.mubr.bf16.mxu0 0
      %870 = vmatmul.mubr.bf16.gmra.mrb[0].mxu0 %v631
      %v871 = vpop.f32.mrb[0].mxu0
      %v872 = vadd.f32 0.0, %v871
      %v873 = vpop.f32.mrb[0].mxu0
      %v874 = vpop.f32.mrb[0].mxu0
      %v875 = vadd.f32 0.0, %v874
      %v876 = vpop.f32.mrb[0].mxu0
      %877 = vmatprep.mubr.bf16.mxu0 0
      %878 = vmatmul.mubr.bf16.gmra.mrb[0].mxu0 %v634
      %v879 = vpop.f32.mrb[0].mxu0
      %v880 = vadd.f32 0.0, %v879
      %v881 = vpop.f32.mrb[0].mxu0
      %v882 = vpop.f32.mrb[0].mxu0
      %v883 = vadd.f32 0.0, %v882
      %v884 = vpop.f32.mrb[0].mxu0
      %885 = vmatprep.mubr.bf16.mxu0 0
      %886 = vmatmul.mubr.bf16.gmra.mrb[0].mxu0 %v637
      %v887 = vpop.f32.mrb[0].mxu0
      %v888 = vadd.f32 0.0, %v887
      %v889 = vpop.f32.mrb[0].mxu0
      %v890 = vpop.f32.mrb[0].mxu0
      %v891 = vadd.f32 0.0, %v890
      %v892 = vpop.f32.mrb[0].mxu0
      %893 = vmatprep.mubr.bf16.mxu0 0
      %894 = vmatmul.mubr.bf16.gmra.mrb[0].mxu0 %v640
      %v895 = vpop.f32.mrb[0].mxu0
      %v896 = vadd.f32 0.0, %v895
      %v897 = vpop.f32.mrb[0].mxu0
      %v898 = vpop.f32.mrb[0].mxu0
      %v899 = vadd.f32 0.0, %v898
      %v900 = vpop.f32.mrb[0].mxu0
      %901 = vmatprep.mubr.bf16.mxu0 0
      %902 = vmatmul.mubr.bf16.gmra.mrb[0].mxu0 %v643
      %v903 = vpop.f32.mrb[0].mxu0
      %v904 = vadd.f32 0.0, %v903
      %v905 = vpop.f32.mrb[0].mxu0
      %v906 = vpop.f32.mrb[0].mxu0
      %v907 = vadd.f32 0.0, %v906
      %v908 = vpop.f32.mrb[0].mxu0
      %909 = vmatprep.mubr.bf16.mxu0 0
      %910 = vmatmul.mubr.bf16.gmra.mrb[0].mxu0 %v646
      %v911 = vpop.f32.mrb[0].mxu0
      %v912 = vadd.f32 0.0, %v911
      %v913 = vpop.f32.mrb[0].mxu0
      %v914 = vpop.f32.mrb[0].mxu0
      %v915 = vadd.f32 0.0, %v914
      %v916 = vpop.f32.mrb[0].mxu0
      %917 = vmatprep.mubr.bf16.mxu0 0
      %918 = vmatmul.mubr.bf16.gmra.mrb[0].mxu0 %v649
      %v919 = vpop.f32.mrb[0].mxu0
      %v920 = vadd.f32 0.0, %v919
      %v921 = vpop.f32.mrb[0].mxu0
      %v922 = vpop.f32.mrb[0].mxu0
      %v923 = vadd.f32 0.0, %v922
      %v924 = vpop.f32.mrb[0].mxu0
      %925 = vmatprep.mubr.bf16.mxu0 0
      %926 = vmatmul.mubr.bf16.gmra.mrb[0].mxu0 %v652
      %v927 = vpop.f32.mrb[0].mxu0
      %v928 = vadd.f32 0.0, %v927
      %v929 = vpop.f32.mrb[0].mxu0
      %v930 = vpop.f32.mrb[0].mxu0
      %v931 = vadd.f32 0.0, %v930
      %v932 = vpop.f32.mrb[0].mxu0
      %933 = vmatprep.mubr.bf16.mxu0 0
      %934 = vmatmul.mubr.bf16.gmra.mrb[0].mxu0 %v655
      %v935 = vpop.f32.mrb[0].mxu0
      %v936 = vadd.f32 0.0, %v935
      %v937 = vpop.f32.mrb[0].mxu0
      %v938 = vpop.f32.mrb[0].mxu0
      %v939 = vadd.f32 0.0, %v938
      %v940 = vpop.f32.mrb[0].mxu0
      %941 = vmatprep.mubr.bf16.mxu0 0
      %942 = vmatmul.mubr.bf16.gmra.mrb[0].mxu0 %v658
      %v943 = vpop.f32.mrb[0].mxu0
      %v944 = vadd.f32 0.0, %v943
      %v945 = vpop.f32.mrb[0].mxu0
      %v946 = vpop.f32.mrb[0].mxu0
      %v947 = vadd.f32 0.0, %v946
      %v948 = vpop.f32.mrb[0].mxu0
      %949 = vmatprep.mubr.bf16.mxu0 0
      %950 = vmatmul.mubr.bf16.gmra.mrb[0].mxu0 %v661
      %v951 = vpop.f32.mrb[0].mxu0
      %v952 = vadd.f32 0.0, %v951
      %v953 = vpop.f32.mrb[0].mxu0
      %v954 = vpop.f32.mrb[0].mxu0
      %v955 = vadd.f32 0.0, %v954
      %v956 = vpop.f32.mrb[0].mxu0
      %957 = vmatprep.mubr.bf16.mxu0 0
      %958 = vmatmul.mubr.bf16.gmra.mrb[0].mxu0 %v664
      %v959 = vpop.f32.mrb[0].mxu0
      %v960 = vadd.f32 0.0, %v959
      %v961 = vpop.f32.mrb[0].mxu0
      %v962 = vpop.f32.mrb[0].mxu0
      %v963 = vadd.f32 0.0, %v962
      %v964 = vpop.f32.mrb[0].mxu0
      %965 = vmatprep.mubr.bf16.mxu0 0
      %966 = vmatmul.mubr.bf16.gmra.mrb[0].mxu0 %v667
      %v967 = vpop.f32.mrb[0].mxu0
      %v968 = vadd.f32 0.0, %v967
      %v969 = vpop.f32.mrb[0].mxu0
      %v970 = vpop.f32.mrb[0].mxu0
      %v971 = vadd.f32 0.0, %v970
      %v972 = vpop.f32.mrb[0].mxu0
      %973 = vmatprep.mubr.bf16.mxu0 0
      %974 = vmatmul.mubr.bf16.gmra.mrb[0].mxu0 %v670
      %v975 = vpop.f32.mrb[0].mxu0
      %v976 = vadd.f32 0.0, %v975
      %v977 = vpop.f32.mrb[0].mxu0
      %v978 = vpop.f32.mrb[0].mxu0
      %v979 = vadd.f32 0.0, %v978
      %v980 = vpop.f32.mrb[0].mxu0
      %981 = vmatprep.mubr.bf16.mxu0 0
      %982 = vmatmul.mubr.bf16.gmra.mrb[0].mxu0 %v673
      %v983 = vpop.f32.mrb[0].mxu0
      %v984 = vadd.f32 0.0, %v983
      %v985 = vpop.f32.mrb[0].mxu0
      %v986 = vpop.f32.mrb[0].mxu0
      %v987 = vadd.f32 0.0, %v986
      %v988 = vpop.f32.mrb[0].mxu0
      %989 = vmatprep.mubr.bf16.mxu0 0
      %990 = vmatmul.mubr.bf16.gmra.mrb[0].mxu0 %v676
      %v991 = vpop.f32.mrb[0].mxu0
      %v992 = vadd.f32 0.0, %v991
      %v993 = vpop.f32.mrb[0].mxu0
      %v994 = vpop.f32.mrb[0].mxu0
      %v995 = vadd.f32 0.0, %v994
      %v996 = vpop.f32.mrb[0].mxu0
      %997 = vmatprep.mubr.bf16.mxu0 0
      %998 = vmatmul.mubr.bf16.gmra.mrb[0].mxu0 %v679
      %v999 = vpop.f32.mrb[0].mxu0
      %v1000 = vadd.f32 0.0, %v999
      %v1001 = vpop.f32.mrb[0].mxu0
      %v1002 = vpop.f32.mrb[0].mxu0
      %v1003 = vadd.f32 0.0, %v1002
      %v1004 = vpop.f32.mrb[0].mxu0
      %1005 = vmatprep.mubr.bf16.mxu0 0
      %1006 = vmatmul.mubr.bf16.gmra.mrb[0].mxu0 %v682
      %v1007 = vpop.f32.mrb[0].mxu0
      %v1008 = vadd.f32 0.0, %v1007
      %v1009 = vpop.f32.mrb[0].mxu0
      %v1010 = vpop.f32.mrb[0].mxu0
      %v1011 = vadd.f32 0.0, %v1010
      %v1012 = vpop.f32.mrb[0].mxu0
      %1013 = vmatprep.mubr.bf16.mxu0 0
      %1014 = vmatmul.mubr.bf16.gmra.mrb[0].mxu0 %v685
      %v1015 = vpop.f32.mrb[0].mxu0
      %v1016 = vadd.f32 0.0, %v1015
      %v1017 = vpop.f32.mrb[0].mxu0
      %v1018 = vpop.f32.mrb[0].mxu0
      %v1019 = vadd.f32 0.0, %v1018
      %v1020 = vpop.f32.mrb[0].mxu0
      %1021 = vmatprep.mubr.bf16.mxu0 0
      %1022 = vmatmul.mubr.bf16.gmra.mrb[0].mxu0 %v688
      %v1023 = vpop.f32.mrb[0].mxu0
      %v1024 = vadd.f32 0.0, %v1023
      %v1025 = vpop.f32.mrb[0].mxu0
      %v1026 = vpop.f32.mrb[0].mxu0
      %v1027 = vadd.f32 0.0, %v1026
      %v1028 = vpop.f32.mrb[0].mxu0
      %1029 = vmatprep.mubr.bf16.mxu0 0
      %1030 = vmatmul.mubr.bf16.gmra.mrb[0].mxu0 %v691
      %v1031 = vpop.f32.mrb[0].mxu0
      %v1032 = vadd.f32 0.0, %v1031
      %v1033 = vpop.f32.mrb[0].mxu0
      %v1034 = vpop.f32.mrb[0].mxu0
      %v1035 = vadd.f32 0.0, %v1034
      %v1036 = vpop.f32.mrb[0].mxu0
      %1037 = vmatprep.mubr.bf16.mxu0 0
      %1038 = vmatmul.mubr.bf16.gmra.mrb[0].mxu0 %v694
      %v1039 = vpop.f32.mrb[0].mxu0
      %v1040 = vadd.f32 0.0, %v1039
      %v1041 = vpop.f32.mrb[0].mxu0
      %v1042 = vpop.f32.mrb[0].mxu0
      %v1043 = vadd.f32 0.0, %v1042
      %v1044 = vpop.f32.mrb[0].mxu0
      %1045 = vmatprep.mubr.bf16.mxu0 0
      %1046 = vmatmul.mubr.bf16.gmra.mrb[0].mxu0 %v697
      %v1047 = vpop.f32.mrb[0].mxu0
      %v1048 = vadd.f32 0.0, %v1047
      %v1049 = vpop.f32.mrb[0].mxu0
      %v1050 = vpop.f32.mrb[0].mxu0
      %v1051 = vadd.f32 0.0, %v1050
      %v1052 = vpop.f32.mrb[0].mxu0
      %1053 = vmatprep.mubr.bf16.mxu0 0
      %1054 = vmatmul.mubr.bf16.gmra.mrb[0].mxu0 %v700
      %v1055 = vpop.f32.mrb[0].mxu0
      %v1056 = vadd.f32 0.0, %v1055
      %v1057 = vpop.f32.mrb[0].mxu0
      %v1058 = vpop.f32.mrb[0].mxu0
      %v1059 = vadd.f32 0.0, %v1058
      %v1060 = vpop.f32.mrb[0].mxu0
      %1061 = vmatprep.mubr.bf16.mxu0 0
      %1062 = vmatmul.mubr.bf16.gmra.mrb[0].mxu0 %v703
      %v1063 = vpop.f32.mrb[0].mxu0
      %v1064 = vadd.f32 0.0, %v1063
      %v1065 = vpop.f32.mrb[0].mxu0
      %v1066 = vpop.f32.mrb[0].mxu0
      %v1067 = vadd.f32 0.0, %v1066
      %v1068 = vpop.f32.mrb[0].mxu0
      %1069 = vmatprep.mubr.bf16.mxu0 0
      %1070 = vmatmul.mubr.bf16.gmra.mrb[0].mxu0 %v706
      %v1071 = vpop.f32.mrb[0].mxu0
      %v1072 = vadd.f32 0.0, %v1071
      %v1073 = vpop.f32.mrb[0].mxu0
      %v1074 = vpop.f32.mrb[0].mxu0
      %v1075 = vadd.f32 0.0, %v1074
      %v1076 = vpop.f32.mrb[0].mxu0
      %1077 = vmatprep.mubr.bf16.mxu0 0
      %1078 = vmatmul.mubr.bf16.gmra.mrb[0].mxu0 %v709
      %v1079 = vpop.f32.mrb[0].mxu0
      %v1080 = vadd.f32 0.0, %v1079
      %v1081 = vpop.f32.mrb[0].mxu0
      %v1082 = vpop.f32.mrb[0].mxu0
      %v1083 = vadd.f32 0.0, %v1082
      %v1084 = vpop.f32.mrb[0].mxu0
      %1085 = vmatprep.mubr.bf16.mxu0 0
      %1086 = vmatmul.mubr.bf16.gmra.mrb[0].mxu0 %v712
      %v1087 = vpop.f32.mrb[0].mxu0
      %v1088 = vadd.f32 0.0, %v1087
      %v1089 = vpop.f32.mrb[0].mxu0
      %v1090 = vpop.f32.mrb[0].mxu0
      %v1091 = vadd.f32 0.0, %v1090
      %v1092 = vpop.f32.mrb[0].mxu0
      %1093 = vmatprep.mubr.bf16.mxu0 0
      %1094 = vmatmul.mubr.bf16.gmra.mrb[0].mxu0 %v715
      %v1095 = vpop.f32.mrb[0].mxu0
      %v1096 = vadd.f32 0.0, %v1095
      %v1097 = vpop.f32.mrb[0].mxu0
      %v1098 = vpop.f32.mrb[0].mxu0
      %v1099 = vadd.f32 0.0, %v1098
      %v1100 = vpop.f32.mrb[0].mxu0
      %1101 = vmatprep.mubr.bf16.mxu0 0
      %1102 = vmatmul.mubr.bf16.gmra.mrb[0].mxu0 %v718
      %v1103 = vpop.f32.mrb[0].mxu0
      %v1104 = vadd.f32 0.0, %v1103
      %v1105 = vpop.f32.mrb[0].mxu0
      %v1106 = vpop.f32.mrb[0].mxu0
      %v1107 = vadd.f32 0.0, %v1106
      %v1108 = vpop.f32.mrb[0].mxu0
      %1109 = vmatprep.mubr.bf16.mxu0 0
      %1110 = vmatmul.mubr.bf16.gmra.mrb[0].mxu0 %v721
      %v1111 = vpop.f32.mrb[0].mxu0
      %v1112 = vadd.f32 0.0, %v1111
      %v1113 = vpop.f32.mrb[0].mxu0
      %v1114 = vpop.f32.mrb[0].mxu0
      %v1115 = vadd.f32 0.0, %v1114
      %v1116 = vpop.f32.mrb[0].mxu0
      %1117 = vmatprep.mubr.bf16.mxu0 0
      %1118 = vmatmul.mubr.bf16.gmra.mrb[0].mxu0 %v724
      %v1119 = vpop.f32.mrb[0].mxu0
      %v1120 = vadd.f32 0.0, %v1119
      %v1121 = vpop.f32.mrb[0].mxu0
      %v1122 = vpop.f32.mrb[0].mxu0
      %v1123 = vadd.f32 0.0, %v1122
      %v1124 = vpop.f32.mrb[0].mxu0
      %1125 = vmatprep.mubr.bf16.mxu0 0
      %1126 = vmatmul.mubr.bf16.gmra.mrb[0].mxu0 %v727
      %v1127 = vpop.f32.mrb[0].mxu0
      %v1128 = vadd.f32 0.0, %v1127
      %v1129 = vpop.f32.mrb[0].mxu0
      %v1130 = vpop.f32.mrb[0].mxu0
      %v1131 = vadd.f32 0.0, %v1130
      %v1132 = vpop.f32.mrb[0].mxu0
      %1133 = vmatprep.mubr.bf16.mxu0 0
      %1134 = vmatmul.mubr.bf16.gmra.mrb[0].mxu0 %v730
      %v1135 = vpop.f32.mrb[0].mxu0
      %v1136 = vadd.f32 0.0, %v1135
      %v1137 = vpop.f32.mrb[0].mxu0
      %v1138 = vpop.f32.mrb[0].mxu0
      %v1139 = vadd.f32 0.0, %v1138
      %v1140 = vpop.f32.mrb[0].mxu0
      %1141 = vmatprep.mubr.bf16.mxu0 0
      %1142 = vmatmul.mubr.bf16.gmra.mrb[0].mxu0 %v733
      %v1143 = vpop.f32.mrb[0].mxu0
      %v1144 = vadd.f32 0.0, %v1143
      %v1145 = vpop.f32.mrb[0].mxu0
      %v1146 = vpop.f32.mrb[0].mxu0
      %v1147 = vadd.f32 0.0, %v1146
      %v1148 = vpop.f32.mrb[0].mxu0
      %1149 = vmatprep.mubr.bf16.mxu0 0
      %1150 = vmatmul.mubr.bf16.gmra.mrb[0].mxu0 %v736
      %v1151 = vpop.f32.mrb[0].mxu0
      %v1152 = vadd.f32 0.0, %v1151
      %v1153 = vpop.f32.mrb[0].mxu0
      %v1154 = vpop.f32.mrb[0].mxu0
      %v1155 = vadd.f32 0.0, %v1154
      %v1156 = vpop.f32.mrb[0].mxu0
      %1157 = vmatprep.mubr.bf16.mxu0 0
      %1158 = vmatmul.mubr.bf16.gmra.mrb[0].mxu0 %v739
      %v1159 = vpop.f32.mrb[0].mxu0
      %v1160 = vadd.f32 0.0, %v1159
      %v1161 = vpop.f32.mrb[0].mxu0
      %v1162 = vpop.f32.mrb[0].mxu0
      %v1163 = vadd.f32 0.0, %v1162
      %v1164 = vpop.f32.mrb[0].mxu0
      %1165 = vmatprep.mubr.bf16.mxu0 0
      %1166 = vmatmul.mubr.bf16.gmra.mrb[0].mxu0 %v742
      %v1167 = vpop.f32.mrb[0].mxu0
      %v1168 = vadd.f32 0.0, %v1167
      %v1169 = vpop.f32.mrb[0].mxu0
      %v1170 = vpop.f32.mrb[0].mxu0
      %v1171 = vadd.f32 0.0, %v1170
      %v1172 = vpop.f32.mrb[0].mxu0
      %1173 = vmatprep.mubr.bf16.mxu0 0
      %1174 = vmatmul.mubr.bf16.gmra.mrb[0].mxu0 %v745
      %v1175 = vpop.f32.mrb[0].mxu0
      %v1176 = vadd.f32 0.0, %v1175
      %v1177 = vpop.f32.mrb[0].mxu0
      %v1178 = vpop.f32.mrb[0].mxu0
      %v1179 = vadd.f32 0.0, %v1178
      %v1180 = vpop.f32.mrb[0].mxu0
      %1181 = vmatprep.mubr.bf16.mxu0 0
      %1182 = vmatmul.mubr.bf16.gmra.mrb[0].mxu0 %v748
      %v1183 = vpop.f32.mrb[0].mxu0
      %v1184 = vadd.f32 0.0, %v1183
      %v1185 = vpop.f32.mrb[0].mxu0
      %v1186 = vpop.f32.mrb[0].mxu0
      %v1187 = vadd.f32 0.0, %v1186
      %v1188 = vpop.f32.mrb[0].mxu0
      %1189 = vmatprep.mubr.bf16.mxu0 0
      %1190 = vmatmul.mubr.bf16.gmra.mrb[0].mxu0 %v751
      %v1191 = vpop.f32.mrb[0].mxu0
      %v1192 = vadd.f32 0.0, %v1191
      %v1193 = vpop.f32.mrb[0].mxu0
      %v1194 = vpop.f32.mrb[0].mxu0
      %v1195 = vadd.f32 0.0, %v1194
      %v1196 = vpop.f32.mrb[0].mxu0
      %1197 = vmatprep.mubr.bf16.mxu0 0
      %1198 = vmatmul.mubr.bf16.gmra.mrb[0].mxu0 %v754
      %v1199 = vpop.f32.mrb[0].mxu0
      %v1200 = vadd.f32 0.0, %v1199
      %v1201 = vpop.f32.mrb[0].mxu0
      %v1202 = vpop.f32.mrb[0].mxu0
      %v1203 = vadd.f32 0.0, %v1202
      %v1204 = vpop.f32.mrb[0].mxu0
      %1205 = vmatprep.mubr.bf16.mxu0 0
      %1206 = vmatmul.mubr.bf16.gmra.mrb[0].mxu0 %v757
      %v1207 = vpop.f32.mrb[0].mxu0
      %v1208 = vadd.f32 0.0, %v1207
      %v1209 = vpop.f32.mrb[0].mxu0
      %v1210 = vpop.f32.mrb[0].mxu0
      %v1211 = vadd.f32 0.0, %v1210
      %v1212 = vpop.f32.mrb[0].mxu0
      %1213 = vmatprep.mubr.bf16.mxu0 0
      %1214 = vmatmul.mubr.bf16.gmra.mrb[0].mxu0 %v760
      %v1215 = vpop.f32.mrb[0].mxu0
      %v1216 = vadd.f32 0.0, %v1215
      %v1217 = vpop.f32.mrb[0].mxu0
      %v1218 = vpop.f32.mrb[0].mxu0
      %v1219 = vadd.f32 0.0, %v1218
      %v1220 = vpop.f32.mrb[0].mxu0
      %1221 = vmatprep.mubr.bf16.mxu0 0
      %1222 = vmatmul.mubr.bf16.gmra.mrb[0].mxu0 %v763
      %v1223 = vpop.f32.mrb[0].mxu0
      %v1224 = vadd.f32 0.0, %v1223
      %v1225 = vpop.f32.mrb[0].mxu0
      %v1226 = vpop.f32.mrb[0].mxu0
      %v1227 = vadd.f32 0.0, %v1226
      %v1228 = vpop.f32.mrb[0].mxu0
      %1229 = vmatprep.mubr.bf16.mxu0 0
      %1230 = vmatmul.mubr.bf16.gmra.mrb[0].mxu0 %v766
      %v1231 = vpop.f32.mrb[0].mxu0
      %v1232 = vadd.f32 0.0, %v1231
      %v1233 = vpop.f32.mrb[0].mxu0
      %v1234 = vpop.f32.mrb[0].mxu0
      %v1235 = vadd.f32 0.0, %v1234
      %v1236 = vpop.f32.mrb[0].mxu0
      %1237 = vmatprep.mubr.bf16.mxu0 0
      %1238 = vmatmul.mubr.bf16.gmra.mrb[0].mxu0 %v769
      %v1239 = vpop.f32.mrb[0].mxu0
      %v1240 = vadd.f32 0.0, %v1239
      %v1241 = vpop.f32.mrb[0].mxu0
      %v1242 = vpop.f32.mrb[0].mxu0
      %v1243 = vadd.f32 0.0, %v1242
      %v1244 = vpop.f32.mrb[0].mxu0
      %1245 = vmatprep.mubr.bf16.mxu0 0
      %1246 = vmatmul.mubr.bf16.gmra.mrb[0].mxu0 %v772
      %v1247 = vpop.f32.mrb[0].mxu0
      %v1248 = vadd.f32 0.0, %v1247
      %v1249 = vpop.f32.mrb[0].mxu0
      %v1250 = vpop.f32.mrb[0].mxu0
      %v1251 = vadd.f32 0.0, %v1250
      %v1252 = vpop.f32.mrb[0].mxu0
      %1253 = vmatprep.mubr.bf16.mxu0 0
      %1254 = vmatmul.mubr.bf16.gmra.mrb[0].mxu0 %v775
      %v1255 = vpop.f32.mrb[0].mxu0
      %v1256 = vadd.f32 0.0, %v1255
      %v1257 = vpop.f32.mrb[0].mxu0
      %v1258 = vpop.f32.mrb[0].mxu0
      %v1259 = vadd.f32 0.0, %v1258
      %v1260 = vpop.f32.mrb[0].mxu0
      %1261 = vmatprep.mubr.bf16.mxu0 0
      %1262 = vmatmul.mubr.bf16.gmra.mrb[0].mxu0 %v778
      %v1263 = vpop.f32.mrb[0].mxu0
      %v1264 = vadd.f32 0.0, %v1263
      %v1265 = vpop.f32.mrb[0].mxu0
      %v1266 = vpop.f32.mrb[0].mxu0
      %v1267 = vadd.f32 0.0, %v1266
      %v1268 = vpop.f32.mrb[0].mxu0
      %1269 = vmatprep.mubr.bf16.mxu0 0
      %1270 = vmatmul.mubr.bf16.gmra.mrb[0].mxu0 %v781
      %v1271 = vpop.f32.mrb[0].mxu0
      %v1272 = vadd.f32 0.0, %v1271
      %v1273 = vpop.f32.mrb[0].mxu0
      %v1274 = vpop.f32.mrb[0].mxu0
      %v1275 = vadd.f32 0.0, %v1274
      %v1276 = vpop.f32.mrb[0].mxu0
      %1277 = vmatprep.mubr.bf16.mxu0 0
      %1278 = vmatmul.mubr.bf16.gmra.mrb[0].mxu0 %v784
      %v1279 = vpop.f32.mrb[0].mxu0
      %v1280 = vadd.f32 0.0, %v1279
      %v1281 = vpop.f32.mrb[0].mxu0
      %v1282 = vpop.f32.mrb[0].mxu0
      %v1283 = vadd.f32 0.0, %v1282
      %v1284 = vpop.f32.mrb[0].mxu0
      %1285 = vmatprep.mubr.bf16.mxu0 0
      %1286 = vmatmul.mubr.bf16.gmra.mrb[0].mxu0 %v787
      %v1287 = vpop.f32.mrb[0].mxu0
      %v1288 = vadd.f32 0.0, %v1287
      %v1289 = vpop.f32.mrb[0].mxu0
      %v1290 = vpop.f32.mrb[0].mxu0
      %v1291 = vadd.f32 0.0, %v1290
      %v1292 = vpop.f32.mrb[0].mxu0
      %1293 = vmatprep.mubr.bf16.mxu0 0
      %1294 = vmatmul.mubr.bf16.gmra.mrb[0].mxu0 %v790
      %v1295 = vpop.f32.mrb[0].mxu0
      %v1296 = vadd.f32 0.0, %v1295
      %v1297 = vpop.f32.mrb[0].mxu0
      %v1298 = vpop.f32.mrb[0].mxu0
      %v1299 = vadd.f32 0.0, %v1298
      %v1300 = vpop.f32.mrb[0].mxu0
      %1301 = vmatprep.mubr.bf16.mxu0 0
      %1302 = vmatmul.mubr.bf16.gmra.mrb[0].mxu0 %v793
      %v1303 = vpop.f32.mrb[0].mxu0
      %v1304 = vadd.f32 0.0, %v1303
      %v1305 = vpop.f32.mrb[0].mxu0
      %v1306 = vpop.f32.mrb[0].mxu0
      %v1307 = vadd.f32 0.0, %v1306
      %v1308 = vpop.f32.mrb[0].mxu0
      %1309 = vmatprep.mubr.bf16.mxu0 0
      %1310 = vmatmul.mubr.bf16.gmra.mrb[0].mxu0 %v796
      %v1311 = vpop.f32.mrb[0].mxu0
      %v1312 = vadd.f32 0.0, %v1311
      %v1313 = vpop.f32.mrb[0].mxu0
      %v1314 = vpop.f32.mrb[0].mxu0
      %v1315 = vadd.f32 0.0, %v1314
      %v1316 = vpop.f32.mrb[0].mxu0
      %1317 = vmatprep.mubr.bf16.mxu0 0
      %1318 = vmatmul.mubr.bf16.gmra.mrb[0].mxu0 %v799
      %v1319 = vpop.f32.mrb[0].mxu0
      %v1320 = vadd.f32 0.0, %v1319
      %v1321 = vpop.f32.mrb[0].mxu0
      %v1322 = vpop.f32.mrb[0].mxu0
      %v1323 = vadd.f32 0.0, %v1322
      %v1324 = vpop.f32.mrb[0].mxu0
      %1325 = vmatprep.mubr.bf16.mxu0 0
      %1326 = vmatmul.mubr.bf16.gmra.mrb[0].mxu0 %v802
      %v1327 = vpop.f32.mrb[0].mxu0
      %v1328 = vadd.f32 0.0, %v1327
      %v1329 = vpop.f32.mrb[0].mxu0
      %v1330 = vpop.f32.mrb[0].mxu0
      %v1331 = vadd.f32 0.0, %v1330
      %v1332 = vpop.f32.mrb[0].mxu0
      %1333 = vmatprep.mubr.bf16.mxu0 0
      %1334 = vmatmul.mubr.bf16.gmra.mrb[0].mxu0 %v805
      %v1335 = vpop.f32.mrb[0].mxu0
      %v1336 = vadd.f32 0.0, %v1335
      %v1337 = vpop.f32.mrb[0].mxu0
      %v1338 = vpop.f32.mrb[0].mxu0
      %v1339 = vadd.f32 0.0, %v1338
      %v1340 = vpop.f32.mrb[0].mxu0
      %1341 = vmatprep.mubr.bf16.mxu0 0
      %1342 = vmatmul.mubr.bf16.gmra.mrb[0].mxu0 %v808
      %v1343 = vpop.f32.mrb[0].mxu0
      %v1344 = vadd.f32 0.0, %v1343
      %v1345 = vpop.f32.mrb[0].mxu0
      %v1346 = vpop.f32.mrb[0].mxu0
      %v1347 = vadd.f32 0.0, %v1346
      %v1348 = vpop.f32.mrb[0].mxu0
      %1349 = vmatprep.mubr.bf16.mxu0 0
      %1350 = vmatmul.mubr.bf16.gmra.mrb[0].mxu0 %v811
      %v1351 = vpop.f32.mrb[0].mxu0
      %v1352 = vadd.f32 0.0, %v1351
      %v1353 = vpop.f32.mrb[0].mxu0
      %v1354 = vpop.f32.mrb[0].mxu0
      %v1355 = vadd.f32 0.0, %v1354
      %v1356 = vpop.f32.mrb[0].mxu0
      %1357 = vdwg.mxu0
      %vm1358 = vcmp.gt.f32.partialorder %v848, 0.0
      %vm1359 = vcmp.gt.f32.partialorder %v851, 0.0
      %vm1360 = vcmp.gt.f32.partialorder %v856, 0.0
      %vm1361 = vcmp.gt.f32.partialorder %v859, 0.0
      %vm1362 = vcmp.gt.f32.partialorder %v864, 0.0
      %vm1363 = vcmp.gt.f32.partialorder %v867, 0.0
      %vm1364 = vcmp.gt.f32.partialorder %v872, 0.0
      %vm1365 = vcmp.gt.f32.partialorder %v875, 0.0
      %vm1366 = vcmp.gt.f32.partialorder %v880, 0.0
      %vm1367 = vcmp.gt.f32.partialorder %v883, 0.0
      %vm1368 = vcmp.gt.f32.partialorder %v888, 0.0
      %vm1369 = vcmp.gt.f32.partialorder %v891, 0.0
      %vm1370 = vcmp.gt.f32.partialorder %v896, 0.0
      %vm1371 = vcmp.gt.f32.partialorder %v899, 0.0
      %vm1372 = vcmp.gt.f32.partialorder %v904, 0.0
      %vm1373 = vcmp.gt.f32.partialorder %v907, 0.0
      %vm1374 = vcmp.gt.f32.partialorder %v912, 0.0
      %vm1375 = vcmp.gt.f32.partialorder %v915, 0.0
      %vm1376 = vcmp.gt.f32.partialorder %v920, 0.0
      %vm1377 = vcmp.gt.f32.partialorder %v923, 0.0
      %vm1378 = vcmp.gt.f32.partialorder %v928, 0.0
      %vm1379 = vcmp.gt.f32.partialorder %v931, 0.0
      %vm1380 = vcmp.gt.f32.partialorder %v936, 0.0
      %vm1381 = vcmp.gt.f32.partialorder %v939, 0.0
      %vm1382 = vcmp.gt.f32.partialorder %v944, 0.0
      %vm1383 = vcmp.gt.f32.partialorder %v947, 0.0
      %vm1384 = vcmp.gt.f32.partialorder %v952, 0.0
      %vm1385 = vcmp.gt.f32.partialorder %v955, 0.0
      %vm1386 = vcmp.gt.f32.partialorder %v960, 0.0
      %vm1387 = vcmp.gt.f32.partialorder %v963, 0.0
      %vm1388 = vcmp.gt.f32.partialorder %v968, 0.0
      %vm1389 = vcmp.gt.f32.partialorder %v971, 0.0
      %vm1390 = vcmp.gt.f32.partialorder %v976, 0.0
      %vm1391 = vcmp.gt.f32.partialorder %v979, 0.0
      %vm1392 = vcmp.gt.f32.partialorder %v984, 0.0
      %vm1393 = vcmp.gt.f32.partialorder %v987, 0.0
      %vm1394 = vcmp.gt.f32.partialorder %v992, 0.0
      %vm1395 = vcmp.gt.f32.partialorder %v995, 0.0
      %vm1396 = vcmp.gt.f32.partialorder %v1000, 0.0
      %vm1397 = vcmp.gt.f32.partialorder %v1003, 0.0
      %vm1398 = vcmp.gt.f32.partialorder %v1008, 0.0
      %vm1399 = vcmp.gt.f32.partialorder %v1011, 0.0
      %vm1400 = vcmp.gt.f32.partialorder %v1016, 0.0
      %vm1401 = vcmp.gt.f32.partialorder %v1019, 0.0
      %vm1402 = vcmp.gt.f32.partialorder %v1024, 0.0
      %vm1403 = vcmp.gt.f32.partialorder %v1027, 0.0
      %vm1404 = vcmp.gt.f32.partialorder %v1032, 0.0
      %vm1405 = vcmp.gt.f32.partialorder %v1035, 0.0
      %vm1406 = vcmp.gt.f32.partialorder %v1040, 0.0
      %vm1407 = vcmp.gt.f32.partialorder %v1043, 0.0
      %vm1408 = vcmp.gt.f32.partialorder %v1048, 0.0
      %vm1409 = vcmp.gt.f32.partialorder %v1051, 0.0
      %vm1410 = vcmp.gt.f32.partialorder %v1056, 0.0
      %vm1411 = vcmp.gt.f32.partialorder %v1059, 0.0
      %vm1412 = vcmp.gt.f32.partialorder %v1064, 0.0
      %vm1413 = vcmp.gt.f32.partialorder %v1067, 0.0
      %vm1414 = vcmp.gt.f32.partialorder %v1072, 0.0
      %vm1415 = vcmp.gt.f32.partialorder %v1075, 0.0
      %vm1416 = vcmp.gt.f32.partialorder %v1080, 0.0
      %vm1417 = vcmp.gt.f32.partialorder %v1083, 0.0
      %vm1418 = vcmp.gt.f32.partialorder %v1088, 0.0
      %vm1419 = vcmp.gt.f32.partialorder %v1091, 0.0
      %vm1420 = vcmp.gt.f32.partialorder %v1096, 0.0
      %vm1421 = vcmp.gt.f32.partialorder %v1099, 0.0
      %vm1422 = vcmp.gt.f32.partialorder %v1104, 0.0
      %vm1423 = vcmp.gt.f32.partialorder %v1107, 0.0
      %vm1424 = vcmp.gt.f32.partialorder %v1112, 0.0
      %vm1425 = vcmp.gt.f32.partialorder %v1115, 0.0
      %vm1426 = vcmp.gt.f32.partialorder %v1120, 0.0
      %vm1427 = vcmp.gt.f32.partialorder %v1123, 0.0
      %vm1428 = vcmp.gt.f32.partialorder %v1128, 0.0
      %vm1429 = vcmp.gt.f32.partialorder %v1131, 0.0
      %vm1430 = vcmp.gt.f32.partialorder %v1136, 0.0
      %vm1431 = vcmp.gt.f32.partialorder %v1139, 0.0
      %vm1432 = vcmp.gt.f32.partialorder %v1144, 0.0
      %vm1433 = vcmp.gt.f32.partialorder %v1147, 0.0
      %vm1434 = vcmp.gt.f32.partialorder %v1152, 0.0
      %vm1435 = vcmp.gt.f32.partialorder %v1155, 0.0
      %vm1436 = vcmp.gt.f32.partialorder %v1160, 0.0
      %vm1437 = vcmp.gt.f32.partialorder %v1163, 0.0
      %vm1438 = vcmp.gt.f32.partialorder %v1168, 0.0
      %vm1439 = vcmp.gt.f32.partialorder %v1171, 0.0
      %vm1440 = vcmp.gt.f32.partialorder %v1176, 0.0
      %vm1441 = vcmp.gt.f32.partialorder %v1179, 0.0
      %vm1442 = vcmp.gt.f32.partialorder %v1184, 0.0
      %vm1443 = vcmp.gt.f32.partialorder %v1187, 0.0
      %vm1444 = vcmp.gt.f32.partialorder %v1192, 0.0
      %vm1445 = vcmp.gt.f32.partialorder %v1195, 0.0
      %vm1446 = vcmp.gt.f32.partialorder %v1200, 0.0
      %vm1447 = vcmp.gt.f32.partialorder %v1203, 0.0
      %vm1448 = vcmp.gt.f32.partialorder %v1208, 0.0
      %vm1449 = vcmp.gt.f32.partialorder %v1211, 0.0
      %vm1450 = vcmp.gt.f32.partialorder %v1216, 0.0
      %vm1451 = vcmp.gt.f32.partialorder %v1219, 0.0
      %vm1452 = vcmp.gt.f32.partialorder %v1224, 0.0
      %vm1453 = vcmp.gt.f32.partialorder %v1227, 0.0
      %vm1454 = vcmp.gt.f32.partialorder %v1232, 0.0
      %vm1455 = vcmp.gt.f32.partialorder %v1235, 0.0
      %vm1456 = vcmp.gt.f32.partialorder %v1240, 0.0
      %vm1457 = vcmp.gt.f32.partialorder %v1243, 0.0
      %vm1458 = vcmp.gt.f32.partialorder %v1248, 0.0
      %vm1459 = vcmp.gt.f32.partialorder %v1251, 0.0
      %vm1460 = vcmp.gt.f32.partialorder %v1256, 0.0
      %vm1461 = vcmp.gt.f32.partialorder %v1259, 0.0
      %vm1462 = vcmp.gt.f32.partialorder %v1264, 0.0
      %vm1463 = vcmp.gt.f32.partialorder %v1267, 0.0
      %vm1464 = vcmp.gt.f32.partialorder %v1272, 0.0
      %vm1465 = vcmp.gt.f32.partialorder %v1275, 0.0
      %vm1466 = vcmp.gt.f32.partialorder %v1280, 0.0
      %vm1467 = vcmp.gt.f32.partialorder %v1283, 0.0
      %vm1468 = vcmp.gt.f32.partialorder %v1288, 0.0
      %vm1469 = vcmp.gt.f32.partialorder %v1291, 0.0
      %vm1470 = vcmp.gt.f32.partialorder %v1296, 0.0
      %vm1471 = vcmp.gt.f32.partialorder %v1299, 0.0
      %vm1472 = vcmp.gt.f32.partialorder %v1304, 0.0
      %vm1473 = vcmp.gt.f32.partialorder %v1307, 0.0
      %vm1474 = vcmp.gt.f32.partialorder %v1312, 0.0
      %vm1475 = vcmp.gt.f32.partialorder %v1315, 0.0
      %vm1476 = vcmp.gt.f32.partialorder %v1320, 0.0
      %vm1477 = vcmp.gt.f32.partialorder %v1323, 0.0
      %vm1478 = vcmp.gt.f32.partialorder %v1328, 0.0
      %vm1479 = vcmp.gt.f32.partialorder %v1331, 0.0
      %vm1480 = vcmp.gt.f32.partialorder %v1336, 0.0
      %vm1481 = vcmp.gt.f32.partialorder %v1339, 0.0
      %vm1482 = vcmp.gt.f32.partialorder %v1344, 0.0
      %vm1483 = vcmp.gt.f32.partialorder %v1347, 0.0
      %vm1484 = vcmp.gt.f32.partialorder %v1352, 0.0
      %vm1485 = vcmp.gt.f32.partialorder %v1355, 0.0
      %v1486 = vmul.f32 %v848, 0.2
      %v1487 = vmul.f32 %v851, 0.2
      %v1488 = vmul.f32 %v856, 0.2
      %v1489 = vmul.f32 %v859, 0.2
      %v1490 = vmul.f32 %v864, 0.2
      %v1491 = vmul.f32 %v867, 0.2
      %v1492 = vmul.f32 %v872, 0.2
      %v1493 = vmul.f32 %v875, 0.2
      %v1494 = vmul.f32 %v880, 0.2
      %v1495 = vmul.f32 %v883, 0.2
      %v1496 = vmul.f32 %v888, 0.2
      %v1497 = vmul.f32 %v891, 0.2
      %v1498 = vmul.f32 %v896, 0.2
      %v1499 = vmul.f32 %v899, 0.2
      %v1500 = vmul.f32 %v904, 0.2
      %v1501 = vmul.f32 %v907, 0.2
      %v1502 = vmul.f32 %v912, 0.2
      %v1503 = vmul.f32 %v915, 0.2
      %v1504 = vmul.f32 %v920, 0.2
      %v1505 = vmul.f32 %v923, 0.2
      %v1506 = vmul.f32 %v928, 0.2
      %v1507 = vmul.f32 %v931, 0.2
      %v1508 = vmul.f32 %v936, 0.2
      %v1509 = vmul.f32 %v939, 0.2
      %v1510 = vmul.f32 %v944, 0.2
      %v1511 = vmul.f32 %v947, 0.2
      %v1512 = vmul.f32 %v952, 0.2
      %v1513 = vmul.f32 %v955, 0.2
      %v1514 = vmul.f32 %v960, 0.2
      %v1515 = vmul.f32 %v963, 0.2
      %v1516 = vmul.f32 %v968, 0.2
      %v1517 = vmul.f32 %v971, 0.2
      %v1518 = vmul.f32 %v976, 0.2
      %v1519 = vmul.f32 %v979, 0.2
      %v1520 = vmul.f32 %v984, 0.2
      %v1521 = vmul.f32 %v987, 0.2
      %v1522 = vmul.f32 %v992, 0.2
      %v1523 = vmul.f32 %v995, 0.2
      %v1524 = vmul.f32 %v1000, 0.2
      %v1525 = vmul.f32 %v1003, 0.2
      %v1526 = vmul.f32 %v1008, 0.2
      %v1527 = vmul.f32 %v1011, 0.2
      %v1528 = vmul.f32 %v1016, 0.2
      %v1529 = vmul.f32 %v1019, 0.2
      %v1530 = vmul.f32 %v1024, 0.2
      %v1531 = vmul.f32 %v1027, 0.2
      %v1532 = vmul.f32 %v1032, 0.2
      %v1533 = vmul.f32 %v1035, 0.2
      %v1534 = vmul.f32 %v1040, 0.2
      %v1535 = vmul.f32 %v1043, 0.2
      %v1536 = vmul.f32 %v1048, 0.2
      %v1537 = vmul.f32 %v1051, 0.2
      %v1538 = vmul.f32 %v1056, 0.2
      %v1539 = vmul.f32 %v1059, 0.2
      %v1540 = vmul.f32 %v1064, 0.2
      %v1541 = vmul.f32 %v1067, 0.2
      %v1542 = vmul.f32 %v1072, 0.2
      %v1543 = vmul.f32 %v1075, 0.2
      %v1544 = vmul.f32 %v1080, 0.2
      %v1545 = vmul.f32 %v1083, 0.2
      %v1546 = vmul.f32 %v1088, 0.2
      %v1547 = vmul.f32 %v1091, 0.2
      %v1548 = vmul.f32 %v1096, 0.2
      %v1549 = vmul.f32 %v1099, 0.2
      %v1550 = vmul.f32 %v1104, 0.2
      %v1551 = vmul.f32 %v1107, 0.2
      %v1552 = vmul.f32 %v1112, 0.2
      %v1553 = vmul.f32 %v1115, 0.2
      %v1554 = vmul.f32 %v1120, 0.2
      %v1555 = vmul.f32 %v1123, 0.2
      %v1556 = vmul.f32 %v1128, 0.2
      %v1557 = vmul.f32 %v1131, 0.2
      %v1558 = vmul.f32 %v1136, 0.2
      %v1559 = vmul.f32 %v1139, 0.2
      %v1560 = vmul.f32 %v1144, 0.2
      %v1561 = vmul.f32 %v1147, 0.2
      %v1562 = vmul.f32 %v1152, 0.2
      %v1563 = vmul.f32 %v1155, 0.2
      %v1564 = vmul.f32 %v1160, 0.2
      %v1565 = vmul.f32 %v1163, 0.2
      %v1566 = vmul.f32 %v1168, 0.2
      %v1567 = vmul.f32 %v1171, 0.2
      %v1568 = vmul.f32 %v1176, 0.2
      %v1569 = vmul.f32 %v1179, 0.2
      %v1570 = vmul.f32 %v1184, 0.2
      %v1571 = vmul.f32 %v1187, 0.2
      %v1572 = vmul.f32 %v1192, 0.2
      %v1573 = vmul.f32 %v1195, 0.2
      %v1574 = vmul.f32 %v1200, 0.2
      %v1575 = vmul.f32 %v1203, 0.2
      %v1576 = vmul.f32 %v1208, 0.2
      %v1577 = vmul.f32 %v1211, 0.2
      %v1578 = vmul.f32 %v1216, 0.2
      %v1579 = vmul.f32 %v1219, 0.2
      %v1580 = vmul.f32 %v1224, 0.2
      %v1581 = vmul.f32 %v1227, 0.2
      %v1582 = vmul.f32 %v1232, 0.2
      %v1583 = vmul.f32 %v1235, 0.2
      %v1584 = vmul.f32 %v1240, 0.2
      %v1585 = vmul.f32 %v1243, 0.2
      %v1586 = vmul.f32 %v1248, 0.2
      %v1587 = vmul.f32 %v1251, 0.2
      %v1588 = vmul.f32 %v1256, 0.2
      %v1589 = vmul.f32 %v1259, 0.2
      %v1590 = vmul.f32 %v1264, 0.2
      %v1591 = vmul.f32 %v1267, 0.2
      %v1592 = vmul.f32 %v1272, 0.2
      %v1593 = vmul.f32 %v1275, 0.2
      %v1594 = vmul.f32 %v1280, 0.2
      %v1595 = vmul.f32 %v1283, 0.2
      %v1596 = vmul.f32 %v1288, 0.2
      %v1597 = vmul.f32 %v1291, 0.2
      %v1598 = vmul.f32 %v1296, 0.2
      %v1599 = vmul.f32 %v1299, 0.2
      %v1600 = vmul.f32 %v1304, 0.2
      %v1601 = vmul.f32 %v1307, 0.2
      %v1602 = vmul.f32 %v1312, 0.2
      %v1603 = vmul.f32 %v1315, 0.2
      %v1604 = vmul.f32 %v1320, 0.2
      %v1605 = vmul.f32 %v1323, 0.2
      %v1606 = vmul.f32 %v1328, 0.2
      %v1607 = vmul.f32 %v1331, 0.2
      %v1608 = vmul.f32 %v1336, 0.2
      %v1609 = vmul.f32 %v1339, 0.2
      %v1610 = vmul.f32 %v1344, 0.2
      %v1611 = vmul.f32 %v1347, 0.2
      %v1612 = vmul.f32 %v1352, 0.2
      %v1613 = vmul.f32 %v1355, 0.2
      %v1614 = vsel %vm1358, %v848, %v1486
      %v1615 = vsel %vm1359, %v851, %v1487
      %v1616 = vsel %vm1360, %v856, %v1488
      %v1617 = vsel %vm1361, %v859, %v1489
      %v1618 = vsel %vm1362, %v864, %v1490
      %v1619 = vsel %vm1363, %v867, %v1491
      %v1620 = vsel %vm1364, %v872, %v1492
      %v1621 = vsel %vm1365, %v875, %v1493
      %v1622 = vsel %vm1366, %v880, %v1494
      %v1623 = vsel %vm1367, %v883, %v1495
      %v1624 = vsel %vm1368, %v888, %v1496
      %v1625 = vsel %vm1369, %v891, %v1497
      %v1626 = vsel %vm1370, %v896, %v1498
      %v1627 = vsel %vm1371, %v899, %v1499
      %v1628 = vsel %vm1372, %v904, %v1500
      %v1629 = vsel %vm1373, %v907, %v1501
      %v1630 = vsel %vm1374, %v912, %v1502
      %v1631 = vsel %vm1375, %v915, %v1503
      %v1632 = vsel %vm1376, %v920, %v1504
      %v1633 = vsel %vm1377, %v923, %v1505
      %v1634 = vsel %vm1378, %v928, %v1506
      %v1635 = vsel %vm1379, %v931, %v1507
      %v1636 = vsel %vm1380, %v936, %v1508
      %v1637 = vsel %vm1381, %v939, %v1509
      %v1638 = vsel %vm1382, %v944, %v1510
      %v1639 = vsel %vm1383, %v947, %v1511
      %v1640 = vsel %vm1384, %v952, %v1512
      %v1641 = vsel %vm1385, %v955, %v1513
      %v1642 = vsel %vm1386, %v960, %v1514
      %v1643 = vsel %vm1387, %v963, %v1515
      %v1644 = vsel %vm1388, %v968, %v1516
      %v1645 = vsel %vm1389, %v971, %v1517
      %v1646 = vsel %vm1390, %v976, %v1518
      %v1647 = vsel %vm1391, %v979, %v1519
      %v1648 = vsel %vm1392, %v984, %v1520
      %v1649 = vsel %vm1393, %v987, %v1521
      %v1650 = vsel %vm1394, %v992, %v1522
      %v1651 = vsel %vm1395, %v995, %v1523
      %v1652 = vsel %vm1396, %v1000, %v1524
      %v1653 = vsel %vm1397, %v1003, %v1525
      %v1654 = vsel %vm1398, %v1008, %v1526
      %v1655 = vsel %vm1399, %v1011, %v1527
      %v1656 = vsel %vm1400, %v1016, %v1528
      %v1657 = vsel %vm1401, %v1019, %v1529
      %v1658 = vsel %vm1402, %v1024, %v1530
      %v1659 = vsel %vm1403, %v1027, %v1531
      %v1660 = vsel %vm1404, %v1032, %v1532
      %v1661 = vsel %vm1405, %v1035, %v1533
      %v1662 = vsel %vm1406, %v1040, %v1534
      %v1663 = vsel %vm1407, %v1043, %v1535
      %v1664 = vsel %vm1408, %v1048, %v1536
      %v1665 = vsel %vm1409, %v1051, %v1537
      %v1666 = vsel %vm1410, %v1056, %v1538
      %v1667 = vsel %vm1411, %v1059, %v1539
      %v1668 = vsel %vm1412, %v1064, %v1540
      %v1669 = vsel %vm1413, %v1067, %v1541
      %v1670 = vsel %vm1414, %v1072, %v1542
      %v1671 = vsel %vm1415, %v1075, %v1543
      %v1672 = vsel %vm1416, %v1080, %v1544
      %v1673 = vsel %vm1417, %v1083, %v1545
      %v1674 = vsel %vm1418, %v1088, %v1546
      %v1675 = vsel %vm1419, %v1091, %v1547
      %v1676 = vsel %vm1420, %v1096, %v1548
      %v1677 = vsel %vm1421, %v1099, %v1549
      %v1678 = vsel %vm1422, %v1104, %v1550
      %v1679 = vsel %vm1423, %v1107, %v1551
      %v1680 = vsel %vm1424, %v1112, %v1552
      %v1681 = vsel %vm1425, %v1115, %v1553
      %v1682 = vsel %vm1426, %v1120, %v1554
      %v1683 = vsel %vm1427, %v1123, %v1555
      %v1684 = vsel %vm1428, %v1128, %v1556
      %v1685 = vsel %vm1429, %v1131, %v1557
      %v1686 = vsel %vm1430, %v1136, %v1558
      %v1687 = vsel %vm1431, %v1139, %v1559
      %v1688 = vsel %vm1432, %v1144, %v1560
      %v1689 = vsel %vm1433, %v1147, %v1561
      %v1690 = vsel %vm1434, %v1152, %v1562
      %v1691 = vsel %vm1435, %v1155, %v1563
      %v1692 = vsel %vm1436, %v1160, %v1564
      %v1693 = vsel %vm1437, %v1163, %v1565
      %v1694 = vsel %vm1438, %v1168, %v1566
      %v1695 = vsel %vm1439, %v1171, %v1567
      %v1696 = vsel %vm1440, %v1176, %v1568
      %v1697 = vsel %vm1441, %v1179, %v1569
      %v1698 = vsel %vm1442, %v1184, %v1570
      %v1699 = vsel %vm1443, %v1187, %v1571
      %v1700 = vsel %vm1444, %v1192, %v1572
      %v1701 = vsel %vm1445, %v1195, %v1573
      %v1702 = vsel %vm1446, %v1200, %v1574
      %v1703 = vsel %vm1447, %v1203, %v1575
      %v1704 = vsel %vm1448, %v1208, %v1576
      %v1705 = vsel %vm1449, %v1211, %v1577
      %v1706 = vsel %vm1450, %v1216, %v1578
      %v1707 = vsel %vm1451, %v1219, %v1579
      %v1708 = vsel %vm1452, %v1224, %v1580
      %v1709 = vsel %vm1453, %v1227, %v1581
      %v1710 = vsel %vm1454, %v1232, %v1582
      %v1711 = vsel %vm1455, %v1235, %v1583
      %v1712 = vsel %vm1456, %v1240, %v1584
      %v1713 = vsel %vm1457, %v1243, %v1585
      %v1714 = vsel %vm1458, %v1248, %v1586
      %v1715 = vsel %vm1459, %v1251, %v1587
      %v1716 = vsel %vm1460, %v1256, %v1588
      %v1717 = vsel %vm1461, %v1259, %v1589
      %v1718 = vsel %vm1462, %v1264, %v1590
      %v1719 = vsel %vm1463, %v1267, %v1591
      %v1720 = vsel %vm1464, %v1272, %v1592
      %v1721 = vsel %vm1465, %v1275, %v1593
      %v1722 = vsel %vm1466, %v1280, %v1594
      %v1723 = vsel %vm1467, %v1283, %v1595
      %v1724 = vsel %vm1468, %v1288, %v1596
      %v1725 = vsel %vm1469, %v1291, %v1597
      %v1726 = vsel %vm1470, %v1296, %v1598
      %v1727 = vsel %vm1471, %v1299, %v1599
      %v1728 = vsel %vm1472, %v1304, %v1600
      %v1729 = vsel %vm1473, %v1307, %v1601
      %v1730 = vsel %vm1474, %v1312, %v1602
      %v1731 = vsel %vm1475, %v1315, %v1603
      %v1732 = vsel %vm1476, %v1320, %v1604
      %v1733 = vsel %vm1477, %v1323, %v1605
      %v1734 = vsel %vm1478, %v1328, %v1606
      %v1735 = vsel %vm1479, %v1331, %v1607
      %v1736 = vsel %vm1480, %v1336, %v1608
      %v1737 = vsel %vm1481, %v1339, %v1609
      %v1738 = vsel %vm1482, %v1344, %v1610
      %v1739 = vsel %vm1483, %v1347, %v1611
      %v1740 = vsel %vm1484, %v1352, %v1612
      %v1741 = vsel %vm1485, %v1355, %v1613
      %v1742 = vpack.c.bf16 %v1615, %v1614
      %v1743 = vpack.c.bf16 %v1617, %v1616
      %v1744 = vpack.c.bf16 %v1619, %v1618
      %v1745 = vpack.c.bf16 %v1621, %v1620
      %v1746 = vpack.c.bf16 %v1623, %v1622
      %v1747 = vpack.c.bf16 %v1625, %v1624
      %v1748 = vpack.c.bf16 %v1627, %v1626
      %v1749 = vpack.c.bf16 %v1629, %v1628
      %v1750 = vpack.c.bf16 %v1631, %v1630
      %v1751 = vpack.c.bf16 %v1633, %v1632
      %v1752 = vpack.c.bf16 %v1635, %v1634
      %v1753 = vpack.c.bf16 %v1637, %v1636
      %v1754 = vpack.c.bf16 %v1639, %v1638
      %v1755 = vpack.c.bf16 %v1641, %v1640
      %v1756 = vpack.c.bf16 %v1643, %v1642
      %v1757 = vpack.c.bf16 %v1645, %v1644
      %v1758 = vpack.c.bf16 %v1647, %v1646
      %v1759 = vpack.c.bf16 %v1649, %v1648
      %v1760 = vpack.c.bf16 %v1651, %v1650
      %v1761 = vpack.c.bf16 %v1653, %v1652
      %v1762 = vpack.c.bf16 %v1655, %v1654
      %v1763 = vpack.c.bf16 %v1657, %v1656
      %v1764 = vpack.c.bf16 %v1659, %v1658
      %v1765 = vpack.c.bf16 %v1661, %v1660
      %v1766 = vpack.c.bf16 %v1663, %v1662
      %v1767 = vpack.c.bf16 %v1665, %v1664
      %v1768 = vpack.c.bf16 %v1667, %v1666
      %v1769 = vpack.c.bf16 %v1669, %v1668
      %v1770 = vpack.c.bf16 %v1671, %v1670
      %v1771 = vpack.c.bf16 %v1673, %v1672
      %v1772 = vpack.c.bf16 %v1675, %v1674
      %v1773 = vpack.c.bf16 %v1677, %v1676
      %v1774 = vpack.c.bf16 %v1679, %v1678
      %v1775 = vpack.c.bf16 %v1681, %v1680
      %v1776 = vpack.c.bf16 %v1683, %v1682
      %v1777 = vpack.c.bf16 %v1685, %v1684
      %v1778 = vpack.c.bf16 %v1687, %v1686
      %v1779 = vpack.c.bf16 %v1689, %v1688
      %v1780 = vpack.c.bf16 %v1691, %v1690
      %v1781 = vpack.c.bf16 %v1693, %v1692
      %v1782 = vpack.c.bf16 %v1695, %v1694
      %v1783 = vpack.c.bf16 %v1697, %v1696
      %v1784 = vpack.c.bf16 %v1699, %v1698
      %v1785 = vpack.c.bf16 %v1701, %v1700
      %v1786 = vpack.c.bf16 %v1703, %v1702
      %v1787 = vpack.c.bf16 %v1705, %v1704
      %v1788 = vpack.c.bf16 %v1707, %v1706
      %v1789 = vpack.c.bf16 %v1709, %v1708
      %v1790 = vpack.c.bf16 %v1711, %v1710
      %v1791 = vpack.c.bf16 %v1713, %v1712
      %v1792 = vpack.c.bf16 %v1715, %v1714
      %v1793 = vpack.c.bf16 %v1717, %v1716
      %v1794 = vpack.c.bf16 %v1719, %v1718
      %v1795 = vpack.c.bf16 %v1721, %v1720
      %v1796 = vpack.c.bf16 %v1723, %v1722
      %v1797 = vpack.c.bf16 %v1725, %v1724
      %v1798 = vpack.c.bf16 %v1727, %v1726
      %v1799 = vpack.c.bf16 %v1729, %v1728
      %v1800 = vpack.c.bf16 %v1731, %v1730
      %v1801 = vpack.c.bf16 %v1733, %v1732
      %v1802 = vpack.c.bf16 %v1735, %v1734
      %v1803 = vpack.c.bf16 %v1737, %v1736
      %v1804 = vpack.c.bf16 %v1739, %v1738
      %v1805 = vpack.c.bf16 %v1741, %v1740
      %v1870 = vunpack.c.l.b16 %v1742
      %v1871 = vunpack.c.h.b16 %v1742
      %v1872 = vunpack.c.l.b16 %v1743
      %v1873 = vunpack.c.h.b16 %v1743
      %v1874 = vunpack.c.l.b16 %v1744
      %v1875 = vunpack.c.h.b16 %v1744
      %v1876 = vunpack.c.l.b16 %v1745
      %v1877 = vunpack.c.h.b16 %v1745
      %v1878 = vunpack.c.l.b16 %v1746
      %v1879 = vunpack.c.h.b16 %v1746
      %v1880 = vunpack.c.l.b16 %v1747
      %v1881 = vunpack.c.h.b16 %v1747
      %v1882 = vunpack.c.l.b16 %v1748
      %v1883 = vunpack.c.h.b16 %v1748
      %v1884 = vunpack.c.l.b16 %v1749
      %v1885 = vunpack.c.h.b16 %v1749
      %v1886 = vunpack.c.l.b16 %v1750
      %v1887 = vunpack.c.h.b16 %v1750
      %v1888 = vunpack.c.l.b16 %v1751
      %v1889 = vunpack.c.h.b16 %v1751
      %v1890 = vunpack.c.l.b16 %v1752
      %v1891 = vunpack.c.h.b16 %v1752
      %v1892 = vunpack.c.l.b16 %v1753
      %v1893 = vunpack.c.h.b16 %v1753
      %v1894 = vunpack.c.l.b16 %v1754
      %v1895 = vunpack.c.h.b16 %v1754
      %v1896 = vunpack.c.l.b16 %v1755
      %v1897 = vunpack.c.h.b16 %v1755
      %v1898 = vunpack.c.l.b16 %v1756
      %v1899 = vunpack.c.h.b16 %v1756
      %v1900 = vunpack.c.l.b16 %v1757
      %v1901 = vunpack.c.h.b16 %v1757
      %v1902 = vunpack.c.l.b16 %v1758
      %v1903 = vunpack.c.h.b16 %v1758
      %v1904 = vunpack.c.l.b16 %v1759
      %v1905 = vunpack.c.h.b16 %v1759
      %v1906 = vunpack.c.l.b16 %v1760
      %v1907 = vunpack.c.h.b16 %v1760
      %v1908 = vunpack.c.l.b16 %v1761
      %v1909 = vunpack.c.h.b16 %v1761
      %v1910 = vunpack.c.l.b16 %v1762
      %v1911 = vunpack.c.h.b16 %v1762
      %v1912 = vunpack.c.l.b16 %v1763
      %v1913 = vunpack.c.h.b16 %v1763
      %v1914 = vunpack.c.l.b16 %v1764
      %v1915 = vunpack.c.h.b16 %v1764
      %v1916 = vunpack.c.l.b16 %v1765
      %v1917 = vunpack.c.h.b16 %v1765
      %v1918 = vunpack.c.l.b16 %v1766
      %v1919 = vunpack.c.h.b16 %v1766
      %v1920 = vunpack.c.l.b16 %v1767
      %v1921 = vunpack.c.h.b16 %v1767
      %v1922 = vunpack.c.l.b16 %v1768
      %v1923 = vunpack.c.h.b16 %v1768
      %v1924 = vunpack.c.l.b16 %v1769
      %v1925 = vunpack.c.h.b16 %v1769
      %v1926 = vunpack.c.l.b16 %v1770
      %v1927 = vunpack.c.h.b16 %v1770
      %v1928 = vunpack.c.l.b16 %v1771
      %v1929 = vunpack.c.h.b16 %v1771
      %v1930 = vunpack.c.l.b16 %v1772
      %v1931 = vunpack.c.h.b16 %v1772
      %v1932 = vunpack.c.l.b16 %v1773
      %v1933 = vunpack.c.h.b16 %v1773
      %v1934 = vunpack.c.l.b16 %v1774
      %v1935 = vunpack.c.h.b16 %v1774
      %v1936 = vunpack.c.l.b16 %v1775
      %v1937 = vunpack.c.h.b16 %v1775
      %v1938 = vunpack.c.l.b16 %v1776
      %v1939 = vunpack.c.h.b16 %v1776
      %v1940 = vunpack.c.l.b16 %v1777
      %v1941 = vunpack.c.h.b16 %v1777
      %v1942 = vunpack.c.l.b16 %v1778
      %v1943 = vunpack.c.h.b16 %v1778
      %v1944 = vunpack.c.l.b16 %v1779
      %v1945 = vunpack.c.h.b16 %v1779
      %v1946 = vunpack.c.l.b16 %v1780
      %v1947 = vunpack.c.h.b16 %v1780
      %v1948 = vunpack.c.l.b16 %v1781
      %v1949 = vunpack.c.h.b16 %v1781
      %v1950 = vunpack.c.l.b16 %v1782
      %v1951 = vunpack.c.h.b16 %v1782
      %v1952 = vunpack.c.l.b16 %v1783
      %v1953 = vunpack.c.h.b16 %v1783
      %v1954 = vunpack.c.l.b16 %v1784
      %v1955 = vunpack.c.h.b16 %v1784
      %v1956 = vunpack.c.l.b16 %v1785
      %v1957 = vunpack.c.h.b16 %v1785
      %v1958 = vunpack.c.l.b16 %v1786
      %v1959 = vunpack.c.h.b16 %v1786
      %v1960 = vunpack.c.l.b16 %v1787
      %v1961 = vunpack.c.h.b16 %v1787
      %v1962 = vunpack.c.l.b16 %v1788
      %v1963 = vunpack.c.h.b16 %v1788
      %v1964 = vunpack.c.l.b16 %v1789
      %v1965 = vunpack.c.h.b16 %v1789
      %v1966 = vunpack.c.l.b16 %v1790
      %v1967 = vunpack.c.h.b16 %v1790
      %v1968 = vunpack.c.l.b16 %v1791
      %v1969 = vunpack.c.h.b16 %v1791
      %v1970 = vunpack.c.l.b16 %v1792
      %v1971 = vunpack.c.h.b16 %v1792
      %v1972 = vunpack.c.l.b16 %v1793
      %v1973 = vunpack.c.h.b16 %v1793
      %v1974 = vunpack.c.l.b16 %v1794
      %v1975 = vunpack.c.h.b16 %v1794
      %v1976 = vunpack.c.l.b16 %v1795
      %v1977 = vunpack.c.h.b16 %v1795
      %v1978 = vunpack.c.l.b16 %v1796
      %v1979 = vunpack.c.h.b16 %v1796
      %v1980 = vunpack.c.l.b16 %v1797
      %v1981 = vunpack.c.h.b16 %v1797
      %v1982 = vunpack.c.l.b16 %v1798
      %v1983 = vunpack.c.h.b16 %v1798
      %v1984 = vunpack.c.l.b16 %v1799
      %v1985 = vunpack.c.h.b16 %v1799
      %v1986 = vunpack.c.l.b16 %v1800
      %v1987 = vunpack.c.h.b16 %v1800
      %v1988 = vunpack.c.l.b16 %v1801
      %v1989 = vunpack.c.h.b16 %v1801
      %v1990 = vunpack.c.l.b16 %v1802
      %v1991 = vunpack.c.h.b16 %v1802
      %v1992 = vunpack.c.l.b16 %v1803
      %v1993 = vunpack.c.h.b16 %v1803
      %v1994 = vunpack.c.l.b16 %v1804
      %v1995 = vunpack.c.h.b16 %v1804
      %v1996 = vunpack.c.l.b16 %v1805
      %v1997 = vunpack.c.h.b16 %v1805
      %v1998 = vpack.c.b16 %v1870, %v1870
      %v1999 = vpack.c.b16 %v1871, %v1871
      %v2000 = vpack.c.b16 %v1872, %v1872
      %v2001 = vpack.c.b16 %v1873, %v1873
      %v2002 = vpack.c.b16 %v1874, %v1874
      %v2003 = vpack.c.b16 %v1875, %v1875
      %v2004 = vpack.c.b16 %v1876, %v1876
      %v2005 = vpack.c.b16 %v1877, %v1877
      %v2006 = vpack.c.b16 %v1878, %v1878
      %v2007 = vpack.c.b16 %v1879, %v1879
      %v2008 = vpack.c.b16 %v1880, %v1880
      %v2009 = vpack.c.b16 %v1881, %v1881
      %v2010 = vpack.c.b16 %v1882, %v1882
      %v2011 = vpack.c.b16 %v1883, %v1883
      %v2012 = vpack.c.b16 %v1884, %v1884
      %v2013 = vpack.c.b16 %v1885, %v1885
      %v2014 = vpack.c.b16 %v1886, %v1886
      %v2015 = vpack.c.b16 %v1887, %v1887
      %v2016 = vpack.c.b16 %v1888, %v1888
      %v2017 = vpack.c.b16 %v1889, %v1889
      %v2018 = vpack.c.b16 %v1890, %v1890
      %v2019 = vpack.c.b16 %v1891, %v1891
      %v2020 = vpack.c.b16 %v1892, %v1892
      %v2021 = vpack.c.b16 %v1893, %v1893
      %v2022 = vpack.c.b16 %v1894, %v1894
      %v2023 = vpack.c.b16 %v1895, %v1895
      %v2024 = vpack.c.b16 %v1896, %v1896
      %v2025 = vpack.c.b16 %v1897, %v1897
      %v2026 = vpack.c.b16 %v1898, %v1898
      %v2027 = vpack.c.b16 %v1899, %v1899
      %v2028 = vpack.c.b16 %v1900, %v1900
      %v2029 = vpack.c.b16 %v1901, %v1901
      %v2030 = vpack.c.b16 %v1902, %v1902
      %v2031 = vpack.c.b16 %v1903, %v1903
      %v2032 = vpack.c.b16 %v1904, %v1904
      %v2033 = vpack.c.b16 %v1905, %v1905
      %v2034 = vpack.c.b16 %v1906, %v1906
      %v2035 = vpack.c.b16 %v1907, %v1907
      %v2036 = vpack.c.b16 %v1908, %v1908
      %v2037 = vpack.c.b16 %v1909, %v1909
      %v2038 = vpack.c.b16 %v1910, %v1910
      %v2039 = vpack.c.b16 %v1911, %v1911
      %v2040 = vpack.c.b16 %v1912, %v1912
      %v2041 = vpack.c.b16 %v1913, %v1913
      %v2042 = vpack.c.b16 %v1914, %v1914
      %v2043 = vpack.c.b16 %v1915, %v1915
      %v2044 = vpack.c.b16 %v1916, %v1916
      %v2045 = vpack.c.b16 %v1917, %v1917
      %v2046 = vpack.c.b16 %v1918, %v1918
      %v2047 = vpack.c.b16 %v1919, %v1919
      %v2048 = vpack.c.b16 %v1920, %v1920
      %v2049 = vpack.c.b16 %v1921, %v1921
      %v2050 = vpack.c.b16 %v1922, %v1922
      %v2051 = vpack.c.b16 %v1923, %v1923
      %v2052 = vpack.c.b16 %v1924, %v1924
      %v2053 = vpack.c.b16 %v1925, %v1925
      %v2054 = vpack.c.b16 %v1926, %v1926
      %v2055 = vpack.c.b16 %v1927, %v1927
      %v2056 = vpack.c.b16 %v1928, %v1928
      %v2057 = vpack.c.b16 %v1929, %v1929
      %v2058 = vpack.c.b16 %v1930, %v1930
      %v2059 = vpack.c.b16 %v1931, %v1931
      %v2060 = vpack.c.b16 %v1932, %v1932
      %v2061 = vpack.c.b16 %v1933, %v1933
      %v2062 = vpack.c.b16 %v1934, %v1934
      %v2063 = vpack.c.b16 %v1935, %v1935
      %v2064 = vpack.c.b16 %v1936, %v1936
      %v2065 = vpack.c.b16 %v1937, %v1937
      %v2066 = vpack.c.b16 %v1938, %v1938
      %v2067 = vpack.c.b16 %v1939, %v1939
      %v2068 = vpack.c.b16 %v1940, %v1940
      %v2069 = vpack.c.b16 %v1941, %v1941
      %v2070 = vpack.c.b16 %v1942, %v1942
      %v2071 = vpack.c.b16 %v1943, %v1943
      %v2072 = vpack.c.b16 %v1944, %v1944
      %v2073 = vpack.c.b16 %v1945, %v1945
      %v2074 = vpack.c.b16 %v1946, %v1946
      %v2075 = vpack.c.b16 %v1947, %v1947
      %v2076 = vpack.c.b16 %v1948, %v1948
      %v2077 = vpack.c.b16 %v1949, %v1949
      %v2078 = vpack.c.b16 %v1950, %v1950
      %v2079 = vpack.c.b16 %v1951, %v1951
      %v2080 = vpack.c.b16 %v1952, %v1952
      %v2081 = vpack.c.b16 %v1953, %v1953
      %v2082 = vpack.c.b16 %v1954, %v1954
      %v2083 = vpack.c.b16 %v1955, %v1955
      %v2084 = vpack.c.b16 %v1956, %v1956
      %v2085 = vpack.c.b16 %v1957, %v1957
      %v2086 = vpack.c.b16 %v1958, %v1958
      %v2087 = vpack.c.b16 %v1959, %v1959
      %v2088 = vpack.c.b16 %v1960, %v1960
      %v2089 = vpack.c.b16 %v1961, %v1961
      %v2090 = vpack.c.b16 %v1962, %v1962
      %v2091 = vpack.c.b16 %v1963, %v1963
      %v2092 = vpack.c.b16 %v1964, %v1964
      %v2093 = vpack.c.b16 %v1965, %v1965
      %v2094 = vpack.c.b16 %v1966, %v1966
      %v2095 = vpack.c.b16 %v1967, %v1967
      %v2096 = vpack.c.b16 %v1968, %v1968
      %v2097 = vpack.c.b16 %v1969, %v1969
      %v2098 = vpack.c.b16 %v1970, %v1970
      %v2099 = vpack.c.b16 %v1971, %v1971
      %v2100 = vpack.c.b16 %v1972, %v1972
      %v2101 = vpack.c.b16 %v1973, %v1973
      %v2102 = vpack.c.b16 %v1974, %v1974
      %v2103 = vpack.c.b16 %v1975, %v1975
      %v2104 = vpack.c.b16 %v1976, %v1976
      %v2105 = vpack.c.b16 %v1977, %v1977
      %v2106 = vpack.c.b16 %v1978, %v1978
      %v2107 = vpack.c.b16 %v1979, %v1979
      %v2108 = vpack.c.b16 %v1980, %v1980
      %v2109 = vpack.c.b16 %v1981, %v1981
      %v2110 = vpack.c.b16 %v1982, %v1982
      %v2111 = vpack.c.b16 %v1983, %v1983
      %v2112 = vpack.c.b16 %v1984, %v1984
      %v2113 = vpack.c.b16 %v1985, %v1985
      %v2114 = vpack.c.b16 %v1986, %v1986
      %v2115 = vpack.c.b16 %v1987, %v1987
      %v2116 = vpack.c.b16 %v1988, %v1988
      %v2117 = vpack.c.b16 %v1989, %v1989
      %v2118 = vpack.c.b16 %v1990, %v1990
      %v2119 = vpack.c.b16 %v1991, %v1991
      %v2120 = vpack.c.b16 %v1992, %v1992
      %v2121 = vpack.c.b16 %v1993, %v1993
      %v2122 = vpack.c.b16 %v1994, %v1994
      %v2123 = vpack.c.b16 %v1995, %v1995
      %v2124 = vpack.c.b16 %v1996, %v1996
      %v2125 = vpack.c.b16 %v1997, %v1997
      %2254 = vst [vmem:[%s145] sm:$0xf] %v1998
      %2255 = vst [vmem:[%s145 + $0x4] sm:$0xf] %v1999
      %2256 = vst [vmem:[%s145 + $0x8] sm:$0xf] %v2000
      %2257 = vst [vmem:[%s145 + $0xc] sm:$0xf] %v2001
      %2258 = vst [vmem:[%s145 + $0x10] sm:$0xf] %v2002
      %2259 = vst [vmem:[%s145 + $0x14] sm:$0xf] %v2003
      %2260 = vst [vmem:[%s145 + $0x18] sm:$0xf] %v2004
      %2261 = vst [vmem:[%s145 + $0x1c] sm:$0xf] %v2005
      %2262 = vst [vmem:[%s145 + $0x20] sm:$0xf] %v2006
      %2263 = vst [vmem:[%s145 + $0x24] sm:$0xf] %v2007
      %2264 = vst [vmem:[%s145 + $0x28] sm:$0xf] %v2008
      %2265 = vst [vmem:[%s145 + $0x2c] sm:$0xf] %v2009
      %2266 = vst [vmem:[%s145 + $0x30] sm:$0xf] %v2010
      %2267 = vst [vmem:[%s145 + $0x34] sm:$0xf] %v2011
      %2268 = vst [vmem:[%s145 + $0x38] sm:$0xf] %v2012
      %2269 = vst [vmem:[%s145 + $0x3c] sm:$0xf] %v2013
      %2270 = vst [vmem:[%s145 + $0x40] sm:$0xf] %v2014
      %2271 = vst [vmem:[%s145 + $0x44] sm:$0xf] %v2015
      %2272 = vst [vmem:[%s145 + $0x48] sm:$0xf] %v2016
      %2273 = vst [vmem:[%s145 + $0x4c] sm:$0xf] %v2017
      %2274 = vst [vmem:[%s145 + $0x50] sm:$0xf] %v2018
      %2275 = vst [vmem:[%s145 + $0x54] sm:$0xf] %v2019
      %2276 = vst [vmem:[%s145 + $0x58] sm:$0xf] %v2020
      %2277 = vst [vmem:[%s145 + $0x5c] sm:$0xf] %v2021
      %2278 = vst [vmem:[%s145 + $0x60] sm:$0xf] %v2022
      %2279 = vst [vmem:[%s145 + $0x64] sm:$0xf] %v2023
      %2280 = vst [vmem:[%s145 + $0x68] sm:$0xf] %v2024
      %2281 = vst [vmem:[%s145 + $0x6c] sm:$0xf] %v2025
      %2282 = vst [vmem:[%s145 + $0x70] sm:$0xf] %v2026
      %2283 = vst [vmem:[%s145 + $0x74] sm:$0xf] %v2027
      %2284 = vst [vmem:[%s145 + $0x78] sm:$0xf] %v2028
      %2285 = vst [vmem:[%s145 + $0x7c] sm:$0xf] %v2029
      %2286 = vst [vmem:[%s145 + $0x80] sm:$0xf] %v2030
      %2287 = vst [vmem:[%s145 + $0x84] sm:$0xf] %v2031
      %2288 = vst [vmem:[%s145 + $0x88] sm:$0xf] %v2032
      %2289 = vst [vmem:[%s145 + $0x8c] sm:$0xf] %v2033
      %2290 = vst [vmem:[%s145 + $0x90] sm:$0xf] %v2034
      %2291 = vst [vmem:[%s145 + $0x94] sm:$0xf] %v2035
      %2292 = vst [vmem:[%s145 + $0x98] sm:$0xf] %v2036
      %2293 = vst [vmem:[%s145 + $0x9c] sm:$0xf] %v2037
      %2294 = vst [vmem:[%s145 + $0xa0] sm:$0xf] %v2038
      %2295 = vst [vmem:[%s145 + $0xa4] sm:$0xf] %v2039
      %2296 = vst [vmem:[%s145 + $0xa8] sm:$0xf] %v2040
      %2297 = vst [vmem:[%s145 + $0xac] sm:$0xf] %v2041
      %2298 = vst [vmem:[%s145 + $0xb0] sm:$0xf] %v2042
      %2299 = vst [vmem:[%s145 + $0xb4] sm:$0xf] %v2043
      %2300 = vst [vmem:[%s145 + $0xb8] sm:$0xf] %v2044
      %2301 = vst [vmem:[%s145 + $0xbc] sm:$0xf] %v2045
      %2302 = vst [vmem:[%s145 + $0xc0] sm:$0xf] %v2046
      %2303 = vst [vmem:[%s145 + $0xc4] sm:$0xf] %v2047
      %2304 = vst [vmem:[%s145 + $0xc8] sm:$0xf] %v2048
      %2305 = vst [vmem:[%s145 + $0xcc] sm:$0xf] %v2049
      %2306 = vst [vmem:[%s145 + $0xd0] sm:$0xf] %v2050
      %2307 = vst [vmem:[%s145 + $0xd4] sm:$0xf] %v2051
      %2308 = vst [vmem:[%s145 + $0xd8] sm:$0xf] %v2052
      %2309 = vst [vmem:[%s145 + $0xdc] sm:$0xf] %v2053
      %2310 = vst [vmem:[%s145 + $0xe0] sm:$0xf] %v2054
      %2311 = vst [vmem:[%s145 + $0xe4] sm:$0xf] %v2055
      %2312 = vst [vmem:[%s145 + $0xe8] sm:$0xf] %v2056
      %2313 = vst [vmem:[%s145 + $0xec] sm:$0xf] %v2057
      %2314 = vst [vmem:[%s145 + $0xf0] sm:$0xf] %v2058
      %2315 = vst [vmem:[%s145 + $0xf4] sm:$0xf] %v2059
      %2316 = vst [vmem:[%s145 + $0xf8] sm:$0xf] %v2060
      %2317 = vst [vmem:[%s145 + $0xfc] sm:$0xf] %v2061
      %2318 = vst [vmem:[%s145 + $0x100] sm:$0xf] %v2062
      %2319 = vst [vmem:[%s145 + $0x104] sm:$0xf] %v2063
      %2320 = vst [vmem:[%s145 + $0x108] sm:$0xf] %v2064
      %2321 = vst [vmem:[%s145 + $0x10c] sm:$0xf] %v2065
      %2322 = vst [vmem:[%s145 + $0x110] sm:$0xf] %v2066
      %2323 = vst [vmem:[%s145 + $0x114] sm:$0xf] %v2067
      %2324 = vst [vmem:[%s145 + $0x118] sm:$0xf] %v2068
      %2325 = vst [vmem:[%s145 + $0x11c] sm:$0xf] %v2069
      %2326 = vst [vmem:[%s145 + $0x120] sm:$0xf] %v2070
      %2327 = vst [vmem:[%s145 + $0x124] sm:$0xf] %v2071
      %2328 = vst [vmem:[%s145 + $0x128] sm:$0xf] %v2072
      %2329 = vst [vmem:[%s145 + $0x12c] sm:$0xf] %v2073
      %2330 = vst [vmem:[%s145 + $0x130] sm:$0xf] %v2074
      %2331 = vst [vmem:[%s145 + $0x134] sm:$0xf] %v2075
      %2332 = vst [vmem:[%s145 + $0x138] sm:$0xf] %v2076
      %2333 = vst [vmem:[%s145 + $0x13c] sm:$0xf] %v2077
      %2334 = vst [vmem:[%s145 + $0x140] sm:$0xf] %v2078
      %2335 = vst [vmem:[%s145 + $0x144] sm:$0xf] %v2079
      %2336 = vst [vmem:[%s145 + $0x148] sm:$0xf] %v2080
      %2337 = vst [vmem:[%s145 + $0x14c] sm:$0xf] %v2081
      %2338 = vst [vmem:[%s145 + $0x150] sm:$0xf] %v2082
      %2339 = vst [vmem:[%s145 + $0x154] sm:$0xf] %v2083
      %2340 = vst [vmem:[%s145 + $0x158] sm:$0xf] %v2084
      %2341 = vst [vmem:[%s145 + $0x15c] sm:$0xf] %v2085
      %2342 = vst [vmem:[%s145 + $0x160] sm:$0xf] %v2086
      %2343 = vst [vmem:[%s145 + $0x164] sm:$0xf] %v2087
      %2344 = vst [vmem:[%s145 + $0x168] sm:$0xf] %v2088
      %2345 = vst [vmem:[%s145 + $0x16c] sm:$0xf] %v2089
      %2346 = vst [vmem:[%s145 + $0x170] sm:$0xf] %v2090
      %2347 = vst [vmem:[%s145 + $0x174] sm:$0xf] %v2091
      %2348 = vst [vmem:[%s145 + $0x178] sm:$0xf] %v2092
      %2349 = vst [vmem:[%s145 + $0x17c] sm:$0xf] %v2093
      %2350 = vst [vmem:[%s145 + $0x180] sm:$0xf] %v2094
      %2351 = vst [vmem:[%s145 + $0x184] sm:$0xf] %v2095
      %2352 = vst [vmem:[%s145 + $0x188] sm:$0xf] %v2096
      %2353 = vst [vmem:[%s145 + $0x18c] sm:$0xf] %v2097
      %2354 = vst [vmem:[%s145 + $0x190] sm:$0xf] %v2098
      %2355 = vst [vmem:[%s145 + $0x194] sm:$0xf] %v2099
      %2356 = vst [vmem:[%s145 + $0x198] sm:$0xf] %v2100
      %2357 = vst [vmem:[%s145 + $0x19c] sm:$0xf] %v2101
      %2358 = vst [vmem:[%s145 + $0x1a0] sm:$0xf] %v2102
      %2359 = vst [vmem:[%s145 + $0x1a4] sm:$0xf] %v2103
      %2360 = vst [vmem:[%s145 + $0x1a8] sm:$0xf] %v2104
      %2361 = vst [vmem:[%s145 + $0x1ac] sm:$0xf] %v2105
      %2362 = vst [vmem:[%s145 + $0x1b0] sm:$0xf] %v2106
      %2363 = vst [vmem:[%s145 + $0x1b4] sm:$0xf] %v2107
      %2364 = vst [vmem:[%s145 + $0x1b8] sm:$0xf] %v2108
      %2365 = vst [vmem:[%s145 + $0x1bc] sm:$0xf] %v2109
      %2366 = vst [vmem:[%s145 + $0x1c0] sm:$0xf] %v2110
      %2367 = vst [vmem:[%s145 + $0x1c4] sm:$0xf] %v2111
      %2368 = vst [vmem:[%s145 + $0x1c8] sm:$0xf] %v2112
      %2369 = vst [vmem:[%s145 + $0x1cc] sm:$0xf] %v2113
      %2370 = vst [vmem:[%s145 + $0x1d0] sm:$0xf] %v2114
      %2371 = vst [vmem:[%s145 + $0x1d4] sm:$0xf] %v2115
      %2372 = vst [vmem:[%s145 + $0x1d8] sm:$0xf] %v2116
      %2373 = vst [vmem:[%s145 + $0x1dc] sm:$0xf] %v2117
      %2374 = vst [vmem:[%s145 + $0x1e0] sm:$0xf] %v2118
      %2375 = vst [vmem:[%s145 + $0x1e4] sm:$0xf] %v2119
      %2376 = vst [vmem:[%s145 + $0x1e8] sm:$0xf] %v2120
      %2377 = vst [vmem:[%s145 + $0x1ec] sm:$0xf] %v2121
      %2378 = vst [vmem:[%s145 + $0x1f0] sm:$0xf] %v2122
      %2379 = vst [vmem:[%s145 + $0x1f4] sm:$0xf] %v2123
      %2380 = vst [vmem:[%s145 + $0x1f8] sm:$0xf] %v2124
      %2381 = vst [vmem:[%s145 + $0x1fc] sm:$0xf] %v2125
      %s2382 = smul.u32 128, %s13
      %p2383 = scmp.lt.s32.totalorder %s2382, 255
      %s2384 = scalar_select %p2383, %s2382, 255
      %s2385 = smul.addr %s2384, 4
      %s2386 = scalar_lea.vmem %s2, %s2385
      // Predicated region
      $region29: #{discriminator_forward.5} parent=27 // pred_check
        %p2387 = pneg %p78
      $region30: #{discriminator_forward.5} parent=27 // pred_check_branch
        %2389 = sbr.rel (%p2387) target = $region32
      $region31: #{discriminator_forward.5} parent=27 // pred_region
        %s2390 = smul.u32 128, %s13
      $region32: #{discriminator_forward.5} parent=27 // pred_fallthru
        _
    $region28: #{discriminator_forward.5} parent=5 // pred_fallthru
      _
    %p2391 = scmp.le.s32.totalorder 2, %s8
    // Predicated region
    $region33: #{discriminator_forward.5} parent=5 // pred_check
      %p2392 = pneg %p2391
    $region34: #{discriminator_forward.5} parent=5 // pred_check_branch
      %2394 = sbr.rel (%p2392) target = $region36
    $region35: #{discriminator_forward.5} parent=5 // pred_region
      %s2395 = ssub.s32 %s8, 2
      // Predicated region
      $region37: #{discriminator_forward.5} parent=35 // pred_check
        %p2396 = pneg %p84
      $region38: #{discriminator_forward.5} parent=35 // pred_check_branch
        %2398 = sbr.rel (%p2396) target = $region40
      $region39: #{discriminator_forward.5} parent=35 // pred_region
        %s2399 = smul.u32 128, %s14
        %p2400 = scmp.lt.s32.totalorder %s2399, 255
        %s2401 = scalar_select %p2400, %s2399, 255
        %s2402 = smul.addr %s2401, 4
        %s2403 = scalar_lea.vmem %s2, %s2402
      $region40: #{discriminator_forward.5} parent=35 // pred_fallthru
        _
    $region36: #{discriminator_forward.5} parent=5 // pred_fallthru
      _
  $region6: #{discriminator_forward.5} parent=0 // loop_footer
    %s12 = sadd.s32 1, %s8
  $region7: #{discriminator_forward.5} parent=0 // loop_footer_branch
    %7 = sbr.rel target = $region3
  $region8: #{discriminator_forward.5} parent=0 // loop_exit
    _

// kernel: discriminator_forward.6
$region0: #{discriminator_forward.6}
  #allocation0 [shape = 'u32[]', space=smem, size = 0x4, offset = 0x4, fixed_abs, tag = 'smem constant byte address 0x4 - core index']
  #allocation1 [shape = 'u32[144,128]{1,0:T(1,128)}', space=vmem, size = 0x12000, scoped, tag = 'internal scratch']
  %s0 = inlined_call_operand.vmem [shape: bf16[512,128], index: 0, kind: input, shape index: {}]
  %s1 = inlined_call_operand.vmem [shape: bf16[128,128], index: 1, kind: input, shape index: {}]
  %s2 = inlined_call_operand.vmem [shape: f32[1,128], index: 2, kind: input, shape index: {}]
  %s3 = inlined_call_operand.vmem [shape: f32[1,128], index: 3, kind: input, shape index: {}]
  %s4 = inlined_call_operand.vmem [shape: bf16[512,128], index: 4, kind: output, shape index: {}]
  %s5 = sld [smem:[#allocation0]]
  $region26: #{discriminator_forward.6} parent=0
    _
  %s7 = ssub.s32 1, %s5
  %s8 = scalar_select 0, %s7, %s5
  // Predicated region
  $region2: #{discriminator_forward.6} parent=0 // pred_check
    _
  $region3: #{discriminator_forward.6} parent=0 // pred_check_branch
    %10 = sbr.rel (0) target = $region5
  $region4: #{discriminator_forward.6} parent=0 // pred_region
    _
  $region5: #{discriminator_forward.6} parent=0 // pred_fallthru
    _
  // Predicated region
  $region6: #{discriminator_forward.6} parent=0 // pred_check
    _
  $region7: #{discriminator_forward.6} parent=0 // pred_check_branch
    %12 = sbr.rel (0) target = $region9
  $region8: #{discriminator_forward.6} parent=0 // pred_region
    _
  $region9: #{discriminator_forward.6} parent=0 // pred_fallthru
    _
  // Predicated region
  $region10: #{discriminator_forward.6} parent=0 // pred_check
    _
  $region11: #{discriminator_forward.6} parent=0 // pred_check_branch
    %14 = sbr.rel (0) target = $region13
  $region12: #{discriminator_forward.6} parent=0 // pred_region
    _
  $region13: #{discriminator_forward.6} parent=0 // pred_fallthru
    _
  // Predicated region
  $region14: #{discriminator_forward.6} parent=0 // pred_check
    _
  $region15: #{discriminator_forward.6} parent=0 // pred_check_branch
    %16 = sbr.rel (0) target = $region17
  $region16: #{discriminator_forward.6} parent=0 // pred_region
    _
  $region17: #{discriminator_forward.6} parent=0 // pred_fallthru
    _
  %v18 = vld [vmem:[%s0] sm:$0xf]
  %v19 = vld [vmem:[%s0 + $0x4] sm:$0xf]
  %v20 = vld [vmem:[%s0 + $0x8] sm:$0xf]
  %v21 = vld [vmem:[%s0 + $0xc] sm:$0xf]
  %v22 = vld [vmem:[%s0 + $0x10] sm:$0xf]
  %v23 = vld [vmem:[%s0 + $0x14] sm:$0xf]
  %v24 = vld [vmem:[%s0 + $0x18] sm:$0xf]
  %v25 = vld [vmem:[%s0 + $0x1c] sm:$0xf]
  %v26 = vld [vmem:[%s0 + $0x20] sm:$0xf]
  %v27 = vld [vmem:[%s0 + $0x24] sm:$0xf]
  %v28 = vld [vmem:[%s0 + $0x28] sm:$0xf]
  %v29 = vld [vmem:[%s0 + $0x2c] sm:$0xf]
  %v30 = vld [vmem:[%s0 + $0x30] sm:$0xf]
  %v31 = vld [vmem:[%s0 + $0x34] sm:$0xf]
  %v32 = vld [vmem:[%s0 + $0x38] sm:$0xf]
  %v33 = vld [vmem:[%s0 + $0x3c] sm:$0xf]
  %v34 = vld [vmem:[%s0 + $0x40] sm:$0xf]
  %v35 = vld [vmem:[%s0 + $0x44] sm:$0xf]
  %v36 = vld [vmem:[%s0 + $0x48] sm:$0xf]
  %v37 = vld [vmem:[%s0 + $0x4c] sm:$0xf]
  %v38 = vld [vmem:[%s0 + $0x50] sm:$0xf]
  %v39 = vld [vmem:[%s0 + $0x54] sm:$0xf]
  %v40 = vld [vmem:[%s0 + $0x58] sm:$0xf]
  %v41 = vld [vmem:[%s0 + $0x5c] sm:$0xf]
  %v42 = vld [vmem:[%s0 + $0x60] sm:$0xf]
  %v43 = vld [vmem:[%s0 + $0x64] sm:$0xf]
  %v44 = vld [vmem:[%s0 + $0x68] sm:$0xf]
  %v45 = vld [vmem:[%s0 + $0x6c] sm:$0xf]
  %v46 = vld [vmem:[%s0 + $0x70] sm:$0xf]
  %v47 = vld [vmem:[%s0 + $0x74] sm:$0xf]
  %v48 = vld [vmem:[%s0 + $0x78] sm:$0xf]
  %v49 = vld [vmem:[%s0 + $0x7c] sm:$0xf]
  %v50 = vld [vmem:[%s0 + $0x80] sm:$0xf]
  %v51 = vld [vmem:[%s0 + $0x84] sm:$0xf]
  %v52 = vld [vmem:[%s0 + $0x88] sm:$0xf]
  %v53 = vld [vmem:[%s0 + $0x8c] sm:$0xf]
  %v54 = vld [vmem:[%s0 + $0x90] sm:$0xf]
  %v55 = vld [vmem:[%s0 + $0x94] sm:$0xf]
  %v56 = vld [vmem:[%s0 + $0x98] sm:$0xf]
  %v57 = vld [vmem:[%s0 + $0x9c] sm:$0xf]
  %v58 = vld [vmem:[%s0 + $0xa0] sm:$0xf]
  %v59 = vld [vmem:[%s0 + $0xa4] sm:$0xf]
  %v60 = vld [vmem:[%s0 + $0xa8] sm:$0xf]
  %v61 = vld [vmem:[%s0 + $0xac] sm:$0xf]
  %v62 = vld [vmem:[%s0 + $0xb0] sm:$0xf]
  %v63 = vld [vmem:[%s0 + $0xb4] sm:$0xf]
  %v64 = vld [vmem:[%s0 + $0xb8] sm:$0xf]
  %v65 = vld [vmem:[%s0 + $0xbc] sm:$0xf]
  %v66 = vld [vmem:[%s0 + $0xc0] sm:$0xf]
  %v67 = vld [vmem:[%s0 + $0xc4] sm:$0xf]
  %v68 = vld [vmem:[%s0 + $0xc8] sm:$0xf]
  %v69 = vld [vmem:[%s0 + $0xcc] sm:$0xf]
  %v70 = vld [vmem:[%s0 + $0xd0] sm:$0xf]
  %v71 = vld [vmem:[%s0 + $0xd4] sm:$0xf]
  %v72 = vld [vmem:[%s0 + $0xd8] sm:$0xf]
  %v73 = vld [vmem:[%s0 + $0xdc] sm:$0xf]
  %v74 = vld [vmem:[%s0 + $0xe0] sm:$0xf]
  %v75 = vld [vmem:[%s0 + $0xe4] sm:$0xf]
  %v76 = vld [vmem:[%s0 + $0xe8] sm:$0xf]
  %v77 = vld [vmem:[%s0 + $0xec] sm:$0xf]
  %v78 = vld [vmem:[%s0 + $0xf0] sm:$0xf]
  %v79 = vld [vmem:[%s0 + $0xf4] sm:$0xf]
  %v80 = vld [vmem:[%s0 + $0xf8] sm:$0xf]
  %v81 = vld [vmem:[%s0 + $0xfc] sm:$0xf]
  %v82 = vld [vmem:[%s1] sm:$0xf]
  %v83 = vld [vmem:[%s1 + $0x4] sm:$0xf]
  %v84 = vld [vmem:[%s1 + $0x8] sm:$0xf]
  %v85 = vld [vmem:[%s1 + $0xc] sm:$0xf]
  %v86 = vld [vmem:[%s1 + $0x10] sm:$0xf]
  %v87 = vld [vmem:[%s1 + $0x14] sm:$0xf]
  %v88 = vld [vmem:[%s1 + $0x18] sm:$0xf]
  %v89 = vld [vmem:[%s1 + $0x1c] sm:$0xf]
  %v90 = vld [vmem:[%s1 + $0x20] sm:$0xf]
  %v91 = vld [vmem:[%s1 + $0x24] sm:$0xf]
  %v92 = vld [vmem:[%s1 + $0x28] sm:$0xf]
  %v93 = vld [vmem:[%s1 + $0x2c] sm:$0xf]
  %v94 = vld [vmem:[%s1 + $0x30] sm:$0xf]
  %v95 = vld [vmem:[%s1 + $0x34] sm:$0xf]
  %v96 = vld [vmem:[%s1 + $0x38] sm:$0xf]
  %v97 = vld [vmem:[%s1 + $0x3c] sm:$0xf]
  %v162 = vunpack.c.l.b16 %v18
  %v163 = vunpack.c.l.b16 %v19
  %v164 = vunpack.c.l.b16 %v20
  %v165 = vunpack.c.l.b16 %v21
  %v166 = vunpack.c.l.b16 %v22
  %v167 = vunpack.c.l.b16 %v23
  %v168 = vunpack.c.l.b16 %v24
  %v169 = vunpack.c.l.b16 %v25
  %v170 = vunpack.c.l.b16 %v26
  %v171 = vunpack.c.l.b16 %v27
  %v172 = vunpack.c.l.b16 %v28
  %v173 = vunpack.c.l.b16 %v29
  %v174 = vunpack.c.l.b16 %v30
  %v175 = vunpack.c.l.b16 %v31
  %v176 = vunpack.c.l.b16 %v32
  %v177 = vunpack.c.l.b16 %v33
  %v178 = vunpack.c.l.b16 %v34
  %v179 = vunpack.c.l.b16 %v35
  %v180 = vunpack.c.l.b16 %v36
  %v181 = vunpack.c.l.b16 %v37
  %v182 = vunpack.c.l.b16 %v38
  %v183 = vunpack.c.l.b16 %v39
  %v184 = vunpack.c.l.b16 %v40
  %v185 = vunpack.c.l.b16 %v41
  %v186 = vunpack.c.l.b16 %v42
  %v187 = vunpack.c.l.b16 %v43
  %v188 = vunpack.c.l.b16 %v44
  %v189 = vunpack.c.l.b16 %v45
  %v190 = vunpack.c.l.b16 %v46
  %v191 = vunpack.c.l.b16 %v47
  %v192 = vunpack.c.l.b16 %v48
  %v193 = vunpack.c.l.b16 %v49
  %v194 = vunpack.c.l.b16 %v50
  %v195 = vunpack.c.l.b16 %v51
  %v196 = vunpack.c.l.b16 %v52
  %v197 = vunpack.c.l.b16 %v53
  %v198 = vunpack.c.l.b16 %v54
  %v199 = vunpack.c.l.b16 %v55
  %v200 = vunpack.c.l.b16 %v56
  %v201 = vunpack.c.l.b16 %v57
  %v202 = vunpack.c.l.b16 %v58
  %v203 = vunpack.c.l.b16 %v59
  %v204 = vunpack.c.l.b16 %v60
  %v205 = vunpack.c.l.b16 %v61
  %v206 = vunpack.c.l.b16 %v62
  %v207 = vunpack.c.l.b16 %v63
  %v208 = vunpack.c.l.b16 %v64
  %v209 = vunpack.c.l.b16 %v65
  %v210 = vunpack.c.l.b16 %v66
  %v211 = vunpack.c.l.b16 %v67
  %v212 = vunpack.c.l.b16 %v68
  %v213 = vunpack.c.l.b16 %v69
  %v214 = vunpack.c.l.b16 %v70
  %v215 = vunpack.c.l.b16 %v71
  %v216 = vunpack.c.l.b16 %v72
  %v217 = vunpack.c.l.b16 %v73
  %v218 = vunpack.c.l.b16 %v74
  %v219 = vunpack.c.l.b16 %v75
  %v220 = vunpack.c.l.b16 %v76
  %v221 = vunpack.c.l.b16 %v77
  %v222 = vunpack.c.l.b16 %v78
  %v223 = vunpack.c.l.b16 %v79
  %v224 = vunpack.c.l.b16 %v80
  %v225 = vunpack.c.l.b16 %v81
  %v226 = vpack.c.b16 %v163, %v162
  %v227 = vpack.c.b16 %v165, %v164
  %v228 = vpack.c.b16 %v167, %v166
  %v229 = vpack.c.b16 %v169, %v168
  %v230 = vpack.c.b16 %v171, %v170
  %v231 = vpack.c.b16 %v173, %v172
  %v232 = vpack.c.b16 %v175, %v174
  %v233 = vpack.c.b16 %v177, %v176
  %v234 = vpack.c.b16 %v179, %v178
  %v235 = vpack.c.b16 %v181, %v180
  %v236 = vpack.c.b16 %v183, %v182
  %v237 = vpack.c.b16 %v185, %v184
  %v238 = vpack.c.b16 %v187, %v186
  %v239 = vpack.c.b16 %v189, %v188
  %v240 = vpack.c.b16 %v191, %v190
  %v241 = vpack.c.b16 %v193, %v192
  %v242 = vpack.c.b16 %v195, %v194
  %v243 = vpack.c.b16 %v197, %v196
  %v244 = vpack.c.b16 %v199, %v198
  %v245 = vpack.c.b16 %v201, %v200
  %v246 = vpack.c.b16 %v203, %v202
  %v247 = vpack.c.b16 %v205, %v204
  %v248 = vpack.c.b16 %v207, %v206
  %v249 = vpack.c.b16 %v209, %v208
  %v250 = vpack.c.b16 %v211, %v210
  %v251 = vpack.c.b16 %v213, %v212
  %v252 = vpack.c.b16 %v215, %v214
  %v253 = vpack.c.b16 %v217, %v216
  %v254 = vpack.c.b16 %v219, %v218
  %v255 = vpack.c.b16 %v221, %v220
  %v256 = vpack.c.b16 %v223, %v222
  %v257 = vpack.c.b16 %v225, %v224
  %v306 = vunpack.c.l.b16 %v82
  %v307 = vunpack.c.l.b16 %v83
  %v308 = vunpack.c.l.b16 %v84
  %v309 = vunpack.c.l.b16 %v85
  %v310 = vunpack.c.l.b16 %v86
  %v311 = vunpack.c.l.b16 %v87
  %v312 = vunpack.c.l.b16 %v88
  %v313 = vunpack.c.l.b16 %v89
  %v314 = vunpack.c.l.b16 %v90
  %v315 = vunpack.c.l.b16 %v91
  %v316 = vunpack.c.l.b16 %v92
  %v317 = vunpack.c.l.b16 %v93
  %v318 = vunpack.c.l.b16 %v94
  %v319 = vunpack.c.l.b16 %v95
  %v320 = vunpack.c.l.b16 %v96
  %v321 = vunpack.c.l.b16 %v97
  %v322 = vpack.c.b16 %v307, %v306
  %v323 = vpack.c.b16 %v309, %v308
  %v324 = vpack.c.b16 %v311, %v310
  %v325 = vpack.c.b16 %v313, %v312
  %v326 = vpack.c.b16 %v315, %v314
  %v327 = vpack.c.b16 %v317, %v316
  %v328 = vpack.c.b16 %v319, %v318
  %v329 = vpack.c.b16 %v321, %v320
  %338 = vmatprep.subr.bf16.mxu0 0
  %339 = vmatpush1.bf16.msra.mxu0 %v322
  %340 = vmatprep.subr.bf16.mxu0 0
  %341 = vmatpush1.bf16.msra.mxu0 %v323
  %342 = vmatprep.subr.bf16.mxu0 0
  %343 = vmatpush1.bf16.msra.mxu0 %v324
  %344 = vmatprep.subr.bf16.mxu0 0
  %345 = vmatpush1.bf16.msra.mxu0 %v325
  %346 = vmatprep.subr.bf16.mxu0 0
  %347 = vmatpush1.bf16.msra.mxu0 %v326
  %348 = vmatprep.subr.bf16.mxu0 0
  %349 = vmatpush1.bf16.msra.mxu0 %v327
  %350 = vmatprep.subr.bf16.mxu0 0
  %351 = vmatpush1.bf16.msra.mxu0 %v328
  %352 = vmatprep.subr.bf16.mxu0 0
  %353 = vmatpush1.bf16.msra.mxu0 %v329
  %354 = vmatprep.subr.bf16.mxu0 0
  %355 = vmatpush1.bf16.msra.mxu0 0
  %356 = vmatprep.subr.bf16.mxu0 0
  %357 = vmatpush1.bf16.msra.mxu0 0
  %358 = vmatprep.subr.bf16.mxu0 0
  %359 = vmatpush1.bf16.msra.mxu0 0
  %360 = vmatprep.subr.bf16.mxu0 0
  %361 = vmatpush1.bf16.msra.mxu0 0
  %362 = vmatprep.subr.bf16.mxu0 0
  %363 = vmatpush1.bf16.msra.mxu0 0
  %364 = vmatprep.subr.bf16.mxu0 0
  %365 = vmatpush1.bf16.msra.mxu0 0
  %366 = vmatprep.subr.bf16.mxu0 0
  %367 = vmatpush1.bf16.msra.mxu0 0
  %368 = vmatprep.subr.bf16.mxu0 0
  %369 = vmatpush1.bf16.msra.mxu0 0
  %370 = vmatprep.mubr.bf16.mxu0 0
  %371 = vmatmul.mubr.bf16.gmra.mrb[0].mxu0 %v226
  %v372 = vpop.f32.mrb[0].mxu0
  %v373 = vadd.f32 0.0, %v372
  %v374 = vpop.f32.mrb[0].mxu0
  %v375 = vpop.f32.mrb[0].mxu0
  %v376 = vadd.f32 0.0, %v375
  %v377 = vpop.f32.mrb[0].mxu0
  %378 = vmatprep.mubr.bf16.mxu0 0
  %379 = vmatmul.mubr.bf16.gmra.mrb[0].mxu0 %v227
  %v380 = vpop.f32.mrb[0].mxu0
  %v381 = vadd.f32 0.0, %v380
  %v382 = vpop.f32.mrb[0].mxu0
  %v383 = vpop.f32.mrb[0].mxu0
  %v384 = vadd.f32 0.0, %v383
  %v385 = vpop.f32.mrb[0].mxu0
  %386 = vmatprep.mubr.bf16.mxu0 0
  %387 = vmatmul.mubr.bf16.gmra.mrb[0].mxu0 %v228
  %v388 = vpop.f32.mrb[0].mxu0
  %v389 = vadd.f32 0.0, %v388
  %v390 = vpop.f32.mrb[0].mxu0
  %v391 = vpop.f32.mrb[0].mxu0
  %v392 = vadd.f32 0.0, %v391
  %v393 = vpop.f32.mrb[0].mxu0
  %394 = vmatprep.mubr.bf16.mxu0 0
  %395 = vmatmul.mubr.bf16.gmra.mrb[0].mxu0 %v229
  %v396 = vpop.f32.mrb[0].mxu0
  %v397 = vadd.f32 0.0, %v396
  %v398 = vpop.f32.mrb[0].mxu0
  %v399 = vpop.f32.mrb[0].mxu0
  %v400 = vadd.f32 0.0, %v399
  %v401 = vpop.f32.mrb[0].mxu0
  %402 = vmatprep.mubr.bf16.mxu0 0
  %403 = vmatmul.mubr.bf16.gmra.mrb[0].mxu0 %v230
  %v404 = vpop.f32.mrb[0].mxu0
  %v405 = vadd.f32 0.0, %v404
  %v406 = vpop.f32.mrb[0].mxu0
  %v407 = vpop.f32.mrb[0].mxu0
  %v408 = vadd.f32 0.0, %v407
  %v409 = vpop.f32.mrb[0].mxu0
  %410 = vmatprep.mubr.bf16.mxu0 0
  %411 = vmatmul.mubr.bf16.gmra.mrb[0].mxu0 %v231
  %v412 = vpop.f32.mrb[0].mxu0
  %v413 = vadd.f32 0.0, %v412
  %v414 = vpop.f32.mrb[0].mxu0
  %v415 = vpop.f32.mrb[0].mxu0
  %v416 = vadd.f32 0.0, %v415
  %v417 = vpop.f32.mrb[0].mxu0
  %418 = vmatprep.mubr.bf16.mxu0 0
  %419 = vmatmul.mubr.bf16.gmra.mrb[0].mxu0 %v232
  %v420 = vpop.f32.mrb[0].mxu0
  %v421 = vadd.f32 0.0, %v420
  %v422 = vpop.f32.mrb[0].mxu0
  %v423 = vpop.f32.mrb[0].mxu0
  %v424 = vadd.f32 0.0, %v423
  %v425 = vpop.f32.mrb[0].mxu0
  %426 = vmatprep.mubr.bf16.mxu0 0
  %427 = vmatmul.mubr.bf16.gmra.mrb[0].mxu0 %v233
  %v428 = vpop.f32.mrb[0].mxu0
  %v429 = vadd.f32 0.0, %v428
  %v430 = vpop.f32.mrb[0].mxu0
  %v431 = vpop.f32.mrb[0].mxu0
  %v432 = vadd.f32 0.0, %v431
  %v433 = vpop.f32.mrb[0].mxu0
  %434 = vmatprep.mubr.bf16.mxu0 0
  %435 = vmatmul.mubr.bf16.gmra.mrb[0].mxu0 %v234
  %v436 = vpop.f32.mrb[0].mxu0
  %v437 = vadd.f32 0.0, %v436
  %v438 = vpop.f32.mrb[0].mxu0
  %v439 = vpop.f32.mrb[0].mxu0
  %v440 = vadd.f32 0.0, %v439
  %v441 = vpop.f32.mrb[0].mxu0
  %442 = vmatprep.mubr.bf16.mxu0 0
  %443 = vmatmul.mubr.bf16.gmra.mrb[0].mxu0 %v235
  %v444 = vpop.f32.mrb[0].mxu0
  %v445 = vadd.f32 0.0, %v444
  %v446 = vpop.f32.mrb[0].mxu0
  %v447 = vpop.f32.mrb[0].mxu0
  %v448 = vadd.f32 0.0, %v447
  %v449 = vpop.f32.mrb[0].mxu0
  %450 = vmatprep.mubr.bf16.mxu0 0
  %451 = vmatmul.mubr.bf16.gmra.mrb[0].mxu0 %v236
  %v452 = vpop.f32.mrb[0].mxu0
  %v453 = vadd.f32 0.0, %v452
  %v454 = vpop.f32.mrb[0].mxu0
  %v455 = vpop.f32.mrb[0].mxu0
  %v456 = vadd.f32 0.0, %v455
  %v457 = vpop.f32.mrb[0].mxu0
  %458 = vmatprep.mubr.bf16.mxu0 0
  %459 = vmatmul.mubr.bf16.gmra.mrb[0].mxu0 %v237
  %v460 = vpop.f32.mrb[0].mxu0
  %v461 = vadd.f32 0.0, %v460
  %v462 = vpop.f32.mrb[0].mxu0
  %v463 = vpop.f32.mrb[0].mxu0
  %v464 = vadd.f32 0.0, %v463
  %v465 = vpop.f32.mrb[0].mxu0
  %466 = vmatprep.mubr.bf16.mxu0 0
  %467 = vmatmul.mubr.bf16.gmra.mrb[0].mxu0 %v238
  %v468 = vpop.f32.mrb[0].mxu0
  %v469 = vadd.f32 0.0, %v468
  %v470 = vpop.f32.mrb[0].mxu0
  %v471 = vpop.f32.mrb[0].mxu0
  %v472 = vadd.f32 0.0, %v471
  %v473 = vpop.f32.mrb[0].mxu0
  %474 = vmatprep.mubr.bf16.mxu0 0
  %475 = vmatmul.mubr.bf16.gmra.mrb[0].mxu0 %v239
  %v476 = vpop.f32.mrb[0].mxu0
  %v477 = vadd.f32 0.0, %v476
  %v478 = vpop.f32.mrb[0].mxu0
  %v479 = vpop.f32.mrb[0].mxu0
  %v480 = vadd.f32 0.0, %v479
  %v481 = vpop.f32.mrb[0].mxu0
  %482 = vmatprep.mubr.bf16.mxu0 0
  %483 = vmatmul.mubr.bf16.gmra.mrb[0].mxu0 %v240
  %v484 = vpop.f32.mrb[0].mxu0
  %v485 = vadd.f32 0.0, %v484
  %v486 = vpop.f32.mrb[0].mxu0
  %v487 = vpop.f32.mrb[0].mxu0
  %v488 = vadd.f32 0.0, %v487
  %v489 = vpop.f32.mrb[0].mxu0
  %490 = vmatprep.mubr.bf16.mxu0 0
  %491 = vmatmul.mubr.bf16.gmra.mrb[0].mxu0 %v241
  %v492 = vpop.f32.mrb[0].mxu0
  %v493 = vadd.f32 0.0, %v492
  %v494 = vpop.f32.mrb[0].mxu0
  %v495 = vpop.f32.mrb[0].mxu0
  %v496 = vadd.f32 0.0, %v495
  %v497 = vpop.f32.mrb[0].mxu0
  %498 = vmatprep.mubr.bf16.mxu0 0
  %499 = vmatmul.mubr.bf16.gmra.mrb[0].mxu0 %v242
  %v500 = vpop.f32.mrb[0].mxu0
  %v501 = vadd.f32 0.0, %v500
  %v502 = vpop.f32.mrb[0].mxu0
  %v503 = vpop.f32.mrb[0].mxu0
  %v504 = vadd.f32 0.0, %v503
  %v505 = vpop.f32.mrb[0].mxu0
  %506 = vmatprep.mubr.bf16.mxu0 0
  %507 = vmatmul.mubr.bf16.gmra.mrb[0].mxu0 %v243
  %v508 = vpop.f32.mrb[0].mxu0
  %v509 = vadd.f32 0.0, %v508
  %v510 = vpop.f32.mrb[0].mxu0
  %v511 = vpop.f32.mrb[0].mxu0
  %v512 = vadd.f32 0.0, %v511
  %v513 = vpop.f32.mrb[0].mxu0
  %514 = vmatprep.mubr.bf16.mxu0 0
  %515 = vmatmul.mubr.bf16.gmra.mrb[0].mxu0 %v244
  %v516 = vpop.f32.mrb[0].mxu0
  %v517 = vadd.f32 0.0, %v516
  %v518 = vpop.f32.mrb[0].mxu0
  %v519 = vpop.f32.mrb[0].mxu0
  %v520 = vadd.f32 0.0, %v519
  %v521 = vpop.f32.mrb[0].mxu0
  %522 = vmatprep.mubr.bf16.mxu0 0
  %523 = vmatmul.mubr.bf16.gmra.mrb[0].mxu0 %v245
  %v524 = vpop.f32.mrb[0].mxu0
  %v525 = vadd.f32 0.0, %v524
  %v526 = vpop.f32.mrb[0].mxu0
  %v527 = vpop.f32.mrb[0].mxu0
  %v528 = vadd.f32 0.0, %v527
  %v529 = vpop.f32.mrb[0].mxu0
  %530 = vmatprep.mubr.bf16.mxu0 0
  %531 = vmatmul.mubr.bf16.gmra.mrb[0].mxu0 %v246
  %v532 = vpop.f32.mrb[0].mxu0
  %v533 = vadd.f32 0.0, %v532
  %v534 = vpop.f32.mrb[0].mxu0
  %v535 = vpop.f32.mrb[0].mxu0
  %v536 = vadd.f32 0.0, %v535
  %v537 = vpop.f32.mrb[0].mxu0
  %538 = vmatprep.mubr.bf16.mxu0 0
  %539 = vmatmul.mubr.bf16.gmra.mrb[0].mxu0 %v247
  %v540 = vpop.f32.mrb[0].mxu0
  %v541 = vadd.f32 0.0, %v540
  %v542 = vpop.f32.mrb[0].mxu0
  %v543 = vpop.f32.mrb[0].mxu0
  %v544 = vadd.f32 0.0, %v543
  %v545 = vpop.f32.mrb[0].mxu0
  %546 = vmatprep.mubr.bf16.mxu0 0
  %547 = vmatmul.mubr.bf16.gmra.mrb[0].mxu0 %v248
  %v548 = vpop.f32.mrb[0].mxu0
  %v549 = vadd.f32 0.0, %v548
  %v550 = vpop.f32.mrb[0].mxu0
  %v551 = vpop.f32.mrb[0].mxu0
  %v552 = vadd.f32 0.0, %v551
  %v553 = vpop.f32.mrb[0].mxu0
  %554 = vmatprep.mubr.bf16.mxu0 0
  %555 = vmatmul.mubr.bf16.gmra.mrb[0].mxu0 %v249
  %v556 = vpop.f32.mrb[0].mxu0
  %v557 = vadd.f32 0.0, %v556
  %v558 = vpop.f32.mrb[0].mxu0
  %v559 = vpop.f32.mrb[0].mxu0
  %v560 = vadd.f32 0.0, %v559
  %v561 = vpop.f32.mrb[0].mxu0
  %562 = vmatprep.mubr.bf16.mxu0 0
  %563 = vmatmul.mubr.bf16.gmra.mrb[0].mxu0 %v250
  %v564 = vpop.f32.mrb[0].mxu0
  %v565 = vadd.f32 0.0, %v564
  %v566 = vpop.f32.mrb[0].mxu0
  %v567 = vpop.f32.mrb[0].mxu0
  %v568 = vadd.f32 0.0, %v567
  %v569 = vpop.f32.mrb[0].mxu0
  %570 = vmatprep.mubr.bf16.mxu0 0
  %571 = vmatmul.mubr.bf16.gmra.mrb[0].mxu0 %v251
  %v572 = vpop.f32.mrb[0].mxu0
  %v573 = vadd.f32 0.0, %v572
  %v574 = vpop.f32.mrb[0].mxu0
  %v575 = vpop.f32.mrb[0].mxu0
  %v576 = vadd.f32 0.0, %v575
  %v577 = vpop.f32.mrb[0].mxu0
  %578 = vmatprep.mubr.bf16.mxu0 0
  %579 = vmatmul.mubr.bf16.gmra.mrb[0].mxu0 %v252
  %v580 = vpop.f32.mrb[0].mxu0
  %v581 = vadd.f32 0.0, %v580
  %v582 = vpop.f32.mrb[0].mxu0
  %v583 = vpop.f32.mrb[0].mxu0
  %v584 = vadd.f32 0.0, %v583
  %v585 = vpop.f32.mrb[0].mxu0
  %586 = vmatprep.mubr.bf16.mxu0 0
  %587 = vmatmul.mubr.bf16.gmra.mrb[0].mxu0 %v253
  %v588 = vpop.f32.mrb[0].mxu0
  %v589 = vadd.f32 0.0, %v588
  %v590 = vpop.f32.mrb[0].mxu0
  %v591 = vpop.f32.mrb[0].mxu0
  %v592 = vadd.f32 0.0, %v591
  %v593 = vpop.f32.mrb[0].mxu0
  %594 = vmatprep.mubr.bf16.mxu0 0
  %595 = vmatmul.mubr.bf16.gmra.mrb[0].mxu0 %v254
  %v596 = vpop.f32.mrb[0].mxu0
  %v597 = vadd.f32 0.0, %v596
  %v598 = vpop.f32.mrb[0].mxu0
  %v599 = vpop.f32.mrb[0].mxu0
  %v600 = vadd.f32 0.0, %v599
  %v601 = vpop.f32.mrb[0].mxu0
  %602 = vmatprep.mubr.bf16.mxu0 0
  %603 = vmatmul.mubr.bf16.gmra.mrb[0].mxu0 %v255
  %v604 = vpop.f32.mrb[0].mxu0
  %v605 = vadd.f32 0.0, %v604
  %v606 = vpop.f32.mrb[0].mxu0
  %v607 = vpop.f32.mrb[0].mxu0
  %v608 = vadd.f32 0.0, %v607
  %v609 = vpop.f32.mrb[0].mxu0
  %610 = vmatprep.mubr.bf16.mxu0 0
  %611 = vmatmul.mubr.bf16.gmra.mrb[0].mxu0 %v256
  %v612 = vpop.f32.mrb[0].mxu0
  %v613 = vadd.f32 0.0, %v612
  %v614 = vpop.f32.mrb[0].mxu0
  %v615 = vpop.f32.mrb[0].mxu0
  %v616 = vadd.f32 0.0, %v615
  %v617 = vpop.f32.mrb[0].mxu0
  %618 = vmatprep.mubr.bf16.mxu0 0
  %619 = vmatmul.mubr.bf16.gmra.mrb[0].mxu0 %v257
  %v620 = vpop.f32.mrb[0].mxu0
  %v621 = vadd.f32 0.0, %v620
  %v622 = vpop.f32.mrb[0].mxu0
  %v623 = vpop.f32.mrb[0].mxu0
  %v624 = vadd.f32 0.0, %v623
  %v625 = vpop.f32.mrb[0].mxu0
  %626 = vdwg.mxu0
  %v627 = vadd.f32 %v373, %v376
  %v628 = vadd.f32 %v627, %v381
  %v629 = vadd.f32 %v628, %v384
  %v630 = vadd.f32 %v629, %v389
  %v631 = vadd.f32 %v630, %v392
  %v632 = vadd.f32 %v631, %v397
  %v633 = vadd.f32 %v632, %v400
  %v634 = vadd.f32 %v633, %v405
  %v635 = vadd.f32 %v634, %v408
  %v636 = vadd.f32 %v635, %v413
  %v637 = vadd.f32 %v636, %v416
  %v638 = vadd.f32 %v637, %v421
  %v639 = vadd.f32 %v638, %v424
  %v640 = vadd.f32 %v639, %v429
  %v641 = vadd.f32 %v640, %v432
  %v642 = vadd.f32 %v641, %v437
  %v643 = vadd.f32 %v642, %v440
  %v644 = vadd.f32 %v643, %v445
  %v645 = vadd.f32 %v644, %v448
  %v646 = vadd.f32 %v645, %v453
  %v647 = vadd.f32 %v646, %v456
  %v648 = vadd.f32 %v647, %v461
  %v649 = vadd.f32 %v648, %v464
  %v650 = vadd.f32 %v649, %v469
  %v651 = vadd.f32 %v650, %v472
  %v652 = vadd.f32 %v651, %v477
  %v653 = vadd.f32 %v652, %v480
  %v654 = vadd.f32 %v653, %v485
  %v655 = vadd.f32 %v654, %v488
  %v656 = vadd.f32 %v655, %v493
  %v657 = vadd.f32 %v656, %v496
  %v658 = vadd.f32 %v657, %v501
  %v659 = vadd.f32 %v658, %v504
  %v660 = vadd.f32 %v659, %v509
  %v661 = vadd.f32 %v660, %v512
  %v662 = vadd.f32 %v661, %v517
  %v663 = vadd.f32 %v662, %v520
  %v664 = vadd.f32 %v663, %v525
  %v665 = vadd.f32 %v664, %v528
  %v666 = vadd.f32 %v665, %v533
  %v667 = vadd.f32 %v666, %v536
  %v668 = vadd.f32 %v667, %v541
  %v669 = vadd.f32 %v668, %v544
  %v670 = vadd.f32 %v669, %v549
  %v671 = vadd.f32 %v670, %v552
  %v672 = vadd.f32 %v671, %v557
  %v673 = vadd.f32 %v672, %v560
  %v674 = vadd.f32 %v673, %v565
  %v675 = vadd.f32 %v674, %v568
  %v676 = vadd.f32 %v675, %v573
  %v677 = vadd.f32 %v676, %v576
  %v678 = vadd.f32 %v677, %v581
  %v679 = vadd.f32 %v678, %v584
  %v680 = vadd.f32 %v679, %v589
  %v681 = vadd.f32 %v680, %v592
  %v682 = vadd.f32 %v681, %v597
  %v683 = vadd.f32 %v682, %v600
  %v684 = vadd.f32 %v683, %v605
  %v685 = vadd.f32 %v684, %v608
  %v686 = vadd.f32 %v685, %v613
  %v687 = vadd.f32 %v686, %v616
  %v688 = vadd.f32 %v687, %v621
  %v689 = vadd.f32 %v688, %v624
  %v690 = vrot.slane %v689, 4
  %v691 = vadd.f32 %v689, %v690
  %v692 = vrot.slane %v691, 2
  %v693 = vadd.f32 %v691, %v692
  %v694 = vrot.slane %v693, 1
  %v695 = vadd.f32 %v693, %v694
  %v696 = vmul.f32 %v695, 0.001953125
  %v697 = vsub.f32 %v373, %v696
  %v698 = vsub.f32 %v376, %v696
  %v699 = vsub.f32 %v381, %v696
  %v700 = vsub.f32 %v384, %v696
  %v701 = vsub.f32 %v389, %v696
  %v702 = vsub.f32 %v392, %v696
  %v703 = vsub.f32 %v397, %v696
  %v704 = vsub.f32 %v400, %v696
  %v705 = vsub.f32 %v405, %v696
  %v706 = vsub.f32 %v408, %v696
  %v707 = vsub.f32 %v413, %v696
  %v708 = vsub.f32 %v416, %v696
  %v709 = vsub.f32 %v421, %v696
  %v710 = vsub.f32 %v424, %v696
  %v711 = vsub.f32 %v429, %v696
  %v712 = vsub.f32 %v432, %v696
  %v713 = vsub.f32 %v437, %v696
  %v714 = vsub.f32 %v440, %v696
  %v715 = vsub.f32 %v445, %v696
  %v716 = vsub.f32 %v448, %v696
  %v717 = vsub.f32 %v453, %v696
  %v718 = vsub.f32 %v456, %v696
  %v719 = vsub.f32 %v461, %v696
  %v720 = vsub.f32 %v464, %v696
  %v721 = vsub.f32 %v469, %v696
  %v722 = vsub.f32 %v472, %v696
  %v723 = vsub.f32 %v477, %v696
  %v724 = vsub.f32 %v480, %v696
  %v725 = vsub.f32 %v485, %v696
  %v726 = vsub.f32 %v488, %v696
  %v727 = vsub.f32 %v493, %v696
  %v728 = vsub.f32 %v496, %v696
  %v729 = vsub.f32 %v501, %v696
  %v730 = vsub.f32 %v504, %v696
  %v731 = vsub.f32 %v509, %v696
  %v732 = vsub.f32 %v512, %v696
  %v733 = vsub.f32 %v517, %v696
  %v734 = vsub.f32 %v520, %v696
  %v735 = vsub.f32 %v525, %v696
  %v736 = vsub.f32 %v528, %v696
  %v737 = vsub.f32 %v533, %v696
  %v738 = vsub.f32 %v536, %v696
  %v739 = vsub.f32 %v541, %v696
  %v740 = vsub.f32 %v544, %v696
  %v741 = vsub.f32 %v549, %v696
  %v742 = vsub.f32 %v552, %v696
  %v743 = vsub.f32 %v557, %v696
  %v744 = vsub.f32 %v560, %v696
  %v745 = vsub.f32 %v565, %v696
  %v746 = vsub.f32 %v568, %v696
  %v747 = vsub.f32 %v573, %v696
  %v748 = vsub.f32 %v576, %v696
  %v749 = vsub.f32 %v581, %v696
  %v750 = vsub.f32 %v584, %v696
  %v751 = vsub.f32 %v589, %v696
  %v752 = vsub.f32 %v592, %v696
  %v753 = vsub.f32 %v597, %v696
  %v754 = vsub.f32 %v600, %v696
  %v755 = vsub.f32 %v605, %v696
  %v756 = vsub.f32 %v608, %v696
  %v757 = vsub.f32 %v613, %v696
  %v758 = vsub.f32 %v616, %v696
  %v759 = vsub.f32 %v621, %v696
  %v760 = vsub.f32 %v624, %v696
  %v761 = vmul.f32 %v697, %v697
  %v762 = vmul.f32 %v698, %v698
  %v763 = vmul.f32 %v699, %v699
  %v764 = vmul.f32 %v700, %v700
  %v765 = vmul.f32 %v701, %v701
  %v766 = vmul.f32 %v702, %v702
  %v767 = vmul.f32 %v703, %v703
  %v768 = vmul.f32 %v704, %v704
  %v769 = vmul.f32 %v705, %v705
  %v770 = vmul.f32 %v706, %v706
  %v771 = vmul.f32 %v707, %v707
  %v772 = vmul.f32 %v708, %v708
  %v773 = vmul.f32 %v709, %v709
  %v774 = vmul.f32 %v710, %v710
  %v775 = vmul.f32 %v711, %v711
  %v776 = vmul.f32 %v712, %v712
  %v777 = vmul.f32 %v713, %v713
  %v778 = vmul.f32 %v714, %v714
  %v779 = vmul.f32 %v715, %v715
  %v780 = vmul.f32 %v716, %v716
  %v781 = vmul.f32 %v717, %v717
  %v782 = vmul.f32 %v718, %v718
  %v783 = vmul.f32 %v719, %v719
  %v784 = vmul.f32 %v720, %v720
  %v785 = vmul.f32 %v721, %v721
  %v786 = vmul.f32 %v722, %v722
  %v787 = vmul.f32 %v723, %v723
  %v788 = vmul.f32 %v724, %v724
  %v789 = vmul.f32 %v725, %v725
  %v790 = vmul.f32 %v726, %v726
  %v791 = vmul.f32 %v727, %v727
  %v792 = vmul.f32 %v728, %v728
  %v793 = vmul.f32 %v729, %v729
  %v794 = vmul.f32 %v730, %v730
  %v795 = vmul.f32 %v731, %v731
  %v796 = vmul.f32 %v732, %v732
  %v797 = vmul.f32 %v733, %v733
  %v798 = vmul.f32 %v734, %v734
  %v799 = vmul.f32 %v735, %v735
  %v800 = vmul.f32 %v736, %v736
  %v801 = vmul.f32 %v737, %v737
  %v802 = vmul.f32 %v738, %v738
  %v803 = vmul.f32 %v739, %v739
  %v804 = vmul.f32 %v740, %v740
  %v805 = vmul.f32 %v741, %v741
  %v806 = vmul.f32 %v742, %v742
  %v807 = vmul.f32 %v743, %v743
  %v808 = vmul.f32 %v744, %v744
  %v809 = vmul.f32 %v745, %v745
  %v810 = vmul.f32 %v746, %v746
  %v811 = vmul.f32 %v747, %v747
  %v812 = vmul.f32 %v748, %v748
  %v813 = vmul.f32 %v749, %v749
  %v814 = vmul.f32 %v750, %v750
  %v815 = vmul.f32 %v751, %v751
  %v816 = vmul.f32 %v752, %v752
  %v817 = vmul.f32 %v753, %v753
  %v818 = vmul.f32 %v754, %v754
  %v819 = vmul.f32 %v755, %v755
  %v820 = vmul.f32 %v756, %v756
  %v821 = vmul.f32 %v757, %v757
  %v822 = vmul.f32 %v758, %v758
  %v823 = vmul.f32 %v759, %v759
  %v824 = vmul.f32 %v760, %v760
  %v825 = vadd.f32 %v761, %v762
  %v826 = vadd.f32 %v825, %v763
  %v827 = vadd.f32 %v826, %v764
  %v828 = vadd.f32 %v827, %v765
  %v829 = vadd.f32 %v828, %v766
  %v830 = vadd.f32 %v829, %v767
  %v831 = vadd.f32 %v830, %v768
  %v832 = vadd.f32 %v831, %v769
  %v833 = vadd.f32 %v832, %v770
  %v834 = vadd.f32 %v833, %v771
  %v835 = vadd.f32 %v834, %v772
  %v836 = vadd.f32 %v835, %v773
  %v837 = vadd.f32 %v836, %v774
  %v838 = vadd.f32 %v837, %v775
  %v839 = vadd.f32 %v838, %v776
  %v840 = vadd.f32 %v839, %v777
  %v841 = vadd.f32 %v840, %v778
  %v842 = vadd.f32 %v841, %v779
  %v843 = vadd.f32 %v842, %v780
  %v844 = vadd.f32 %v843, %v781
  %v845 = vadd.f32 %v844, %v782
  %v846 = vadd.f32 %v845, %v783
  %v847 = vadd.f32 %v846, %v784
  %v848 = vadd.f32 %v847, %v785
  %v849 = vadd.f32 %v848, %v786
  %v850 = vadd.f32 %v849, %v787
  %v851 = vadd.f32 %v850, %v788
  %v852 = vadd.f32 %v851, %v789
  %v853 = vadd.f32 %v852, %v790
  %v854 = vadd.f32 %v853, %v791
  %v855 = vadd.f32 %v854, %v792
  %v856 = vadd.f32 %v855, %v793
  %v857 = vadd.f32 %v856, %v794
  %v858 = vadd.f32 %v857, %v795
  %v859 = vadd.f32 %v858, %v796
  %v860 = vadd.f32 %v859, %v797
  %v861 = vadd.f32 %v860, %v798
  %v862 = vadd.f32 %v861, %v799
  %v863 = vadd.f32 %v862, %v800
  %v864 = vadd.f32 %v863, %v801
  %v865 = vadd.f32 %v864, %v802
  %v866 = vadd.f32 %v865, %v803
  %v867 = vadd.f32 %v866, %v804
  %v868 = vadd.f32 %v867, %v805
  %v869 = vadd.f32 %v868, %v806
  %v870 = vadd.f32 %v869, %v807
  %v871 = vadd.f32 %v870, %v808
  %v872 = vadd.f32 %v871, %v809
  %v873 = vadd.f32 %v872, %v810
  %v874 = vadd.f32 %v873, %v811
  %v875 = vadd.f32 %v874, %v812
  %v876 = vadd.f32 %v875, %v813
  %v877 = vadd.f32 %v876, %v814
  %v878 = vadd.f32 %v877, %v815
  %v879 = vadd.f32 %v878, %v816
  %v880 = vadd.f32 %v879, %v817
  %v881 = vadd.f32 %v880, %v818
  %v882 = vadd.f32 %v881, %v819
  %v883 = vadd.f32 %v882, %v820
  %v884 = vadd.f32 %v883, %v821
  %v885 = vadd.f32 %v884, %v822
  %v886 = vadd.f32 %v885, %v823
  %v887 = vadd.f32 %v886, %v824
  %v888 = vrot.slane %v887, 4
  %v889 = vadd.f32 %v887, %v888
  %v890 = vrot.slane %v889, 2
  %v891 = vadd.f32 %v889, %v890
  %v892 = vrot.slane %v891, 1
  %v893 = vadd.f32 %v891, %v892
  %v894 = vmul.f32 %v893, 0.001953125
  %v895 = vadd.f32 %v894, 1e-05
  %v896 = vrsqrt.pop %v895
  %v897 = vmul.f32 %v697, %v896
  %v898 = vmul.f32 %v698, %v896
  %v899 = vmul.f32 %v699, %v896
  %v900 = vmul.f32 %v700, %v896
  %v901 = vmul.f32 %v701, %v896
  %v902 = vmul.f32 %v702, %v896
  %v903 = vmul.f32 %v703, %v896
  %v904 = vmul.f32 %v704, %v896
  %v905 = vmul.f32 %v705, %v896
  %v906 = vmul.f32 %v706, %v896
  %v907 = vmul.f32 %v707, %v896
  %v908 = vmul.f32 %v708, %v896
  %v909 = vmul.f32 %v709, %v896
  %v910 = vmul.f32 %v710, %v896
  %v911 = vmul.f32 %v711, %v896
  %v912 = vmul.f32 %v712, %v896
  %v913 = vmul.f32 %v713, %v896
  %v914 = vmul.f32 %v714, %v896
  %v915 = vmul.f32 %v715, %v896
  %v916 = vmul.f32 %v716, %v896
  %v917 = vmul.f32 %v717, %v896
  %v918 = vmul.f32 %v718, %v896
  %v919 = vmul.f32 %v719, %v896
  %v920 = vmul.f32 %v720, %v896
  %v921 = vmul.f32 %v721, %v896
  %v922 = vmul.f32 %v722, %v896
  %v923 = vmul.f32 %v723, %v896
  %v924 = vmul.f32 %v724, %v896
  %v925 = vmul.f32 %v725, %v896
  %v926 = vmul.f32 %v726, %v896
  %v927 = vmul.f32 %v727, %v896
  %v928 = vmul.f32 %v728, %v896
  %v929 = vmul.f32 %v729, %v896
  %v930 = vmul.f32 %v730, %v896
  %v931 = vmul.f32 %v731, %v896
  %v932 = vmul.f32 %v732, %v896
  %v933 = vmul.f32 %v733, %v896
  %v934 = vmul.f32 %v734, %v896
  %v935 = vmul.f32 %v735, %v896
  %v936 = vmul.f32 %v736, %v896
  %v937 = vmul.f32 %v737, %v896
  %v938 = vmul.f32 %v738, %v896
  %v939 = vmul.f32 %v739, %v896
  %v940 = vmul.f32 %v740, %v896
  %v941 = vmul.f32 %v741, %v896
  %v942 = vmul.f32 %v742, %v896
  %v943 = vmul.f32 %v743, %v896
  %v944 = vmul.f32 %v744, %v896
  %v945 = vmul.f32 %v745, %v896
  %v946 = vmul.f32 %v746, %v896
  %v947 = vmul.f32 %v747, %v896
  %v948 = vmul.f32 %v748, %v896
  %v949 = vmul.f32 %v749, %v896
  %v950 = vmul.f32 %v750, %v896
  %v951 = vmul.f32 %v751, %v896
  %v952 = vmul.f32 %v752, %v896
  %v953 = vmul.f32 %v753, %v896
  %v954 = vmul.f32 %v754, %v896
  %v955 = vmul.f32 %v755, %v896
  %v956 = vmul.f32 %v756, %v896
  %v957 = vmul.f32 %v757, %v896
  %v958 = vmul.f32 %v758, %v896
  %v959 = vmul.f32 %v759, %v896
  %v960 = vmul.f32 %v760, %v896
  %v961 = vld [vmem:[%s2] sm:$0x1]
  %v963 = vlaneseq
  %v964 = vshrl.u32 %v963, 7
  %v965 = vsub.s32 0, %v964
  %v966 = vrot.slane %v961, %v965
  %v968 = vmul.f32 %v897, %v966
  %v969 = vmul.f32 %v898, %v966
  %v970 = vmul.f32 %v899, %v966
  %v971 = vmul.f32 %v900, %v966
  %v972 = vmul.f32 %v901, %v966
  %v973 = vmul.f32 %v902, %v966
  %v974 = vmul.f32 %v903, %v966
  %v975 = vmul.f32 %v904, %v966
  %v976 = vmul.f32 %v905, %v966
  %v977 = vmul.f32 %v906, %v966
  %v978 = vmul.f32 %v907, %v966
  %v979 = vmul.f32 %v908, %v966
  %v980 = vmul.f32 %v909, %v966
  %v981 = vmul.f32 %v910, %v966
  %v982 = vmul.f32 %v911, %v966
  %v983 = vmul.f32 %v912, %v966
  %v984 = vmul.f32 %v913, %v966
  %v985 = vmul.f32 %v914, %v966
  %v986 = vmul.f32 %v915, %v966
  %v987 = vmul.f32 %v916, %v966
  %v988 = vmul.f32 %v917, %v966
  %v989 = vmul.f32 %v918, %v966
  %v990 = vmul.f32 %v919, %v966
  %v991 = vmul.f32 %v920, %v966
  %v992 = vmul.f32 %v921, %v966
  %v993 = vmul.f32 %v922, %v966
  %v994 = vmul.f32 %v923, %v966
  %v995 = vmul.f32 %v924, %v966
  %v996 = vmul.f32 %v925, %v966
  %v997 = vmul.f32 %v926, %v966
  %v998 = vmul.f32 %v927, %v966
  %v999 = vmul.f32 %v928, %v966
  %v1000 = vmul.f32 %v929, %v966
  %v1001 = vmul.f32 %v930, %v966
  %v1002 = vmul.f32 %v931, %v966
  %v1003 = vmul.f32 %v932, %v966
  %v1004 = vmul.f32 %v933, %v966
  %v1005 = vmul.f32 %v934, %v966
  %v1006 = vmul.f32 %v935, %v966
  %v1007 = vmul.f32 %v936, %v966
  %v1008 = vmul.f32 %v937, %v966
  %v1009 = vmul.f32 %v938, %v966
  %v1010 = vmul.f32 %v939, %v966
  %v1011 = vmul.f32 %v940, %v966
  %v1012 = vmul.f32 %v941, %v966
  %v1013 = vmul.f32 %v942, %v966
  %v1014 = vmul.f32 %v943, %v966
  %v1015 = vmul.f32 %v944, %v966
  %v1016 = vmul.f32 %v945, %v966
  %v1017 = vmul.f32 %v946, %v966
  %v1018 = vmul.f32 %v947, %v966
  %v1019 = vmul.f32 %v948, %v966
  %v1020 = vmul.f32 %v949, %v966
  %v1021 = vmul.f32 %v950, %v966
  %v1022 = vmul.f32 %v951, %v966
  %v1023 = vmul.f32 %v952, %v966
  %v1024 = vmul.f32 %v953, %v966
  %v1025 = vmul.f32 %v954, %v966
  %v1026 = vmul.f32 %v955, %v966
  %v1027 = vmul.f32 %v956, %v966
  %v1028 = vmul.f32 %v957, %v966
  %v1029 = vmul.f32 %v958, %v966
  %v1030 = vmul.f32 %v959, %v966
  %v1031 = vmul.f32 %v960, %v966
  %v1032 = vld [vmem:[%s3] sm:$0x1]
  %v1034 = vlaneseq
  %v1035 = vshrl.u32 %v1034, 7
  %v1036 = vsub.s32 0, %v1035
  %v1037 = vrot.slane %v1032, %v1036
  %v1039 = vadd.f32 %v968, %v1037
  %v1040 = vadd.f32 %v969, %v1037
  %v1041 = vadd.f32 %v970, %v1037
  %v1042 = vadd.f32 %v971, %v1037
  %v1043 = vadd.f32 %v972, %v1037
  %v1044 = vadd.f32 %v973, %v1037
  %v1045 = vadd.f32 %v974, %v1037
  %v1046 = vadd.f32 %v975, %v1037
  %v1047 = vadd.f32 %v976, %v1037
  %v1048 = vadd.f32 %v977, %v1037
  %v1049 = vadd.f32 %v978, %v1037
  %v1050 = vadd.f32 %v979, %v1037
  %v1051 = vadd.f32 %v980, %v1037
  %v1052 = vadd.f32 %v981, %v1037
  %v1053 = vadd.f32 %v982, %v1037
  %v1054 = vadd.f32 %v983, %v1037
  %v1055 = vadd.f32 %v984, %v1037
  %v1056 = vadd.f32 %v985, %v1037
  %v1057 = vadd.f32 %v986, %v1037
  %v1058 = vadd.f32 %v987, %v1037
  %v1059 = vadd.f32 %v988, %v1037
  %v1060 = vadd.f32 %v989, %v1037
  %v1061 = vadd.f32 %v990, %v1037
  %v1062 = vadd.f32 %v991, %v1037
  %v1063 = vadd.f32 %v992, %v1037
  %v1064 = vadd.f32 %v993, %v1037
  %v1065 = vadd.f32 %v994, %v1037
  %v1066 = vadd.f32 %v995, %v1037
  %v1067 = vadd.f32 %v996, %v1037
  %v1068 = vadd.f32 %v997, %v1037
  %v1069 = vadd.f32 %v998, %v1037
  %v1070 = vadd.f32 %v999, %v1037
  %v1071 = vadd.f32 %v1000, %v1037
  %v1072 = vadd.f32 %v1001, %v1037
  %v1073 = vadd.f32 %v1002, %v1037
  %v1074 = vadd.f32 %v1003, %v1037
  %v1075 = vadd.f32 %v1004, %v1037
  %v1076 = vadd.f32 %v1005, %v1037
  %v1077 = vadd.f32 %v1006, %v1037
  %v1078 = vadd.f32 %v1007, %v1037
  %v1079 = vadd.f32 %v1008, %v1037
  %v1080 = vadd.f32 %v1009, %v1037
  %v1081 = vadd.f32 %v1010, %v1037
  %v1082 = vadd.f32 %v1011, %v1037
  %v1083 = vadd.f32 %v1012, %v1037
  %v1084 = vadd.f32 %v1013, %v1037
  %v1085 = vadd.f32 %v1014, %v1037
  %v1086 = vadd.f32 %v1015, %v1037
  %v1087 = vadd.f32 %v1016, %v1037
  %v1088 = vadd.f32 %v1017, %v1037
  %v1089 = vadd.f32 %v1018, %v1037
  %v1090 = vadd.f32 %v1019, %v1037
  %v1091 = vadd.f32 %v1020, %v1037
  %v1092 = vadd.f32 %v1021, %v1037
  %v1093 = vadd.f32 %v1022, %v1037
  %v1094 = vadd.f32 %v1023, %v1037
  %v1095 = vadd.f32 %v1024, %v1037
  %v1096 = vadd.f32 %v1025, %v1037
  %v1097 = vadd.f32 %v1026, %v1037
  %v1098 = vadd.f32 %v1027, %v1037
  %v1099 = vadd.f32 %v1028, %v1037
  %v1100 = vadd.f32 %v1029, %v1037
  %v1101 = vadd.f32 %v1030, %v1037
  %v1102 = vadd.f32 %v1031, %v1037
  %vm1103 = vcmp.gt.f32.partialorder %v1039, 0.0
  %vm1104 = vcmp.gt.f32.partialorder %v1040, 0.0
  %vm1105 = vcmp.gt.f32.partialorder %v1041, 0.0
  %vm1106 = vcmp.gt.f32.partialorder %v1042, 0.0
  %vm1107 = vcmp.gt.f32.partialorder %v1043, 0.0
  %vm1108 = vcmp.gt.f32.partialorder %v1044, 0.0
  %vm1109 = vcmp.gt.f32.partialorder %v1045, 0.0
  %vm1110 = vcmp.gt.f32.partialorder %v1046, 0.0
  %vm1111 = vcmp.gt.f32.partialorder %v1047, 0.0
  %vm1112 = vcmp.gt.f32.partialorder %v1048, 0.0
  %vm1113 = vcmp.gt.f32.partialorder %v1049, 0.0
  %vm1114 = vcmp.gt.f32.partialorder %v1050, 0.0
  %vm1115 = vcmp.gt.f32.partialorder %v1051, 0.0
  %vm1116 = vcmp.gt.f32.partialorder %v1052, 0.0
  %vm1117 = vcmp.gt.f32.partialorder %v1053, 0.0
  %vm1118 = vcmp.gt.f32.partialorder %v1054, 0.0
  %vm1119 = vcmp.gt.f32.partialorder %v1055, 0.0
  %vm1120 = vcmp.gt.f32.partialorder %v1056, 0.0
  %vm1121 = vcmp.gt.f32.partialorder %v1057, 0.0
  %vm1122 = vcmp.gt.f32.partialorder %v1058, 0.0
  %vm1123 = vcmp.gt.f32.partialorder %v1059, 0.0
  %vm1124 = vcmp.gt.f32.partialorder %v1060, 0.0
  %vm1125 = vcmp.gt.f32.partialorder %v1061, 0.0
  %vm1126 = vcmp.gt.f32.partialorder %v1062, 0.0
  %vm1127 = vcmp.gt.f32.partialorder %v1063, 0.0
  %vm1128 = vcmp.gt.f32.partialorder %v1064, 0.0
  %vm1129 = vcmp.gt.f32.partialorder %v1065, 0.0
  %vm1130 = vcmp.gt.f32.partialorder %v1066, 0.0
  %vm1131 = vcmp.gt.f32.partialorder %v1067, 0.0
  %vm1132 = vcmp.gt.f32.partialorder %v1068, 0.0
  %vm1133 = vcmp.gt.f32.partialorder %v1069, 0.0
  %vm1134 = vcmp.gt.f32.partialorder %v1070, 0.0
  %vm1135 = vcmp.gt.f32.partialorder %v1071, 0.0
  %vm1136 = vcmp.gt.f32.partialorder %v1072, 0.0
  %vm1137 = vcmp.gt.f32.partialorder %v1073, 0.0
  %vm1138 = vcmp.gt.f32.partialorder %v1074, 0.0
  %vm1139 = vcmp.gt.f32.partialorder %v1075, 0.0
  %vm1140 = vcmp.gt.f32.partialorder %v1076, 0.0
  %vm1141 = vcmp.gt.f32.partialorder %v1077, 0.0
  %vm1142 = vcmp.gt.f32.partialorder %v1078, 0.0
  %vm1143 = vcmp.gt.f32.partialorder %v1079, 0.0
  %vm1144 = vcmp.gt.f32.partialorder %v1080, 0.0
  %vm1145 = vcmp.gt.f32.partialorder %v1081, 0.0
  %vm1146 = vcmp.gt.f32.partialorder %v1082, 0.0
  %vm1147 = vcmp.gt.f32.partialorder %v1083, 0.0
  %vm1148 = vcmp.gt.f32.partialorder %v1084, 0.0
  %vm1149 = vcmp.gt.f32.partialorder %v1085, 0.0
  %vm1150 = vcmp.gt.f32.partialorder %v1086, 0.0
  %vm1151 = vcmp.gt.f32.partialorder %v1087, 0.0
  %vm1152 = vcmp.gt.f32.partialorder %v1088, 0.0
  %vm1153 = vcmp.gt.f32.partialorder %v1089, 0.0
  %vm1154 = vcmp.gt.f32.partialorder %v1090, 0.0
  %vm1155 = vcmp.gt.f32.partialorder %v1091, 0.0
  %vm1156 = vcmp.gt.f32.partialorder %v1092, 0.0
  %vm1157 = vcmp.gt.f32.partialorder %v1093, 0.0
  %vm1158 = vcmp.gt.f32.partialorder %v1094, 0.0
  %vm1159 = vcmp.gt.f32.partialorder %v1095, 0.0
  %vm1160 = vcmp.gt.f32.partialorder %v1096, 0.0
  %vm1161 = vcmp.gt.f32.partialorder %v1097, 0.0
  %vm1162 = vcmp.gt.f32.partialorder %v1098, 0.0
  %vm1163 = vcmp.gt.f32.partialorder %v1099, 0.0
  %vm1164 = vcmp.gt.f32.partialorder %v1100, 0.0
  %vm1165 = vcmp.gt.f32.partialorder %v1101, 0.0
  %vm1166 = vcmp.gt.f32.partialorder %v1102, 0.0
  %v1167 = vmul.f32 %v1039, 0.2
  %v1168 = vmul.f32 %v1040, 0.2
  %v1169 = vmul.f32 %v1041, 0.2
  %v1170 = vmul.f32 %v1042, 0.2
  %v1171 = vmul.f32 %v1043, 0.2
  %v1172 = vmul.f32 %v1044, 0.2
  %v1173 = vmul.f32 %v1045, 0.2
  %v1174 = vmul.f32 %v1046, 0.2
  %v1175 = vmul.f32 %v1047, 0.2
  %v1176 = vmul.f32 %v1048, 0.2
  %v1177 = vmul.f32 %v1049, 0.2
  %v1178 = vmul.f32 %v1050, 0.2
  %v1179 = vmul.f32 %v1051, 0.2
  %v1180 = vmul.f32 %v1052, 0.2
  %v1181 = vmul.f32 %v1053, 0.2
  %v1182 = vmul.f32 %v1054, 0.2
  %v1183 = vmul.f32 %v1055, 0.2
  %v1184 = vmul.f32 %v1056, 0.2
  %v1185 = vmul.f32 %v1057, 0.2
  %v1186 = vmul.f32 %v1058, 0.2
  %v1187 = vmul.f32 %v1059, 0.2
  %v1188 = vmul.f32 %v1060, 0.2
  %v1189 = vmul.f32 %v1061, 0.2
  %v1190 = vmul.f32 %v1062, 0.2
  %v1191 = vmul.f32 %v1063, 0.2
  %v1192 = vmul.f32 %v1064, 0.2
  %v1193 = vmul.f32 %v1065, 0.2
  %v1194 = vmul.f32 %v1066, 0.2
  %v1195 = vmul.f32 %v1067, 0.2
  %v1196 = vmul.f32 %v1068, 0.2
  %v1197 = vmul.f32 %v1069, 0.2
  %v1198 = vmul.f32 %v1070, 0.2
  %v1199 = vmul.f32 %v1071, 0.2
  %v1200 = vmul.f32 %v1072, 0.2
  %v1201 = vmul.f32 %v1073, 0.2
  %v1202 = vmul.f32 %v1074, 0.2
  %v1203 = vmul.f32 %v1075, 0.2
  %v1204 = vmul.f32 %v1076, 0.2
  %v1205 = vmul.f32 %v1077, 0.2
  %v1206 = vmul.f32 %v1078, 0.2
  %v1207 = vmul.f32 %v1079, 0.2
  %v1208 = vmul.f32 %v1080, 0.2
  %v1209 = vmul.f32 %v1081, 0.2
  %v1210 = vmul.f32 %v1082, 0.2
  %v1211 = vmul.f32 %v1083, 0.2
  %v1212 = vmul.f32 %v1084, 0.2
  %v1213 = vmul.f32 %v1085, 0.2
  %v1214 = vmul.f32 %v1086, 0.2
  %v1215 = vmul.f32 %v1087, 0.2
  %v1216 = vmul.f32 %v1088, 0.2
  %v1217 = vmul.f32 %v1089, 0.2
  %v1218 = vmul.f32 %v1090, 0.2
  %v1219 = vmul.f32 %v1091, 0.2
  %v1220 = vmul.f32 %v1092, 0.2
  %v1221 = vmul.f32 %v1093, 0.2
  %v1222 = vmul.f32 %v1094, 0.2
  %v1223 = vmul.f32 %v1095, 0.2
  %v1224 = vmul.f32 %v1096, 0.2
  %v1225 = vmul.f32 %v1097, 0.2
  %v1226 = vmul.f32 %v1098, 0.2
  %v1227 = vmul.f32 %v1099, 0.2
  %v1228 = vmul.f32 %v1100, 0.2
  %v1229 = vmul.f32 %v1101, 0.2
  %v1230 = vmul.f32 %v1102, 0.2
  %v1231 = vsel %vm1103, %v1039, %v1167
  %v1232 = vsel %vm1104, %v1040, %v1168
  %v1233 = vsel %vm1105, %v1041, %v1169
  %v1234 = vsel %vm1106, %v1042, %v1170
  %v1235 = vsel %vm1107, %v1043, %v1171
  %v1236 = vsel %vm1108, %v1044, %v1172
  %v1237 = vsel %vm1109, %v1045, %v1173
  %v1238 = vsel %vm1110, %v1046, %v1174
  %v1239 = vsel %vm1111, %v1047, %v1175
  %v1240 = vsel %vm1112, %v1048, %v1176
  %v1241 = vsel %vm1113, %v1049, %v1177
  %v1242 = vsel %vm1114, %v1050, %v1178
  %v1243 = vsel %vm1115, %v1051, %v1179
  %v1244 = vsel %vm1116, %v1052, %v1180
  %v1245 = vsel %vm1117, %v1053, %v1181
  %v1246 = vsel %vm1118, %v1054, %v1182
  %v1247 = vsel %vm1119, %v1055, %v1183
  %v1248 = vsel %vm1120, %v1056, %v1184
  %v1249 = vsel %vm1121, %v1057, %v1185
  %v1250 = vsel %vm1122, %v1058, %v1186
  %v1251 = vsel %vm1123, %v1059, %v1187
  %v1252 = vsel %vm1124, %v1060, %v1188
  %v1253 = vsel %vm1125, %v1061, %v1189
  %v1254 = vsel %vm1126, %v1062, %v1190
  %v1255 = vsel %vm1127, %v1063, %v1191
  %v1256 = vsel %vm1128, %v1064, %v1192
  %v1257 = vsel %vm1129, %v1065, %v1193
  %v1258 = vsel %vm1130, %v1066, %v1194
  %v1259 = vsel %vm1131, %v1067, %v1195
  %v1260 = vsel %vm1132, %v1068, %v1196
  %v1261 = vsel %vm1133, %v1069, %v1197
  %v1262 = vsel %vm1134, %v1070, %v1198
  %v1263 = vsel %vm1135, %v1071, %v1199
  %v1264 = vsel %vm1136, %v1072, %v1200
  %v1265 = vsel %vm1137, %v1073, %v1201
  %v1266 = vsel %vm1138, %v1074, %v1202
  %v1267 = vsel %vm1139, %v1075, %v1203
  %v1268 = vsel %vm1140, %v1076, %v1204
  %v1269 = vsel %vm1141, %v1077, %v1205
  %v1270 = vsel %vm1142, %v1078, %v1206
  %v1271 = vsel %vm1143, %v1079, %v1207
  %v1272 = vsel %vm1144, %v1080, %v1208
  %v1273 = vsel %vm1145, %v1081, %v1209
  %v1274 = vsel %vm1146, %v1082, %v1210
  %v1275 = vsel %vm1147, %v1083, %v1211
  %v1276 = vsel %vm1148, %v1084, %v1212
  %v1277 = vsel %vm1149, %v1085, %v1213
  %v1278 = vsel %vm1150, %v1086, %v1214
  %v1279 = vsel %vm1151, %v1087, %v1215
  %v1280 = vsel %vm1152, %v1088, %v1216
  %v1281 = vsel %vm1153, %v1089, %v1217
  %v1282 = vsel %vm1154, %v1090, %v1218
  %v1283 = vsel %vm1155, %v1091, %v1219
  %v1284 = vsel %vm1156, %v1092, %v1220
  %v1285 = vsel %vm1157, %v1093, %v1221
  %v1286 = vsel %vm1158, %v1094, %v1222
  %v1287 = vsel %vm1159, %v1095, %v1223
  %v1288 = vsel %vm1160, %v1096, %v1224
  %v1289 = vsel %vm1161, %v1097, %v1225
  %v1290 = vsel %vm1162, %v1098, %v1226
  %v1291 = vsel %vm1163, %v1099, %v1227
  %v1292 = vsel %vm1164, %v1100, %v1228
  %v1293 = vsel %vm1165, %v1101, %v1229
  %v1294 = vsel %vm1166, %v1102, %v1230
  %v1295 = vpack.c.bf16 %v1232, %v1231
  %v1296 = vpack.c.bf16 %v1234, %v1233
  %v1297 = vpack.c.bf16 %v1236, %v1235
  %v1298 = vpack.c.bf16 %v1238, %v1237
  %v1299 = vpack.c.bf16 %v1240, %v1239
  %v1300 = vpack.c.bf16 %v1242, %v1241
  %v1301 = vpack.c.bf16 %v1244, %v1243
  %v1302 = vpack.c.bf16 %v1246, %v1245
  %v1303 = vpack.c.bf16 %v1248, %v1247
  %v1304 = vpack.c.bf16 %v1250, %v1249
  %v1305 = vpack.c.bf16 %v1252, %v1251
  %v1306 = vpack.c.bf16 %v1254, %v1253
  %v1307 = vpack.c.bf16 %v1256, %v1255
  %v1308 = vpack.c.bf16 %v1258, %v1257
  %v1309 = vpack.c.bf16 %v1260, %v1259
  %v1310 = vpack.c.bf16 %v1262, %v1261
  %v1311 = vpack.c.bf16 %v1264, %v1263
  %v1312 = vpack.c.bf16 %v1266, %v1265
  %v1313 = vpack.c.bf16 %v1268, %v1267
  %v1314 = vpack.c.bf16 %v1270, %v1269
  %v1315 = vpack.c.bf16 %v1272, %v1271
  %v1316 = vpack.c.bf16 %v1274, %v1273
  %v1317 = vpack.c.bf16 %v1276, %v1275
  %v1318 = vpack.c.bf16 %v1278, %v1277
  %v1319 = vpack.c.bf16 %v1280, %v1279
  %v1320 = vpack.c.bf16 %v1282, %v1281
  %v1321 = vpack.c.bf16 %v1284, %v1283
  %v1322 = vpack.c.bf16 %v1286, %v1285
  %v1323 = vpack.c.bf16 %v1288, %v1287
  %v1324 = vpack.c.bf16 %v1290, %v1289
  %v1325 = vpack.c.bf16 %v1292, %v1291
  %v1326 = vpack.c.bf16 %v1294, %v1293
  %v1359 = vunpack.c.l.b16 %v1295
  %v1360 = vunpack.c.h.b16 %v1295
  %v1361 = vunpack.c.l.b16 %v1296
  %v1362 = vunpack.c.h.b16 %v1296
  %v1363 = vunpack.c.l.b16 %v1297
  %v1364 = vunpack.c.h.b16 %v1297
  %v1365 = vunpack.c.l.b16 %v1298
  %v1366 = vunpack.c.h.b16 %v1298
  %v1367 = vunpack.c.l.b16 %v1299
  %v1368 = vunpack.c.h.b16 %v1299
  %v1369 = vunpack.c.l.b16 %v1300
  %v1370 = vunpack.c.h.b16 %v1300
  %v1371 = vunpack.c.l.b16 %v1301
  %v1372 = vunpack.c.h.b16 %v1301
  %v1373 = vunpack.c.l.b16 %v1302
  %v1374 = vunpack.c.h.b16 %v1302
  %v1375 = vunpack.c.l.b16 %v1303
  %v1376 = vunpack.c.h.b16 %v1303
  %v1377 = vunpack.c.l.b16 %v1304
  %v1378 = vunpack.c.h.b16 %v1304
  %v1379 = vunpack.c.l.b16 %v1305
  %v1380 = vunpack.c.h.b16 %v1305
  %v1381 = vunpack.c.l.b16 %v1306
  %v1382 = vunpack.c.h.b16 %v1306
  %v1383 = vunpack.c.l.b16 %v1307
  %v1384 = vunpack.c.h.b16 %v1307
  %v1385 = vunpack.c.l.b16 %v1308
  %v1386 = vunpack.c.h.b16 %v1308
  %v1387 = vunpack.c.l.b16 %v1309
  %v1388 = vunpack.c.h.b16 %v1309
  %v1389 = vunpack.c.l.b16 %v1310
  %v1390 = vunpack.c.h.b16 %v1310
  %v1391 = vunpack.c.l.b16 %v1311
  %v1392 = vunpack.c.h.b16 %v1311
  %v1393 = vunpack.c.l.b16 %v1312
  %v1394 = vunpack.c.h.b16 %v1312
  %v1395 = vunpack.c.l.b16 %v1313
  %v1396 = vunpack.c.h.b16 %v1313
  %v1397 = vunpack.c.l.b16 %v1314
  %v1398 = vunpack.c.h.b16 %v1314
  %v1399 = vunpack.c.l.b16 %v1315
  %v1400 = vunpack.c.h.b16 %v1315
  %v1401 = vunpack.c.l.b16 %v1316
  %v1402 = vunpack.c.h.b16 %v1316
  %v1403 = vunpack.c.l.b16 %v1317
  %v1404 = vunpack.c.h.b16 %v1317
  %v1405 = vunpack.c.l.b16 %v1318
  %v1406 = vunpack.c.h.b16 %v1318
  %v1407 = vunpack.c.l.b16 %v1319
  %v1408 = vunpack.c.h.b16 %v1319
  %v1409 = vunpack.c.l.b16 %v1320
  %v1410 = vunpack.c.h.b16 %v1320
  %v1411 = vunpack.c.l.b16 %v1321
  %v1412 = vunpack.c.h.b16 %v1321
  %v1413 = vunpack.c.l.b16 %v1322
  %v1414 = vunpack.c.h.b16 %v1322
  %v1415 = vunpack.c.l.b16 %v1323
  %v1416 = vunpack.c.h.b16 %v1323
  %v1417 = vunpack.c.l.b16 %v1324
  %v1418 = vunpack.c.h.b16 %v1324
  %v1419 = vunpack.c.l.b16 %v1325
  %v1420 = vunpack.c.h.b16 %v1325
  %v1421 = vunpack.c.l.b16 %v1326
  %v1422 = vunpack.c.h.b16 %v1326
  %v1423 = vpack.c.b16 %v1359, %v1359
  %v1424 = vpack.c.b16 %v1360, %v1360
  %v1425 = vpack.c.b16 %v1361, %v1361
  %v1426 = vpack.c.b16 %v1362, %v1362
  %v1427 = vpack.c.b16 %v1363, %v1363
  %v1428 = vpack.c.b16 %v1364, %v1364
  %v1429 = vpack.c.b16 %v1365, %v1365
  %v1430 = vpack.c.b16 %v1366, %v1366
  %v1431 = vpack.c.b16 %v1367, %v1367
  %v1432 = vpack.c.b16 %v1368, %v1368
  %v1433 = vpack.c.b16 %v1369, %v1369
  %v1434 = vpack.c.b16 %v1370, %v1370
  %v1435 = vpack.c.b16 %v1371, %v1371
  %v1436 = vpack.c.b16 %v1372, %v1372
  %v1437 = vpack.c.b16 %v1373, %v1373
  %v1438 = vpack.c.b16 %v1374, %v1374
  %v1439 = vpack.c.b16 %v1375, %v1375
  %v1440 = vpack.c.b16 %v1376, %v1376
  %v1441 = vpack.c.b16 %v1377, %v1377
  %v1442 = vpack.c.b16 %v1378, %v1378
  %v1443 = vpack.c.b16 %v1379, %v1379
  %v1444 = vpack.c.b16 %v1380, %v1380
  %v1445 = vpack.c.b16 %v1381, %v1381
  %v1446 = vpack.c.b16 %v1382, %v1382
  %v1447 = vpack.c.b16 %v1383, %v1383
  %v1448 = vpack.c.b16 %v1384, %v1384
  %v1449 = vpack.c.b16 %v1385, %v1385
  %v1450 = vpack.c.b16 %v1386, %v1386
  %v1451 = vpack.c.b16 %v1387, %v1387
  %v1452 = vpack.c.b16 %v1388, %v1388
  %v1453 = vpack.c.b16 %v1389, %v1389
  %v1454 = vpack.c.b16 %v1390, %v1390
  %v1455 = vpack.c.b16 %v1391, %v1391
  %v1456 = vpack.c.b16 %v1392, %v1392
  %v1457 = vpack.c.b16 %v1393, %v1393
  %v1458 = vpack.c.b16 %v1394, %v1394
  %v1459 = vpack.c.b16 %v1395, %v1395
  %v1460 = vpack.c.b16 %v1396, %v1396
  %v1461 = vpack.c.b16 %v1397, %v1397
  %v1462 = vpack.c.b16 %v1398, %v1398
  %v1463 = vpack.c.b16 %v1399, %v1399
  %v1464 = vpack.c.b16 %v1400, %v1400
  %v1465 = vpack.c.b16 %v1401, %v1401
  %v1466 = vpack.c.b16 %v1402, %v1402
  %v1467 = vpack.c.b16 %v1403, %v1403
  %v1468 = vpack.c.b16 %v1404, %v1404
  %v1469 = vpack.c.b16 %v1405, %v1405
  %v1470 = vpack.c.b16 %v1406, %v1406
  %v1471 = vpack.c.b16 %v1407, %v1407
  %v1472 = vpack.c.b16 %v1408, %v1408
  %v1473 = vpack.c.b16 %v1409, %v1409
  %v1474 = vpack.c.b16 %v1410, %v1410
  %v1475 = vpack.c.b16 %v1411, %v1411
  %v1476 = vpack.c.b16 %v1412, %v1412
  %v1477 = vpack.c.b16 %v1413, %v1413
  %v1478 = vpack.c.b16 %v1414, %v1414
  %v1479 = vpack.c.b16 %v1415, %v1415
  %v1480 = vpack.c.b16 %v1416, %v1416
  %v1481 = vpack.c.b16 %v1417, %v1417
  %v1482 = vpack.c.b16 %v1418, %v1418
  %v1483 = vpack.c.b16 %v1419, %v1419
  %v1484 = vpack.c.b16 %v1420, %v1420
  %v1485 = vpack.c.b16 %v1421, %v1421
  %v1486 = vpack.c.b16 %v1422, %v1422
  %1551 = vst [vmem:[%s4] sm:$0xf] %v1423
  %1552 = vst [vmem:[%s4 + $0x4] sm:$0xf] %v1424
  %1553 = vst [vmem:[%s4 + $0x8] sm:$0xf] %v1425
  %1554 = vst [vmem:[%s4 + $0xc] sm:$0xf] %v1426
  %1555 = vst [vmem:[%s4 + $0x10] sm:$0xf] %v1427
  %1556 = vst [vmem:[%s4 + $0x14] sm:$0xf] %v1428
  %1557 = vst [vmem:[%s4 + $0x18] sm:$0xf] %v1429
  %1558 = vst [vmem:[%s4 + $0x1c] sm:$0xf] %v1430
  %1559 = vst [vmem:[%s4 + $0x20] sm:$0xf] %v1431
  %1560 = vst [vmem:[%s4 + $0x24] sm:$0xf] %v1432
  %1561 = vst [vmem:[%s4 + $0x28] sm:$0xf] %v1433
  %1562 = vst [vmem:[%s4 + $0x2c] sm:$0xf] %v1434
  %1563 = vst [vmem:[%s4 + $0x30] sm:$0xf] %v1435
  %1564 = vst [vmem:[%s4 + $0x34] sm:$0xf] %v1436
  %1565 = vst [vmem:[%s4 + $0x38] sm:$0xf] %v1437
  %1566 = vst [vmem:[%s4 + $0x3c] sm:$0xf] %v1438
  %1567 = vst [vmem:[%s4 + $0x40] sm:$0xf] %v1439
  %1568 = vst [vmem:[%s4 + $0x44] sm:$0xf] %v1440
  %1569 = vst [vmem:[%s4 + $0x48] sm:$0xf] %v1441
  %1570 = vst [vmem:[%s4 + $0x4c] sm:$0xf] %v1442
  %1571 = vst [vmem:[%s4 + $0x50] sm:$0xf] %v1443
  %1572 = vst [vmem:[%s4 + $0x54] sm:$0xf] %v1444
  %1573 = vst [vmem:[%s4 + $0x58] sm:$0xf] %v1445
  %1574 = vst [vmem:[%s4 + $0x5c] sm:$0xf] %v1446
  %1575 = vst [vmem:[%s4 + $0x60] sm:$0xf] %v1447
  %1576 = vst [vmem:[%s4 + $0x64] sm:$0xf] %v1448
  %1577 = vst [vmem:[%s4 + $0x68] sm:$0xf] %v1449
  %1578 = vst [vmem:[%s4 + $0x6c] sm:$0xf] %v1450
  %1579 = vst [vmem:[%s4 + $0x70] sm:$0xf] %v1451
  %1580 = vst [vmem:[%s4 + $0x74] sm:$0xf] %v1452
  %1581 = vst [vmem:[%s4 + $0x78] sm:$0xf] %v1453
  %1582 = vst [vmem:[%s4 + $0x7c] sm:$0xf] %v1454
  %1583 = vst [vmem:[%s4 + $0x80] sm:$0xf] %v1455
  %1584 = vst [vmem:[%s4 + $0x84] sm:$0xf] %v1456
  %1585 = vst [vmem:[%s4 + $0x88] sm:$0xf] %v1457
  %1586 = vst [vmem:[%s4 + $0x8c] sm:$0xf] %v1458
  %1587 = vst [vmem:[%s4 + $0x90] sm:$0xf] %v1459
  %1588 = vst [vmem:[%s4 + $0x94] sm:$0xf] %v1460
  %1589 = vst [vmem:[%s4 + $0x98] sm:$0xf] %v1461
  %1590 = vst [vmem:[%s4 + $0x9c] sm:$0xf] %v1462
  %1591 = vst [vmem:[%s4 + $0xa0] sm:$0xf] %v1463
  %1592 = vst [vmem:[%s4 + $0xa4] sm:$0xf] %v1464
  %1593 = vst [vmem:[%s4 + $0xa8] sm:$0xf] %v1465
  %1594 = vst [vmem:[%s4 + $0xac] sm:$0xf] %v1466
  %1595 = vst [vmem:[%s4 + $0xb0] sm:$0xf] %v1467
  %1596 = vst [vmem:[%s4 + $0xb4] sm:$0xf] %v1468
  %1597 = vst [vmem:[%s4 + $0xb8] sm:$0xf] %v1469
  %1598 = vst [vmem:[%s4 + $0xbc] sm:$0xf] %v1470
  %1599 = vst [vmem:[%s4 + $0xc0] sm:$0xf] %v1471
  %1600 = vst [vmem:[%s4 + $0xc4] sm:$0xf] %v1472
  %1601 = vst [vmem:[%s4 + $0xc8] sm:$0xf] %v1473
  %1602 = vst [vmem:[%s4 + $0xcc] sm:$0xf] %v1474
  %1603 = vst [vmem:[%s4 + $0xd0] sm:$0xf] %v1475
  %1604 = vst [vmem:[%s4 + $0xd4] sm:$0xf] %v1476
  %1605 = vst [vmem:[%s4 + $0xd8] sm:$0xf] %v1477
  %1606 = vst [vmem:[%s4 + $0xdc] sm:$0xf] %v1478
  %1607 = vst [vmem:[%s4 + $0xe0] sm:$0xf] %v1479
  %1608 = vst [vmem:[%s4 + $0xe4] sm:$0xf] %v1480
  %1609 = vst [vmem:[%s4 + $0xe8] sm:$0xf] %v1481
  %1610 = vst [vmem:[%s4 + $0xec] sm:$0xf] %v1482
  %1611 = vst [vmem:[%s4 + $0xf0] sm:$0xf] %v1483
  %1612 = vst [vmem:[%s4 + $0xf4] sm:$0xf] %v1484
  %1613 = vst [vmem:[%s4 + $0xf8] sm:$0xf] %v1485
  %1614 = vst [vmem:[%s4 + $0xfc] sm:$0xf] %v1486
  // Predicated region
  $region18: #{discriminator_forward.6} parent=0 // pred_check
    _
  $region19: #{discriminator_forward.6} parent=0 // pred_check_branch
    %1616 = sbr.rel (0) target = $region21
  $region20: #{discriminator_forward.6} parent=0 // pred_region
    _
  $region21: #{discriminator_forward.6} parent=0 // pred_fallthru
    _
  // Predicated region
  $region22: #{discriminator_forward.6} parent=0 // pred_check
    _
  $region23: #{discriminator_forward.6} parent=0 // pred_check_branch
    %1618 = sbr.rel (0) target = $region25
  $region24: #{discriminator_forward.6} parent=0 // pred_region
    _
  $region25: #{discriminator_forward.6} parent=0 // pred_fallthru
    _

// kernel: discriminator_forward.7
$region0: #{discriminator_forward.7}
  #allocation0 [shape = 'u32[]', space=smem, size = 0x4, offset = 0x4, fixed_abs, tag = 'smem constant byte address 0x4 - core index']
  #allocation1 [shape = 'u32[144,128]{1,0:T(1,128)}', space=vmem, size = 0x12000, scoped, tag = 'internal scratch']
  %s0 = inlined_call_operand.vmem [shape: bf16[128,256], index: 0, kind: input, shape index: {}]
  %s1 = inlined_call_operand.vmem [shape: bf16[256,128], index: 1, kind: input, shape index: {}]
  %s2 = inlined_call_operand.vmem [shape: f32[1,128], index: 2, kind: input, shape index: {}]
  %s3 = inlined_call_operand.vmem [shape: f32[1,128], index: 3, kind: input, shape index: {}]
  %s4 = inlined_call_operand.vmem [shape: bf16[128,128], index: 4, kind: output, shape index: {}]
  %s5 = sld [smem:[#allocation0]]
  $region26: #{discriminator_forward.7} parent=0
    _
  %s7 = ssub.s32 1, %s5
  %s8 = scalar_select 0, %s7, %s5
  // Predicated region
  $region2: #{discriminator_forward.7} parent=0 // pred_check
    _
  $region3: #{discriminator_forward.7} parent=0 // pred_check_branch
    %10 = sbr.rel (0) target = $region5
  $region4: #{discriminator_forward.7} parent=0 // pred_region
    _
  $region5: #{discriminator_forward.7} parent=0 // pred_fallthru
    _
  // Predicated region
  $region6: #{discriminator_forward.7} parent=0 // pred_check
    _
  $region7: #{discriminator_forward.7} parent=0 // pred_check_branch
    %12 = sbr.rel (0) target = $region9
  $region8: #{discriminator_forward.7} parent=0 // pred_region
    _
  $region9: #{discriminator_forward.7} parent=0 // pred_fallthru
    _
  // Predicated region
  $region10: #{discriminator_forward.7} parent=0 // pred_check
    _
  $region11: #{discriminator_forward.7} parent=0 // pred_check_branch
    %14 = sbr.rel (0) target = $region13
  $region12: #{discriminator_forward.7} parent=0 // pred_region
    _
  $region13: #{discriminator_forward.7} parent=0 // pred_fallthru
    _
  // Predicated region
  $region14: #{discriminator_forward.7} parent=0 // pred_check
    _
  $region15: #{discriminator_forward.7} parent=0 // pred_check_branch
    %16 = sbr.rel (0) target = $region17
  $region16: #{discriminator_forward.7} parent=0 // pred_region
    _
  $region17: #{discriminator_forward.7} parent=0 // pred_fallthru
    _
  %v18 = vld [vmem:[%s0] sm:$0xff]
  %v19 = vld [vmem:[%s0 + $0x8] sm:$0xff]
  %v20 = vld [vmem:[%s0 + $0x10] sm:$0xff]
  %v21 = vld [vmem:[%s0 + $0x18] sm:$0xff]
  %v22 = vld [vmem:[%s0 + $0x20] sm:$0xff]
  %v23 = vld [vmem:[%s0 + $0x28] sm:$0xff]
  %v24 = vld [vmem:[%s0 + $0x30] sm:$0xff]
  %v25 = vld [vmem:[%s0 + $0x38] sm:$0xff]
  %v26 = vld [vmem:[%s0 + $0x40] sm:$0xff]
  %v27 = vld [vmem:[%s0 + $0x48] sm:$0xff]
  %v28 = vld [vmem:[%s0 + $0x50] sm:$0xff]
  %v29 = vld [vmem:[%s0 + $0x58] sm:$0xff]
  %v30 = vld [vmem:[%s0 + $0x60] sm:$0xff]
  %v31 = vld [vmem:[%s0 + $0x68] sm:$0xff]
  %v32 = vld [vmem:[%s0 + $0x70] sm:$0xff]
  %v33 = vld [vmem:[%s0 + $0x78] sm:$0xff]
  %v34 = vld [vmem:[%s1] sm:$0xf]
  %v35 = vld [vmem:[%s1 + $0x4] sm:$0xf]
  %v36 = vld [vmem:[%s1 + $0x8] sm:$0xf]
  %v37 = vld [vmem:[%s1 + $0xc] sm:$0xf]
  %v38 = vld [vmem:[%s1 + $0x10] sm:$0xf]
  %v39 = vld [vmem:[%s1 + $0x14] sm:$0xf]
  %v40 = vld [vmem:[%s1 + $0x18] sm:$0xf]
  %v41 = vld [vmem:[%s1 + $0x1c] sm:$0xf]
  %v42 = vld [vmem:[%s1 + $0x20] sm:$0xf]
  %v43 = vld [vmem:[%s1 + $0x24] sm:$0xf]
  %v44 = vld [vmem:[%s1 + $0x28] sm:$0xf]
  %v45 = vld [vmem:[%s1 + $0x2c] sm:$0xf]
  %v46 = vld [vmem:[%s1 + $0x30] sm:$0xf]
  %v47 = vld [vmem:[%s1 + $0x34] sm:$0xf]
  %v48 = vld [vmem:[%s1 + $0x38] sm:$0xf]
  %v49 = vld [vmem:[%s1 + $0x3c] sm:$0xf]
  %v50 = vld [vmem:[%s1 + $0x40] sm:$0xf]
  %v51 = vld [vmem:[%s1 + $0x44] sm:$0xf]
  %v52 = vld [vmem:[%s1 + $0x48] sm:$0xf]
  %v53 = vld [vmem:[%s1 + $0x4c] sm:$0xf]
  %v54 = vld [vmem:[%s1 + $0x50] sm:$0xf]
  %v55 = vld [vmem:[%s1 + $0x54] sm:$0xf]
  %v56 = vld [vmem:[%s1 + $0x58] sm:$0xf]
  %v57 = vld [vmem:[%s1 + $0x5c] sm:$0xf]
  %v58 = vld [vmem:[%s1 + $0x60] sm:$0xf]
  %v59 = vld [vmem:[%s1 + $0x64] sm:$0xf]
  %v60 = vld [vmem:[%s1 + $0x68] sm:$0xf]
  %v61 = vld [vmem:[%s1 + $0x6c] sm:$0xf]
  %v62 = vld [vmem:[%s1 + $0x70] sm:$0xf]
  %v63 = vld [vmem:[%s1 + $0x74] sm:$0xf]
  %v64 = vld [vmem:[%s1 + $0x78] sm:$0xf]
  %v65 = vld [vmem:[%s1 + $0x7c] sm:$0xf]
  %v82 = vunpack.c.l.b16 %v18
  %v83 = vunpack.c.h.b16 %v18
  %v84 = vunpack.c.l.b16 %v19
  %v85 = vunpack.c.h.b16 %v19
  %v86 = vunpack.c.l.b16 %v20
  %v87 = vunpack.c.h.b16 %v20
  %v88 = vunpack.c.l.b16 %v21
  %v89 = vunpack.c.h.b16 %v21
  %v90 = vunpack.c.l.b16 %v22
  %v91 = vunpack.c.h.b16 %v22
  %v92 = vunpack.c.l.b16 %v23
  %v93 = vunpack.c.h.b16 %v23
  %v94 = vunpack.c.l.b16 %v24
  %v95 = vunpack.c.h.b16 %v24
  %v96 = vunpack.c.l.b16 %v25
  %v97 = vunpack.c.h.b16 %v25
  %v98 = vunpack.c.l.b16 %v26
  %v99 = vunpack.c.h.b16 %v26
  %v100 = vunpack.c.l.b16 %v27
  %v101 = vunpack.c.h.b16 %v27
  %v102 = vunpack.c.l.b16 %v28
  %v103 = vunpack.c.h.b16 %v28
  %v104 = vunpack.c.l.b16 %v29
  %v105 = vunpack.c.h.b16 %v29
  %v106 = vunpack.c.l.b16 %v30
  %v107 = vunpack.c.h.b16 %v30
  %v108 = vunpack.c.l.b16 %v31
  %v109 = vunpack.c.h.b16 %v31
  %v110 = vunpack.c.l.b16 %v32
  %v111 = vunpack.c.h.b16 %v32
  %v112 = vunpack.c.l.b16 %v33
  %v113 = vunpack.c.h.b16 %v33
  %v114 = vpack.c.b16 %v84, %v82
  %v115 = vpack.c.b16 %v85, %v83
  %v116 = vpack.c.b16 %v88, %v86
  %v117 = vpack.c.b16 %v89, %v87
  %v118 = vpack.c.b16 %v92, %v90
  %v119 = vpack.c.b16 %v93, %v91
  %v120 = vpack.c.b16 %v96, %v94
  %v121 = vpack.c.b16 %v97, %v95
  %v122 = vpack.c.b16 %v100, %v98
  %v123 = vpack.c.b16 %v101, %v99
  %v124 = vpack.c.b16 %v104, %v102
  %v125 = vpack.c.b16 %v105, %v103
  %v126 = vpack.c.b16 %v108, %v106
  %v127 = vpack.c.b16 %v109, %v107
  %v128 = vpack.c.b16 %v112, %v110
  %v129 = vpack.c.b16 %v113, %v111
  %v178 = vunpack.c.l.b16 %v34
  %v179 = vunpack.c.l.b16 %v35
  %v180 = vunpack.c.l.b16 %v36
  %v181 = vunpack.c.l.b16 %v37
  %v182 = vunpack.c.l.b16 %v38
  %v183 = vunpack.c.l.b16 %v39
  %v184 = vunpack.c.l.b16 %v40
  %v185 = vunpack.c.l.b16 %v41
  %v186 = vunpack.c.l.b16 %v42
  %v187 = vunpack.c.l.b16 %v43
  %v188 = vunpack.c.l.b16 %v44
  %v189 = vunpack.c.l.b16 %v45
  %v190 = vunpack.c.l.b16 %v46
  %v191 = vunpack.c.l.b16 %v47
  %v192 = vunpack.c.l.b16 %v48
  %v193 = vunpack.c.l.b16 %v49
  %v194 = vunpack.c.l.b16 %v50
  %v195 = vunpack.c.l.b16 %v51
  %v196 = vunpack.c.l.b16 %v52
  %v197 = vunpack.c.l.b16 %v53
  %v198 = vunpack.c.l.b16 %v54
  %v199 = vunpack.c.l.b16 %v55
  %v200 = vunpack.c.l.b16 %v56
  %v201 = vunpack.c.l.b16 %v57
  %v202 = vunpack.c.l.b16 %v58
  %v203 = vunpack.c.l.b16 %v59
  %v204 = vunpack.c.l.b16 %v60
  %v205 = vunpack.c.l.b16 %v61
  %v206 = vunpack.c.l.b16 %v62
  %v207 = vunpack.c.l.b16 %v63
  %v208 = vunpack.c.l.b16 %v64
  %v209 = vunpack.c.l.b16 %v65
  %v210 = vpack.c.b16 %v179, %v178
  %v211 = vpack.c.b16 %v181, %v180
  %v212 = vpack.c.b16 %v183, %v182
  %v213 = vpack.c.b16 %v185, %v184
  %v214 = vpack.c.b16 %v187, %v186
  %v215 = vpack.c.b16 %v189, %v188
  %v216 = vpack.c.b16 %v191, %v190
  %v217 = vpack.c.b16 %v193, %v192
  %v218 = vpack.c.b16 %v195, %v194
  %v219 = vpack.c.b16 %v197, %v196
  %v220 = vpack.c.b16 %v199, %v198
  %v221 = vpack.c.b16 %v201, %v200
  %v222 = vpack.c.b16 %v203, %v202
  %v223 = vpack.c.b16 %v205, %v204
  %v224 = vpack.c.b16 %v207, %v206
  %v225 = vpack.c.b16 %v209, %v208
  %242 = vmatprep.subr.bf16.mxu0 0
  %243 = vmatpush1.bf16.msra.mxu0 %v210
  %244 = vmatprep.subr.bf16.mxu0 0
  %245 = vmatpush1.bf16.msra.mxu0 %v211
  %246 = vmatprep.subr.bf16.mxu0 0
  %247 = vmatpush1.bf16.msra.mxu0 %v212
  %248 = vmatprep.subr.bf16.mxu0 0
  %249 = vmatpush1.bf16.msra.mxu0 %v213
  %250 = vmatprep.subr.bf16.mxu0 0
  %251 = vmatpush1.bf16.msra.mxu0 %v214
  %252 = vmatprep.subr.bf16.mxu0 0
  %253 = vmatpush1.bf16.msra.mxu0 %v215
  %254 = vmatprep.subr.bf16.mxu0 0
  %255 = vmatpush1.bf16.msra.mxu0 %v216
  %256 = vmatprep.subr.bf16.mxu0 0
  %257 = vmatpush1.bf16.msra.mxu0 %v217
  %258 = vmatprep.subr.bf16.mxu0 0
  %259 = vmatpush1.bf16.msra.mxu0 %v218
  %260 = vmatprep.subr.bf16.mxu0 0
  %261 = vmatpush1.bf16.msra.mxu0 %v219
  %262 = vmatprep.subr.bf16.mxu0 0
  %263 = vmatpush1.bf16.msra.mxu0 %v220
  %264 = vmatprep.subr.bf16.mxu0 0
  %265 = vmatpush1.bf16.msra.mxu0 %v221
  %266 = vmatprep.subr.bf16.mxu0 0
  %267 = vmatpush1.bf16.msra.mxu0 %v222
  %268 = vmatprep.subr.bf16.mxu0 0
  %269 = vmatpush1.bf16.msra.mxu0 %v223
  %270 = vmatprep.subr.bf16.mxu0 0
  %271 = vmatpush1.bf16.msra.mxu0 %v224
  %272 = vmatprep.subr.bf16.mxu0 0
  %273 = vmatpush1.bf16.msra.mxu0 %v225
  %274 = vmatprep.mubr.bf16.mxu0 %v115
  %275 = vmatmul.mubr.bf16.gmra.mrb[0].mxu0 %v114
  %v276 = vpop.f32.mrb[0].mxu0
  %v277 = vadd.f32 0.0, %v276
  %v278 = vpop.f32.mrb[0].mxu0
  %v279 = vpop.f32.mrb[0].mxu0
  %v280 = vadd.f32 0.0, %v279
  %v281 = vpop.f32.mrb[0].mxu0
  %282 = vmatprep.mubr.bf16.mxu0 %v117
  %283 = vmatmul.mubr.bf16.gmra.mrb[0].mxu0 %v116
  %v284 = vpop.f32.mrb[0].mxu0
  %v285 = vadd.f32 0.0, %v284
  %v286 = vpop.f32.mrb[0].mxu0
  %v287 = vpop.f32.mrb[0].mxu0
  %v288 = vadd.f32 0.0, %v287
  %v289 = vpop.f32.mrb[0].mxu0
  %290 = vmatprep.mubr.bf16.mxu0 %v119
  %291 = vmatmul.mubr.bf16.gmra.mrb[0].mxu0 %v118
  %v292 = vpop.f32.mrb[0].mxu0
  %v293 = vadd.f32 0.0, %v292
  %v294 = vpop.f32.mrb[0].mxu0
  %v295 = vpop.f32.mrb[0].mxu0
  %v296 = vadd.f32 0.0, %v295
  %v297 = vpop.f32.mrb[0].mxu0
  %298 = vmatprep.mubr.bf16.mxu0 %v121
  %299 = vmatmul.mubr.bf16.gmra.mrb[0].mxu0 %v120
  %v300 = vpop.f32.mrb[0].mxu0
  %v301 = vadd.f32 0.0, %v300
  %v302 = vpop.f32.mrb[0].mxu0
  %v303 = vpop.f32.mrb[0].mxu0
  %v304 = vadd.f32 0.0, %v303
  %v305 = vpop.f32.mrb[0].mxu0
  %306 = vmatprep.mubr.bf16.mxu0 %v123
  %307 = vmatmul.mubr.bf16.gmra.mrb[0].mxu0 %v122
  %v308 = vpop.f32.mrb[0].mxu0
  %v309 = vadd.f32 0.0, %v308
  %v310 = vpop.f32.mrb[0].mxu0
  %v311 = vpop.f32.mrb[0].mxu0
  %v312 = vadd.f32 0.0, %v311
  %v313 = vpop.f32.mrb[0].mxu0
  %314 = vmatprep.mubr.bf16.mxu0 %v125
  %315 = vmatmul.mubr.bf16.gmra.mrb[0].mxu0 %v124
  %v316 = vpop.f32.mrb[0].mxu0
  %v317 = vadd.f32 0.0, %v316
  %v318 = vpop.f32.mrb[0].mxu0
  %v319 = vpop.f32.mrb[0].mxu0
  %v320 = vadd.f32 0.0, %v319
  %v321 = vpop.f32.mrb[0].mxu0
  %322 = vmatprep.mubr.bf16.mxu0 %v127
  %323 = vmatmul.mubr.bf16.gmra.mrb[0].mxu0 %v126
  %v324 = vpop.f32.mrb[0].mxu0
  %v325 = vadd.f32 0.0, %v324
  %v326 = vpop.f32.mrb[0].mxu0
  %v327 = vpop.f32.mrb[0].mxu0
  %v328 = vadd.f32 0.0, %v327
  %v329 = vpop.f32.mrb[0].mxu0
  %330 = vmatprep.mubr.bf16.mxu0 %v129
  %331 = vmatmul.mubr.bf16.gmra.mrb[0].mxu0 %v128
  %v332 = vpop.f32.mrb[0].mxu0
  %v333 = vadd.f32 0.0, %v332
  %v334 = vpop.f32.mrb[0].mxu0
  %v335 = vpop.f32.mrb[0].mxu0
  %v336 = vadd.f32 0.0, %v335
  %v337 = vpop.f32.mrb[0].mxu0
  %338 = vdwg.mxu0
  %v339 = vadd.f32 %v277, %v280
  %v340 = vadd.f32 %v339, %v285
  %v341 = vadd.f32 %v340, %v288
  %v342 = vadd.f32 %v341, %v293
  %v343 = vadd.f32 %v342, %v296
  %v344 = vadd.f32 %v343, %v301
  %v345 = vadd.f32 %v344, %v304
  %v346 = vadd.f32 %v345, %v309
  %v347 = vadd.f32 %v346, %v312
  %v348 = vadd.f32 %v347, %v317
  %v349 = vadd.f32 %v348, %v320
  %v350 = vadd.f32 %v349, %v325
  %v351 = vadd.f32 %v350, %v328
  %v352 = vadd.f32 %v351, %v333
  %v353 = vadd.f32 %v352, %v336
  %v354 = vrot.slane %v353, 4
  %v355 = vadd.f32 %v353, %v354
  %v356 = vrot.slane %v355, 2
  %v357 = vadd.f32 %v355, %v356
  %v358 = vrot.slane %v357, 1
  %v359 = vadd.f32 %v357, %v358
  %v360 = vmul.f32 %v359, 0.0078125
  %v361 = vsub.f32 %v277, %v360
  %v362 = vsub.f32 %v280, %v360
  %v363 = vsub.f32 %v285, %v360
  %v364 = vsub.f32 %v288, %v360
  %v365 = vsub.f32 %v293, %v360
  %v366 = vsub.f32 %v296, %v360
  %v367 = vsub.f32 %v301, %v360
  %v368 = vsub.f32 %v304, %v360
  %v369 = vsub.f32 %v309, %v360
  %v370 = vsub.f32 %v312, %v360
  %v371 = vsub.f32 %v317, %v360
  %v372 = vsub.f32 %v320, %v360
  %v373 = vsub.f32 %v325, %v360
  %v374 = vsub.f32 %v328, %v360
  %v375 = vsub.f32 %v333, %v360
  %v376 = vsub.f32 %v336, %v360
  %v377 = vmul.f32 %v361, %v361
  %v378 = vmul.f32 %v362, %v362
  %v379 = vmul.f32 %v363, %v363
  %v380 = vmul.f32 %v364, %v364
  %v381 = vmul.f32 %v365, %v365
  %v382 = vmul.f32 %v366, %v366
  %v383 = vmul.f32 %v367, %v367
  %v384 = vmul.f32 %v368, %v368
  %v385 = vmul.f32 %v369, %v369
  %v386 = vmul.f32 %v370, %v370
  %v387 = vmul.f32 %v371, %v371
  %v388 = vmul.f32 %v372, %v372
  %v389 = vmul.f32 %v373, %v373
  %v390 = vmul.f32 %v374, %v374
  %v391 = vmul.f32 %v375, %v375
  %v392 = vmul.f32 %v376, %v376
  %v393 = vadd.f32 %v377, %v378
  %v394 = vadd.f32 %v393, %v379
  %v395 = vadd.f32 %v394, %v380
  %v396 = vadd.f32 %v395, %v381
  %v397 = vadd.f32 %v396, %v382
  %v398 = vadd.f32 %v397, %v383
  %v399 = vadd.f32 %v398, %v384
  %v400 = vadd.f32 %v399, %v385
  %v401 = vadd.f32 %v400, %v386
  %v402 = vadd.f32 %v401, %v387
  %v403 = vadd.f32 %v402, %v388
  %v404 = vadd.f32 %v403, %v389
  %v405 = vadd.f32 %v404, %v390
  %v406 = vadd.f32 %v405, %v391
  %v407 = vadd.f32 %v406, %v392
  %v408 = vrot.slane %v407, 4
  %v409 = vadd.f32 %v407, %v408
  %v410 = vrot.slane %v409, 2
  %v411 = vadd.f32 %v409, %v410
  %v412 = vrot.slane %v411, 1
  %v413 = vadd.f32 %v411, %v412
  %v414 = vmul.f32 %v413, 0.0078125
  %v415 = vadd.f32 %v414, 1e-05
  %v416 = vrsqrt.pop %v415
  %v417 = vmul.f32 %v361, %v416
  %v418 = vmul.f32 %v362, %v416
  %v419 = vmul.f32 %v363, %v416
  %v420 = vmul.f32 %v364, %v416
  %v421 = vmul.f32 %v365, %v416
  %v422 = vmul.f32 %v366, %v416
  %v423 = vmul.f32 %v367, %v416
  %v424 = vmul.f32 %v368, %v416
  %v425 = vmul.f32 %v369, %v416
  %v426 = vmul.f32 %v370, %v416
  %v427 = vmul.f32 %v371, %v416
  %v428 = vmul.f32 %v372, %v416
  %v429 = vmul.f32 %v373, %v416
  %v430 = vmul.f32 %v374, %v416
  %v431 = vmul.f32 %v375, %v416
  %v432 = vmul.f32 %v376, %v416
  %v433 = vld [vmem:[%s2] sm:$0x1]
  %v435 = vlaneseq
  %v436 = vshrl.u32 %v435, 7
  %v437 = vsub.s32 0, %v436
  %v438 = vrot.slane %v433, %v437
  %v440 = vmul.f32 %v417, %v438
  %v441 = vmul.f32 %v418, %v438
  %v442 = vmul.f32 %v419, %v438
  %v443 = vmul.f32 %v420, %v438
  %v444 = vmul.f32 %v421, %v438
  %v445 = vmul.f32 %v422, %v438
  %v446 = vmul.f32 %v423, %v438
  %v447 = vmul.f32 %v424, %v438
  %v448 = vmul.f32 %v425, %v438
  %v449 = vmul.f32 %v426, %v438
  %v450 = vmul.f32 %v427, %v438
  %v451 = vmul.f32 %v428, %v438
  %v452 = vmul.f32 %v429, %v438
  %v453 = vmul.f32 %v430, %v438
  %v454 = vmul.f32 %v431, %v438
  %v455 = vmul.f32 %v432, %v438
  %v456 = vld [vmem:[%s3] sm:$0x1]
  %v458 = vlaneseq
  %v459 = vshrl.u32 %v458, 7
  %v460 = vsub.s32 0, %v459
  %v461 = vrot.slane %v456, %v460
  %v463 = vadd.f32 %v440, %v461
  %v464 = vadd.f32 %v441, %v461
  %v465 = vadd.f32 %v442, %v461
  %v466 = vadd.f32 %v443, %v461
  %v467 = vadd.f32 %v444, %v461
  %v468 = vadd.f32 %v445, %v461
  %v469 = vadd.f32 %v446, %v461
  %v470 = vadd.f32 %v447, %v461
  %v471 = vadd.f32 %v448, %v461
  %v472 = vadd.f32 %v449, %v461
  %v473 = vadd.f32 %v450, %v461
  %v474 = vadd.f32 %v451, %v461
  %v475 = vadd.f32 %v452, %v461
  %v476 = vadd.f32 %v453, %v461
  %v477 = vadd.f32 %v454, %v461
  %v478 = vadd.f32 %v455, %v461
  %vm479 = vcmp.gt.f32.partialorder %v463, 0.0
  %vm480 = vcmp.gt.f32.partialorder %v464, 0.0
  %vm481 = vcmp.gt.f32.partialorder %v465, 0.0
  %vm482 = vcmp.gt.f32.partialorder %v466, 0.0
  %vm483 = vcmp.gt.f32.partialorder %v467, 0.0
  %vm484 = vcmp.gt.f32.partialorder %v468, 0.0
  %vm485 = vcmp.gt.f32.partialorder %v469, 0.0
  %vm486 = vcmp.gt.f32.partialorder %v470, 0.0
  %vm487 = vcmp.gt.f32.partialorder %v471, 0.0
  %vm488 = vcmp.gt.f32.partialorder %v472, 0.0
  %vm489 = vcmp.gt.f32.partialorder %v473, 0.0
  %vm490 = vcmp.gt.f32.partialorder %v474, 0.0
  %vm491 = vcmp.gt.f32.partialorder %v475, 0.0
  %vm492 = vcmp.gt.f32.partialorder %v476, 0.0
  %vm493 = vcmp.gt.f32.partialorder %v477, 0.0
  %vm494 = vcmp.gt.f32.partialorder %v478, 0.0
  %v495 = vmul.f32 %v463, 0.2
  %v496 = vmul.f32 %v464, 0.2
  %v497 = vmul.f32 %v465, 0.2
  %v498 = vmul.f32 %v466, 0.2
  %v499 = vmul.f32 %v467, 0.2
  %v500 = vmul.f32 %v468, 0.2
  %v501 = vmul.f32 %v469, 0.2
  %v502 = vmul.f32 %v470, 0.2
  %v503 = vmul.f32 %v471, 0.2
  %v504 = vmul.f32 %v472, 0.2
  %v505 = vmul.f32 %v473, 0.2
  %v506 = vmul.f32 %v474, 0.2
  %v507 = vmul.f32 %v475, 0.2
  %v508 = vmul.f32 %v476, 0.2
  %v509 = vmul.f32 %v477, 0.2
  %v510 = vmul.f32 %v478, 0.2
  %v511 = vsel %vm479, %v463, %v495
  %v512 = vsel %vm480, %v464, %v496
  %v513 = vsel %vm481, %v465, %v497
  %v514 = vsel %vm482, %v466, %v498
  %v515 = vsel %vm483, %v467, %v499
  %v516 = vsel %vm484, %v468, %v500
  %v517 = vsel %vm485, %v469, %v501
  %v518 = vsel %vm486, %v470, %v502
  %v519 = vsel %vm487, %v471, %v503
  %v520 = vsel %vm488, %v472, %v504
  %v521 = vsel %vm489, %v473, %v505
  %v522 = vsel %vm490, %v474, %v506
  %v523 = vsel %vm491, %v475, %v507
  %v524 = vsel %vm492, %v476, %v508
  %v525 = vsel %vm493, %v477, %v509
  %v526 = vsel %vm494, %v478, %v510
  %v527 = vpack.c.bf16 %v512, %v511
  %v528 = vpack.c.bf16 %v514, %v513
  %v529 = vpack.c.bf16 %v516, %v515
  %v530 = vpack.c.bf16 %v518, %v517
  %v531 = vpack.c.bf16 %v520, %v519
  %v532 = vpack.c.bf16 %v522, %v521
  %v533 = vpack.c.bf16 %v524, %v523
  %v534 = vpack.c.bf16 %v526, %v525
  %v543 = vunpack.c.l.b16 %v527
  %v544 = vunpack.c.h.b16 %v527
  %v545 = vunpack.c.l.b16 %v528
  %v546 = vunpack.c.h.b16 %v528
  %v547 = vunpack.c.l.b16 %v529
  %v548 = vunpack.c.h.b16 %v529
  %v549 = vunpack.c.l.b16 %v530
  %v550 = vunpack.c.h.b16 %v530
  %v551 = vunpack.c.l.b16 %v531
  %v552 = vunpack.c.h.b16 %v531
  %v553 = vunpack.c.l.b16 %v532
  %v554 = vunpack.c.h.b16 %v532
  %v555 = vunpack.c.l.b16 %v533
  %v556 = vunpack.c.h.b16 %v533
  %v557 = vunpack.c.l.b16 %v534
  %v558 = vunpack.c.h.b16 %v534
  %v559 = vpack.c.b16 %v543, %v543
  %v560 = vpack.c.b16 %v544, %v544
  %v561 = vpack.c.b16 %v545, %v545
  %v562 = vpack.c.b16 %v546, %v546
  %v563 = vpack.c.b16 %v547, %v547
  %v564 = vpack.c.b16 %v548, %v548
  %v565 = vpack.c.b16 %v549, %v549
  %v566 = vpack.c.b16 %v550, %v550
  %v567 = vpack.c.b16 %v551, %v551
  %v568 = vpack.c.b16 %v552, %v552
  %v569 = vpack.c.b16 %v553, %v553
  %v570 = vpack.c.b16 %v554, %v554
  %v571 = vpack.c.b16 %v555, %v555
  %v572 = vpack.c.b16 %v556, %v556
  %v573 = vpack.c.b16 %v557, %v557
  %v574 = vpack.c.b16 %v558, %v558
  %591 = vst [vmem:[%s4] sm:$0xf] %v559
  %592 = vst [vmem:[%s4 + $0x4] sm:$0xf] %v560
  %593 = vst [vmem:[%s4 + $0x8] sm:$0xf] %v561
  %594 = vst [vmem:[%s4 + $0xc] sm:$0xf] %v562
  %595 = vst [vmem:[%s4 + $0x10] sm:$0xf] %v563
  %596 = vst [vmem:[%s4 + $0x14] sm:$0xf] %v564
  %597 = vst [vmem:[%s4 + $0x18] sm:$0xf] %v565
  %598 = vst [vmem:[%s4 + $0x1c] sm:$0xf] %v566
  %599 = vst [vmem:[%s4 + $0x20] sm:$0xf] %v567
  %600 = vst [vmem:[%s4 + $0x24] sm:$0xf] %v568
  %601 = vst [vmem:[%s4 + $0x28] sm:$0xf] %v569
  %602 = vst [vmem:[%s4 + $0x2c] sm:$0xf] %v570
  %603 = vst [vmem:[%s4 + $0x30] sm:$0xf] %v571
  %604 = vst [vmem:[%s4 + $0x34] sm:$0xf] %v572
  %605 = vst [vmem:[%s4 + $0x38] sm:$0xf] %v573
  %606 = vst [vmem:[%s4 + $0x3c] sm:$0xf] %v574
  // Predicated region
  $region18: #{discriminator_forward.7} parent=0 // pred_check
    _
  $region19: #{discriminator_forward.7} parent=0 // pred_check_branch
    %608 = sbr.rel (0) target = $region21
  $region20: #{discriminator_forward.7} parent=0 // pred_region
    _
  $region21: #{discriminator_forward.7} parent=0 // pred_fallthru
    _
  // Predicated region
  $region22: #{discriminator_forward.7} parent=0 // pred_check
    _
  $region23: #{discriminator_forward.7} parent=0 // pred_check_branch
    %610 = sbr.rel (0) target = $region25
  $region24: #{discriminator_forward.7} parent=0 // pred_region
    _
  $region25: #{discriminator_forward.7} parent=0 // pred_fallthru
    _

// kernel: discriminator_forward.8
$region0: #{discriminator_forward.8}
  #allocation0 [shape = 'u32[]', space=smem, size = 0x4, offset = 0x4, fixed_abs, tag = 'smem constant byte address 0x4 - core index']
  #allocation1 [shape = 'u32[144,128]{1,0:T(1,128)}', space=vmem, size = 0x12000, scoped, tag = 'internal scratch']
  %s0 = inlined_call_operand.vmem [shape: bf16[32,512], index: 0, kind: input, shape index: {}]
  %s1 = inlined_call_operand.vmem [shape: bf16[512,128], index: 1, kind: input, shape index: {}]
  %s2 = inlined_call_operand.vmem [shape: f32[1,128], index: 2, kind: input, shape index: {}]
  %s3 = inlined_call_operand.vmem [shape: f32[1,128], index: 3, kind: input, shape index: {}]
  %s4 = inlined_call_operand.vmem [shape: bf16[32,128], index: 4, kind: output, shape index: {}]
  %s5 = sld [smem:[#allocation0]]
  $region26: #{discriminator_forward.8} parent=0
    _
  %s7 = ssub.s32 1, %s5
  %s8 = scalar_select 0, %s7, %s5
  // Predicated region
  $region2: #{discriminator_forward.8} parent=0 // pred_check
    _
  $region3: #{discriminator_forward.8} parent=0 // pred_check_branch
    %10 = sbr.rel (0) target = $region5
  $region4: #{discriminator_forward.8} parent=0 // pred_region
    _
  $region5: #{discriminator_forward.8} parent=0 // pred_fallthru
    _
  // Predicated region
  $region6: #{discriminator_forward.8} parent=0 // pred_check
    _
  $region7: #{discriminator_forward.8} parent=0 // pred_check_branch
    %12 = sbr.rel (0) target = $region9
  $region8: #{discriminator_forward.8} parent=0 // pred_region
    _
  $region9: #{discriminator_forward.8} parent=0 // pred_fallthru
    _
  // Predicated region
  $region10: #{discriminator_forward.8} parent=0 // pred_check
    _
  $region11: #{discriminator_forward.8} parent=0 // pred_check_branch
    %14 = sbr.rel (0) target = $region13
  $region12: #{discriminator_forward.8} parent=0 // pred_region
    _
  $region13: #{discriminator_forward.8} parent=0 // pred_fallthru
    _
  // Predicated region
  $region14: #{discriminator_forward.8} parent=0 // pred_check
    _
  $region15: #{discriminator_forward.8} parent=0 // pred_check_branch
    %16 = sbr.rel (0) target = $region17
  $region16: #{discriminator_forward.8} parent=0 // pred_region
    _
  $region17: #{discriminator_forward.8} parent=0 // pred_fallthru
    _
  %v18 = vld [vmem:[%s0] sm:$0xff]
  %v19 = vld [vmem:[%s0 + $0x8] sm:$0xff]
  %v20 = vld [vmem:[%s0 + $0x10] sm:$0xff]
  %v21 = vld [vmem:[%s0 + $0x18] sm:$0xff]
  %v22 = vld [vmem:[%s0 + $0x20] sm:$0xff]
  %v23 = vld [vmem:[%s0 + $0x28] sm:$0xff]
  %v24 = vld [vmem:[%s0 + $0x30] sm:$0xff]
  %v25 = vld [vmem:[%s0 + $0x38] sm:$0xff]
  %v26 = vld [vmem:[%s1] sm:$0xf]
  %v27 = vld [vmem:[%s1 + $0x4] sm:$0xf]
  %v28 = vld [vmem:[%s1 + $0x8] sm:$0xf]
  %v29 = vld [vmem:[%s1 + $0xc] sm:$0xf]
  %v30 = vld [vmem:[%s1 + $0x10] sm:$0xf]
  %v31 = vld [vmem:[%s1 + $0x14] sm:$0xf]
  %v32 = vld [vmem:[%s1 + $0x18] sm:$0xf]
  %v33 = vld [vmem:[%s1 + $0x1c] sm:$0xf]
  %v34 = vld [vmem:[%s1 + $0x20] sm:$0xf]
  %v35 = vld [vmem:[%s1 + $0x24] sm:$0xf]
  %v36 = vld [vmem:[%s1 + $0x28] sm:$0xf]
  %v37 = vld [vmem:[%s1 + $0x2c] sm:$0xf]
  %v38 = vld [vmem:[%s1 + $0x30] sm:$0xf]
  %v39 = vld [vmem:[%s1 + $0x34] sm:$0xf]
  %v40 = vld [vmem:[%s1 + $0x38] sm:$0xf]
  %v41 = vld [vmem:[%s1 + $0x3c] sm:$0xf]
  %v42 = vld [vmem:[%s1 + $0x40] sm:$0xf]
  %v43 = vld [vmem:[%s1 + $0x44] sm:$0xf]
  %v44 = vld [vmem:[%s1 + $0x48] sm:$0xf]
  %v45 = vld [vmem:[%s1 + $0x4c] sm:$0xf]
  %v46 = vld [vmem:[%s1 + $0x50] sm:$0xf]
  %v47 = vld [vmem:[%s1 + $0x54] sm:$0xf]
  %v48 = vld [vmem:[%s1 + $0x58] sm:$0xf]
  %v49 = vld [vmem:[%s1 + $0x5c] sm:$0xf]
  %v50 = vld [vmem:[%s1 + $0x60] sm:$0xf]
  %v51 = vld [vmem:[%s1 + $0x64] sm:$0xf]
  %v52 = vld [vmem:[%s1 + $0x68] sm:$0xf]
  %v53 = vld [vmem:[%s1 + $0x6c] sm:$0xf]
  %v54 = vld [vmem:[%s1 + $0x70] sm:$0xf]
  %v55 = vld [vmem:[%s1 + $0x74] sm:$0xf]
  %v56 = vld [vmem:[%s1 + $0x78] sm:$0xf]
  %v57 = vld [vmem:[%s1 + $0x7c] sm:$0xf]
  %v58 = vld [vmem:[%s1 + $0x80] sm:$0xf]
  %v59 = vld [vmem:[%s1 + $0x84] sm:$0xf]
  %v60 = vld [vmem:[%s1 + $0x88] sm:$0xf]
  %v61 = vld [vmem:[%s1 + $0x8c] sm:$0xf]
  %v62 = vld [vmem:[%s1 + $0x90] sm:$0xf]
  %v63 = vld [vmem:[%s1 + $0x94] sm:$0xf]
  %v64 = vld [vmem:[%s1 + $0x98] sm:$0xf]
  %v65 = vld [vmem:[%s1 + $0x9c] sm:$0xf]
  %v66 = vld [vmem:[%s1 + $0xa0] sm:$0xf]
  %v67 = vld [vmem:[%s1 + $0xa4] sm:$0xf]
  %v68 = vld [vmem:[%s1 + $0xa8] sm:$0xf]
  %v69 = vld [vmem:[%s1 + $0xac] sm:$0xf]
  %v70 = vld [vmem:[%s1 + $0xb0] sm:$0xf]
  %v71 = vld [vmem:[%s1 + $0xb4] sm:$0xf]
  %v72 = vld [vmem:[%s1 + $0xb8] sm:$0xf]
  %v73 = vld [vmem:[%s1 + $0xbc] sm:$0xf]
  %v74 = vld [vmem:[%s1 + $0xc0] sm:$0xf]
  %v75 = vld [vmem:[%s1 + $0xc4] sm:$0xf]
  %v76 = vld [vmem:[%s1 + $0xc8] sm:$0xf]
  %v77 = vld [vmem:[%s1 + $0xcc] sm:$0xf]
  %v78 = vld [vmem:[%s1 + $0xd0] sm:$0xf]
  %v79 = vld [vmem:[%s1 + $0xd4] sm:$0xf]
  %v80 = vld [vmem:[%s1 + $0xd8] sm:$0xf]
  %v81 = vld [vmem:[%s1 + $0xdc] sm:$0xf]
  %v82 = vld [vmem:[%s1 + $0xe0] sm:$0xf]
  %v83 = vld [vmem:[%s1 + $0xe4] sm:$0xf]
  %v84 = vld [vmem:[%s1 + $0xe8] sm:$0xf]
  %v85 = vld [vmem:[%s1 + $0xec] sm:$0xf]
  %v86 = vld [vmem:[%s1 + $0xf0] sm:$0xf]
  %v87 = vld [vmem:[%s1 + $0xf4] sm:$0xf]
  %v88 = vld [vmem:[%s1 + $0xf8] sm:$0xf]
  %v89 = vld [vmem:[%s1 + $0xfc] sm:$0xf]
  %v98 = vunpack.c.l.b16 %v18
  %v99 = vunpack.c.h.b16 %v18
  %v100 = vunpack.c.l.b16 %v19
  %v101 = vunpack.c.h.b16 %v19
  %v102 = vunpack.c.l.b16 %v20
  %v103 = vunpack.c.h.b16 %v20
  %v104 = vunpack.c.l.b16 %v21
  %v105 = vunpack.c.h.b16 %v21
  %v106 = vunpack.c.l.b16 %v22
  %v107 = vunpack.c.h.b16 %v22
  %v108 = vunpack.c.l.b16 %v23
  %v109 = vunpack.c.h.b16 %v23
  %v110 = vunpack.c.l.b16 %v24
  %v111 = vunpack.c.h.b16 %v24
  %v112 = vunpack.c.l.b16 %v25
  %v113 = vunpack.c.h.b16 %v25
  %v114 = vpack.c.b16 %v102, %v98
  %v115 = vpack.c.b16 %v103, %v99
  %v116 = vpack.c.b16 %v104, %v100
  %v117 = vpack.c.b16 %v105, %v101
  %v118 = vpack.c.b16 %v110, %v106
  %v119 = vpack.c.b16 %v111, %v107
  %v120 = vpack.c.b16 %v112, %v108
  %v121 = vpack.c.b16 %v113, %v109
  %v194 = vunpack.c.l.b16 %v26
  %v195 = vunpack.c.l.b16 %v27
  %v196 = vunpack.c.l.b16 %v28
  %v197 = vunpack.c.l.b16 %v29
  %v198 = vunpack.c.l.b16 %v30
  %v199 = vunpack.c.l.b16 %v31
  %v200 = vunpack.c.l.b16 %v32
  %v201 = vunpack.c.l.b16 %v33
  %v202 = vunpack.c.l.b16 %v34
  %v203 = vunpack.c.l.b16 %v35
  %v204 = vunpack.c.l.b16 %v36
  %v205 = vunpack.c.l.b16 %v37
  %v206 = vunpack.c.l.b16 %v38
  %v207 = vunpack.c.l.b16 %v39
  %v208 = vunpack.c.l.b16 %v40
  %v209 = vunpack.c.l.b16 %v41
  %v210 = vunpack.c.l.b16 %v42
  %v211 = vunpack.c.l.b16 %v43
  %v212 = vunpack.c.l.b16 %v44
  %v213 = vunpack.c.l.b16 %v45
  %v214 = vunpack.c.l.b16 %v46
  %v215 = vunpack.c.l.b16 %v47
  %v216 = vunpack.c.l.b16 %v48
  %v217 = vunpack.c.l.b16 %v49
  %v218 = vunpack.c.l.b16 %v50
  %v219 = vunpack.c.l.b16 %v51
  %v220 = vunpack.c.l.b16 %v52
  %v221 = vunpack.c.l.b16 %v53
  %v222 = vunpack.c.l.b16 %v54
  %v223 = vunpack.c.l.b16 %v55
  %v224 = vunpack.c.l.b16 %v56
  %v225 = vunpack.c.l.b16 %v57
  %v226 = vunpack.c.l.b16 %v58
  %v227 = vunpack.c.l.b16 %v59
  %v228 = vunpack.c.l.b16 %v60
  %v229 = vunpack.c.l.b16 %v61
  %v230 = vunpack.c.l.b16 %v62
  %v231 = vunpack.c.l.b16 %v63
  %v232 = vunpack.c.l.b16 %v64
  %v233 = vunpack.c.l.b16 %v65
  %v234 = vunpack.c.l.b16 %v66
  %v235 = vunpack.c.l.b16 %v67
  %v236 = vunpack.c.l.b16 %v68
  %v237 = vunpack.c.l.b16 %v69
  %v238 = vunpack.c.l.b16 %v70
  %v239 = vunpack.c.l.b16 %v71
  %v240 = vunpack.c.l.b16 %v72
  %v241 = vunpack.c.l.b16 %v73
  %v242 = vunpack.c.l.b16 %v74
  %v243 = vunpack.c.l.b16 %v75
  %v244 = vunpack.c.l.b16 %v76
  %v245 = vunpack.c.l.b16 %v77
  %v246 = vunpack.c.l.b16 %v78
  %v247 = vunpack.c.l.b16 %v79
  %v248 = vunpack.c.l.b16 %v80
  %v249 = vunpack.c.l.b16 %v81
  %v250 = vunpack.c.l.b16 %v82
  %v251 = vunpack.c.l.b16 %v83
  %v252 = vunpack.c.l.b16 %v84
  %v253 = vunpack.c.l.b16 %v85
  %v254 = vunpack.c.l.b16 %v86
  %v255 = vunpack.c.l.b16 %v87
  %v256 = vunpack.c.l.b16 %v88
  %v257 = vunpack.c.l.b16 %v89
  %v258 = vpack.c.b16 %v195, %v194
  %v259 = vpack.c.b16 %v197, %v196
  %v260 = vpack.c.b16 %v199, %v198
  %v261 = vpack.c.b16 %v201, %v200
  %v262 = vpack.c.b16 %v203, %v202
  %v263 = vpack.c.b16 %v205, %v204
  %v264 = vpack.c.b16 %v207, %v206
  %v265 = vpack.c.b16 %v209, %v208
  %v266 = vpack.c.b16 %v211, %v210
  %v267 = vpack.c.b16 %v213, %v212
  %v268 = vpack.c.b16 %v215, %v214
  %v269 = vpack.c.b16 %v217, %v216
  %v270 = vpack.c.b16 %v219, %v218
  %v271 = vpack.c.b16 %v221, %v220
  %v272 = vpack.c.b16 %v223, %v222
  %v273 = vpack.c.b16 %v225, %v224
  %v274 = vpack.c.b16 %v227, %v226
  %v275 = vpack.c.b16 %v229, %v228
  %v276 = vpack.c.b16 %v231, %v230
  %v277 = vpack.c.b16 %v233, %v232
  %v278 = vpack.c.b16 %v235, %v234
  %v279 = vpack.c.b16 %v237, %v236
  %v280 = vpack.c.b16 %v239, %v238
  %v281 = vpack.c.b16 %v241, %v240
  %v282 = vpack.c.b16 %v243, %v242
  %v283 = vpack.c.b16 %v245, %v244
  %v284 = vpack.c.b16 %v247, %v246
  %v285 = vpack.c.b16 %v249, %v248
  %v286 = vpack.c.b16 %v251, %v250
  %v287 = vpack.c.b16 %v253, %v252
  %v288 = vpack.c.b16 %v255, %v254
  %v289 = vpack.c.b16 %v257, %v256
  %322 = vmatprep.subr.bf16.mxu0 0
  %323 = vmatpush1.bf16.msra.mxu0 %v258
  %324 = vmatprep.subr.bf16.mxu0 0
  %325 = vmatpush1.bf16.msra.mxu0 %v259
  %326 = vmatprep.subr.bf16.mxu0 0
  %327 = vmatpush1.bf16.msra.mxu0 %v260
  %328 = vmatprep.subr.bf16.mxu0 0
  %329 = vmatpush1.bf16.msra.mxu0 %v261
  %330 = vmatprep.subr.bf16.mxu0 0
  %331 = vmatpush1.bf16.msra.mxu0 %v262
  %332 = vmatprep.subr.bf16.mxu0 0
  %333 = vmatpush1.bf16.msra.mxu0 %v263
  %334 = vmatprep.subr.bf16.mxu0 0
  %335 = vmatpush1.bf16.msra.mxu0 %v264
  %336 = vmatprep.subr.bf16.mxu0 0
  %337 = vmatpush1.bf16.msra.mxu0 %v265
  %338 = vmatprep.subr.bf16.mxu0 0
  %339 = vmatpush1.bf16.msra.mxu0 %v266
  %340 = vmatprep.subr.bf16.mxu0 0
  %341 = vmatpush1.bf16.msra.mxu0 %v267
  %342 = vmatprep.subr.bf16.mxu0 0
  %343 = vmatpush1.bf16.msra.mxu0 %v268
  %344 = vmatprep.subr.bf16.mxu0 0
  %345 = vmatpush1.bf16.msra.mxu0 %v269
  %346 = vmatprep.subr.bf16.mxu0 0
  %347 = vmatpush1.bf16.msra.mxu0 %v270
  %348 = vmatprep.subr.bf16.mxu0 0
  %349 = vmatpush1.bf16.msra.mxu0 %v271
  %350 = vmatprep.subr.bf16.mxu0 0
  %351 = vmatpush1.bf16.msra.mxu0 %v272
  %352 = vmatprep.subr.bf16.mxu0 0
  %353 = vmatpush1.bf16.msra.mxu0 %v273
  %354 = vmatprep.mubr.bf16.mxu0 %v115
  %355 = vmatmul.mubr.bf16.gmra.mrb[0].mxu0 %v114
  %v356 = vpop.f32.mrb[0].mxu0
  %v357 = vadd.f32 0.0, %v356
  %v358 = vpop.f32.mrb[0].mxu0
  %v359 = vpop.f32.mrb[0].mxu0
  %v360 = vadd.f32 0.0, %v359
  %v361 = vpop.f32.mrb[0].mxu0
  %362 = vmatprep.mubr.bf16.mxu0 %v119
  %363 = vmatmul.mubr.bf16.gmra.mrb[0].mxu0 %v118
  %v364 = vpop.f32.mrb[0].mxu0
  %v365 = vadd.f32 0.0, %v364
  %v366 = vpop.f32.mrb[0].mxu0
  %v367 = vpop.f32.mrb[0].mxu0
  %v368 = vadd.f32 0.0, %v367
  %v369 = vpop.f32.mrb[0].mxu0
  %370 = vdwg.mxu0
  %371 = vmatprep.subr.bf16.mxu0 0
  %372 = vmatpush1.bf16.msra.mxu0 %v274
  %373 = vmatprep.subr.bf16.mxu0 0
  %374 = vmatpush1.bf16.msra.mxu0 %v275
  %375 = vmatprep.subr.bf16.mxu0 0
  %376 = vmatpush1.bf16.msra.mxu0 %v276
  %377 = vmatprep.subr.bf16.mxu0 0
  %378 = vmatpush1.bf16.msra.mxu0 %v277
  %379 = vmatprep.subr.bf16.mxu0 0
  %380 = vmatpush1.bf16.msra.mxu0 %v278
  %381 = vmatprep.subr.bf16.mxu0 0
  %382 = vmatpush1.bf16.msra.mxu0 %v279
  %383 = vmatprep.subr.bf16.mxu0 0
  %384 = vmatpush1.bf16.msra.mxu0 %v280
  %385 = vmatprep.subr.bf16.mxu0 0
  %386 = vmatpush1.bf16.msra.mxu0 %v281
  %387 = vmatprep.subr.bf16.mxu0 0
  %388 = vmatpush1.bf16.msra.mxu0 %v282
  %389 = vmatprep.subr.bf16.mxu0 0
  %390 = vmatpush1.bf16.msra.mxu0 %v283
  %391 = vmatprep.subr.bf16.mxu0 0
  %392 = vmatpush1.bf16.msra.mxu0 %v284
  %393 = vmatprep.subr.bf16.mxu0 0
  %394 = vmatpush1.bf16.msra.mxu0 %v285
  %395 = vmatprep.subr.bf16.mxu0 0
  %396 = vmatpush1.bf16.msra.mxu0 %v286
  %397 = vmatprep.subr.bf16.mxu0 0
  %398 = vmatpush1.bf16.msra.mxu0 %v287
  %399 = vmatprep.subr.bf16.mxu0 0
  %400 = vmatpush1.bf16.msra.mxu0 %v288
  %401 = vmatprep.subr.bf16.mxu0 0
  %402 = vmatpush1.bf16.msra.mxu0 %v289
  %403 = vmatprep.mubr.bf16.mxu0 %v117
  %404 = vmatmul.mubr.bf16.gmra.mrb[0].mxu0 %v116
  %v405 = vpop.f32.mrb[0].mxu0
  %v406 = vadd.f32 %v357, %v405
  %v407 = vpop.f32.mrb[0].mxu0
  %v408 = vpop.f32.mrb[0].mxu0
  %v409 = vadd.f32 %v360, %v408
  %v410 = vpop.f32.mrb[0].mxu0
  %411 = vmatprep.mubr.bf16.mxu0 %v121
  %412 = vmatmul.mubr.bf16.gmra.mrb[0].mxu0 %v120
  %v413 = vpop.f32.mrb[0].mxu0
  %v414 = vadd.f32 %v365, %v413
  %v415 = vpop.f32.mrb[0].mxu0
  %v416 = vpop.f32.mrb[0].mxu0
  %v417 = vadd.f32 %v368, %v416
  %v418 = vpop.f32.mrb[0].mxu0
  %419 = vdwg.mxu0
  %v420 = vadd.f32 %v406, %v409
  %v421 = vadd.f32 %v420, %v414
  %v422 = vadd.f32 %v421, %v417
  %v423 = vrot.slane %v422, 4
  %v424 = vadd.f32 %v422, %v423
  %v425 = vrot.slane %v424, 2
  %v426 = vadd.f32 %v424, %v425
  %v427 = vrot.slane %v426, 1
  %v428 = vadd.f32 %v426, %v427
  %v429 = vmul.f32 %v428, 0.03125
  %v430 = vsub.f32 %v406, %v429
  %v431 = vsub.f32 %v409, %v429
  %v432 = vsub.f32 %v414, %v429
  %v433 = vsub.f32 %v417, %v429
  %v434 = vmul.f32 %v430, %v430
  %v435 = vmul.f32 %v431, %v431
  %v436 = vmul.f32 %v432, %v432
  %v437 = vmul.f32 %v433, %v433
  %v438 = vadd.f32 %v434, %v435
  %v439 = vadd.f32 %v438, %v436
  %v440 = vadd.f32 %v439, %v437
  %v441 = vrot.slane %v440, 4
  %v442 = vadd.f32 %v440, %v441
  %v443 = vrot.slane %v442, 2
  %v444 = vadd.f32 %v442, %v443
  %v445 = vrot.slane %v444, 1
  %v446 = vadd.f32 %v444, %v445
  %v447 = vmul.f32 %v446, 0.03125
  %v448 = vadd.f32 %v447, 1e-05
  %v449 = vrsqrt.pop %v448
  %v450 = vmul.f32 %v430, %v449
  %v451 = vmul.f32 %v431, %v449
  %v452 = vmul.f32 %v432, %v449
  %v453 = vmul.f32 %v433, %v449
  %v454 = vld [vmem:[%s2] sm:$0x1]
  %v456 = vlaneseq
  %v457 = vshrl.u32 %v456, 7
  %v458 = vsub.s32 0, %v457
  %v459 = vrot.slane %v454, %v458
  %v461 = vmul.f32 %v450, %v459
  %v462 = vmul.f32 %v451, %v459
  %v463 = vmul.f32 %v452, %v459
  %v464 = vmul.f32 %v453, %v459
  %v465 = vld [vmem:[%s3] sm:$0x1]
  %v467 = vlaneseq
  %v468 = vshrl.u32 %v467, 7
  %v469 = vsub.s32 0, %v468
  %v470 = vrot.slane %v465, %v469
  %v472 = vadd.f32 %v461, %v470
  %v473 = vadd.f32 %v462, %v470
  %v474 = vadd.f32 %v463, %v470
  %v475 = vadd.f32 %v464, %v470
  %vm476 = vcmp.gt.f32.partialorder %v472, 0.0
  %vm477 = vcmp.gt.f32.partialorder %v473, 0.0
  %vm478 = vcmp.gt.f32.partialorder %v474, 0.0
  %vm479 = vcmp.gt.f32.partialorder %v475, 0.0
  %v480 = vmul.f32 %v472, 0.2
  %v481 = vmul.f32 %v473, 0.2
  %v482 = vmul.f32 %v474, 0.2
  %v483 = vmul.f32 %v475, 0.2
  %v484 = vsel %vm476, %v472, %v480
  %v485 = vsel %vm477, %v473, %v481
  %v486 = vsel %vm478, %v474, %v482
  %v487 = vsel %vm479, %v475, %v483
  %v488 = vpack.c.bf16 %v485, %v484
  %v489 = vpack.c.bf16 %v487, %v486
  %v492 = vunpack.c.l.b16 %v488
  %v493 = vunpack.c.h.b16 %v488
  %v494 = vunpack.c.l.b16 %v489
  %v495 = vunpack.c.h.b16 %v489
  %v496 = vpack.c.b16 %v492, %v492
  %v497 = vpack.c.b16 %v493, %v493
  %v498 = vpack.c.b16 %v494, %v494
  %v499 = vpack.c.b16 %v495, %v495
  %504 = vst [vmem:[%s4] sm:$0xf] %v496
  %505 = vst [vmem:[%s4 + $0x4] sm:$0xf] %v497
  %506 = vst [vmem:[%s4 + $0x8] sm:$0xf] %v498
  %507 = vst [vmem:[%s4 + $0xc] sm:$0xf] %v499
  // Predicated region
  $region18: #{discriminator_forward.8} parent=0 // pred_check
    _
  $region19: #{discriminator_forward.8} parent=0 // pred_check_branch
    %509 = sbr.rel (0) target = $region21
  $region20: #{discriminator_forward.8} parent=0 // pred_region
    _
  $region21: #{discriminator_forward.8} parent=0 // pred_fallthru
    _
  // Predicated region
  $region22: #{discriminator_forward.8} parent=0 // pred_check
    _
  $region23: #{discriminator_forward.8} parent=0 // pred_check_branch
    %511 = sbr.rel (0) target = $region25
  $region24: #{discriminator_forward.8} parent=0 // pred_region
    _
  $region25: #{discriminator_forward.8} parent=0 // pred_fallthru
    _

// kernel: discriminator_forward.9
$region0: #{discriminator_forward.9}
  #allocation0 [shape = 'u32[]', space=smem, size = 0x4, offset = 0x4, fixed_abs, tag = 'smem constant byte address 0x4 - core index']
  #allocation1 [shape = 'u32[144,128]{1,0:T(1,128)}', space=vmem, size = 0x12000, scoped, tag = 'internal scratch']
  %s0 = inlined_call_operand.vmem [shape: bf16[2,1024], index: 0, kind: input, shape index: {}]
  %s1 = inlined_call_operand.vmem [shape: bf16[1024,128], index: 1, kind: input, shape index: {}]
  %s2 = inlined_call_operand.vmem [shape: f32[2,128], index: 2, kind: output, shape index: {}]
  %s3 = sld [smem:[#allocation0]]
  $region18: #{discriminator_forward.9} parent=0
    _
  %s5 = ssub.s32 1, %s3
  %s6 = scalar_select 0, %s5, %s3
  // Predicated region
  $region2: #{discriminator_forward.9} parent=0 // pred_check
    _
  $region3: #{discriminator_forward.9} parent=0 // pred_check_branch
    %8 = sbr.rel (0) target = $region5
  $region4: #{discriminator_forward.9} parent=0 // pred_region
    _
  $region5: #{discriminator_forward.9} parent=0 // pred_fallthru
    _
  // Predicated region
  $region6: #{discriminator_forward.9} parent=0 // pred_check
    _
  $region7: #{discriminator_forward.9} parent=0 // pred_check_branch
    %10 = sbr.rel (0) target = $region9
  $region8: #{discriminator_forward.9} parent=0 // pred_region
    _
  $region9: #{discriminator_forward.9} parent=0 // pred_fallthru
    _
  %v12 = vld [vmem:[%s0] sm:$0xff]
  %v13 = vld [vmem:[%s1] sm:$0xf]
  %v14 = vld [vmem:[%s1 + $0x4] sm:$0xf]
  %v15 = vld [vmem:[%s1 + $0x8] sm:$0xf]
  %v16 = vld [vmem:[%s1 + $0xc] sm:$0xf]
  %v17 = vld [vmem:[%s1 + $0x10] sm:$0xf]
  %v18 = vld [vmem:[%s1 + $0x14] sm:$0xf]
  %v19 = vld [vmem:[%s1 + $0x18] sm:$0xf]
  %v20 = vld [vmem:[%s1 + $0x1c] sm:$0xf]
  %v21 = vld [vmem:[%s1 + $0x20] sm:$0xf]
  %v22 = vld [vmem:[%s1 + $0x24] sm:$0xf]
  %v23 = vld [vmem:[%s1 + $0x28] sm:$0xf]
  %v24 = vld [vmem:[%s1 + $0x2c] sm:$0xf]
  %v25 = vld [vmem:[%s1 + $0x30] sm:$0xf]
  %v26 = vld [vmem:[%s1 + $0x34] sm:$0xf]
  %v27 = vld [vmem:[%s1 + $0x38] sm:$0xf]
  %v28 = vld [vmem:[%s1 + $0x3c] sm:$0xf]
  %v29 = vld [vmem:[%s1 + $0x40] sm:$0xf]
  %v30 = vld [vmem:[%s1 + $0x44] sm:$0xf]
  %v31 = vld [vmem:[%s1 + $0x48] sm:$0xf]
  %v32 = vld [vmem:[%s1 + $0x4c] sm:$0xf]
  %v33 = vld [vmem:[%s1 + $0x50] sm:$0xf]
  %v34 = vld [vmem:[%s1 + $0x54] sm:$0xf]
  %v35 = vld [vmem:[%s1 + $0x58] sm:$0xf]
  %v36 = vld [vmem:[%s1 + $0x5c] sm:$0xf]
  %v37 = vld [vmem:[%s1 + $0x60] sm:$0xf]
  %v38 = vld [vmem:[%s1 + $0x64] sm:$0xf]
  %v39 = vld [vmem:[%s1 + $0x68] sm:$0xf]
  %v40 = vld [vmem:[%s1 + $0x6c] sm:$0xf]
  %v41 = vld [vmem:[%s1 + $0x70] sm:$0xf]
  %v42 = vld [vmem:[%s1 + $0x74] sm:$0xf]
  %v43 = vld [vmem:[%s1 + $0x78] sm:$0xf]
  %v44 = vld [vmem:[%s1 + $0x7c] sm:$0xf]
  %v45 = vld [vmem:[%s1 + $0x80] sm:$0xf]
  %v46 = vld [vmem:[%s1 + $0x84] sm:$0xf]
  %v47 = vld [vmem:[%s1 + $0x88] sm:$0xf]
  %v48 = vld [vmem:[%s1 + $0x8c] sm:$0xf]
  %v49 = vld [vmem:[%s1 + $0x90] sm:$0xf]
  %v50 = vld [vmem:[%s1 + $0x94] sm:$0xf]
  %v51 = vld [vmem:[%s1 + $0x98] sm:$0xf]
  %v52 = vld [vmem:[%s1 + $0x9c] sm:$0xf]
  %v53 = vld [vmem:[%s1 + $0xa0] sm:$0xf]
  %v54 = vld [vmem:[%s1 + $0xa4] sm:$0xf]
  %v55 = vld [vmem:[%s1 + $0xa8] sm:$0xf]
  %v56 = vld [vmem:[%s1 + $0xac] sm:$0xf]
  %v57 = vld [vmem:[%s1 + $0xb0] sm:$0xf]
  %v58 = vld [vmem:[%s1 + $0xb4] sm:$0xf]
  %v59 = vld [vmem:[%s1 + $0xb8] sm:$0xf]
  %v60 = vld [vmem:[%s1 + $0xbc] sm:$0xf]
  %v61 = vld [vmem:[%s1 + $0xc0] sm:$0xf]
  %v62 = vld [vmem:[%s1 + $0xc4] sm:$0xf]
  %v63 = vld [vmem:[%s1 + $0xc8] sm:$0xf]
  %v64 = vld [vmem:[%s1 + $0xcc] sm:$0xf]
  %v65 = vld [vmem:[%s1 + $0xd0] sm:$0xf]
  %v66 = vld [vmem:[%s1 + $0xd4] sm:$0xf]
  %v67 = vld [vmem:[%s1 + $0xd8] sm:$0xf]
  %v68 = vld [vmem:[%s1 + $0xdc] sm:$0xf]
  %v69 = vld [vmem:[%s1 + $0xe0] sm:$0xf]
  %v70 = vld [vmem:[%s1 + $0xe4] sm:$0xf]
  %v71 = vld [vmem:[%s1 + $0xe8] sm:$0xf]
  %v72 = vld [vmem:[%s1 + $0xec] sm:$0xf]
  %v73 = vld [vmem:[%s1 + $0xf0] sm:$0xf]
  %v74 = vld [vmem:[%s1 + $0xf4] sm:$0xf]
  %v75 = vld [vmem:[%s1 + $0xf8] sm:$0xf]
  %v76 = vld [vmem:[%s1 + $0xfc] sm:$0xf]
  %v77 = vld [vmem:[%s1 + $0x100] sm:$0xf]
  %v78 = vld [vmem:[%s1 + $0x104] sm:$0xf]
  %v79 = vld [vmem:[%s1 + $0x108] sm:$0xf]
  %v80 = vld [vmem:[%s1 + $0x10c] sm:$0xf]
  %v81 = vld [vmem:[%s1 + $0x110] sm:$0xf]
  %v82 = vld [vmem:[%s1 + $0x114] sm:$0xf]
  %v83 = vld [vmem:[%s1 + $0x118] sm:$0xf]
  %v84 = vld [vmem:[%s1 + $0x11c] sm:$0xf]
  %v85 = vld [vmem:[%s1 + $0x120] sm:$0xf]
  %v86 = vld [vmem:[%s1 + $0x124] sm:$0xf]
  %v87 = vld [vmem:[%s1 + $0x128] sm:$0xf]
  %v88 = vld [vmem:[%s1 + $0x12c] sm:$0xf]
  %v89 = vld [vmem:[%s1 + $0x130] sm:$0xf]
  %v90 = vld [vmem:[%s1 + $0x134] sm:$0xf]
  %v91 = vld [vmem:[%s1 + $0x138] sm:$0xf]
  %v92 = vld [vmem:[%s1 + $0x13c] sm:$0xf]
  %v93 = vld [vmem:[%s1 + $0x140] sm:$0xf]
  %v94 = vld [vmem:[%s1 + $0x144] sm:$0xf]
  %v95 = vld [vmem:[%s1 + $0x148] sm:$0xf]
  %v96 = vld [vmem:[%s1 + $0x14c] sm:$0xf]
  %v97 = vld [vmem:[%s1 + $0x150] sm:$0xf]
  %v98 = vld [vmem:[%s1 + $0x154] sm:$0xf]
  %v99 = vld [vmem:[%s1 + $0x158] sm:$0xf]
  %v100 = vld [vmem:[%s1 + $0x15c] sm:$0xf]
  %v101 = vld [vmem:[%s1 + $0x160] sm:$0xf]
  %v102 = vld [vmem:[%s1 + $0x164] sm:$0xf]
  %v103 = vld [vmem:[%s1 + $0x168] sm:$0xf]
  %v104 = vld [vmem:[%s1 + $0x16c] sm:$0xf]
  %v105 = vld [vmem:[%s1 + $0x170] sm:$0xf]
  %v106 = vld [vmem:[%s1 + $0x174] sm:$0xf]
  %v107 = vld [vmem:[%s1 + $0x178] sm:$0xf]
  %v108 = vld [vmem:[%s1 + $0x17c] sm:$0xf]
  %v109 = vld [vmem:[%s1 + $0x180] sm:$0xf]
  %v110 = vld [vmem:[%s1 + $0x184] sm:$0xf]
  %v111 = vld [vmem:[%s1 + $0x188] sm:$0xf]
  %v112 = vld [vmem:[%s1 + $0x18c] sm:$0xf]
  %v113 = vld [vmem:[%s1 + $0x190] sm:$0xf]
  %v114 = vld [vmem:[%s1 + $0x194] sm:$0xf]
  %v115 = vld [vmem:[%s1 + $0x198] sm:$0xf]
  %v116 = vld [vmem:[%s1 + $0x19c] sm:$0xf]
  %v117 = vld [vmem:[%s1 + $0x1a0] sm:$0xf]
  %v118 = vld [vmem:[%s1 + $0x1a4] sm:$0xf]
  %v119 = vld [vmem:[%s1 + $0x1a8] sm:$0xf]
  %v120 = vld [vmem:[%s1 + $0x1ac] sm:$0xf]
  %v121 = vld [vmem:[%s1 + $0x1b0] sm:$0xf]
  %v122 = vld [vmem:[%s1 + $0x1b4] sm:$0xf]
  %v123 = vld [vmem:[%s1 + $0x1b8] sm:$0xf]
  %v124 = vld [vmem:[%s1 + $0x1bc] sm:$0xf]
  %v125 = vld [vmem:[%s1 + $0x1c0] sm:$0xf]
  %v126 = vld [vmem:[%s1 + $0x1c4] sm:$0xf]
  %v127 = vld [vmem:[%s1 + $0x1c8] sm:$0xf]
  %v128 = vld [vmem:[%s1 + $0x1cc] sm:$0xf]
  %v129 = vld [vmem:[%s1 + $0x1d0] sm:$0xf]
  %v130 = vld [vmem:[%s1 + $0x1d4] sm:$0xf]
  %v131 = vld [vmem:[%s1 + $0x1d8] sm:$0xf]
  %v132 = vld [vmem:[%s1 + $0x1dc] sm:$0xf]
  %v133 = vld [vmem:[%s1 + $0x1e0] sm:$0xf]
  %v134 = vld [vmem:[%s1 + $0x1e4] sm:$0xf]
  %v135 = vld [vmem:[%s1 + $0x1e8] sm:$0xf]
  %v136 = vld [vmem:[%s1 + $0x1ec] sm:$0xf]
  %v137 = vld [vmem:[%s1 + $0x1f0] sm:$0xf]
  %v138 = vld [vmem:[%s1 + $0x1f4] sm:$0xf]
  %v139 = vld [vmem:[%s1 + $0x1f8] sm:$0xf]
  %v140 = vld [vmem:[%s1 + $0x1fc] sm:$0xf]
  %v142 = vcombine.high %v12, %v12
  %v144 = vunpack.c.l.s4 1966171168
  %v145 = vunpack.c.0.s8 %v144
  %v146 = vlaneseq
  %v147 = vshrl.u32 %v146, 7
  %v148 = vsub.s32 %v145, %v147
  %v149 = vrot.slane %v12, %v148
  %v151 = vunpack.c.l.s4 1966171168
  %v152 = vunpack.c.0.s8 %v151
  %v153 = vlaneseq
  %v154 = vshrl.u32 %v153, 7
  %v155 = vsub.s32 %v152, %v154
  %v156 = vrot.slane %v142, %v155
  %v157 = vcombine.high %v149, %v149
  %v158 = vcombine.high %v156, %v156
  %v160 = vunpack.c.l.s4 1966171168
  %v161 = vunpack.c.0.s8 %v160
  %v162 = vlaneseq
  %v163 = vshrl.u32 %v162, 7
  %v164 = vsub.s32 %v161, %v163
  %v165 = vrot.slane %v149, %v164
  %v167 = vunpack.c.l.s4 1966171168
  %v168 = vunpack.c.0.s8 %v167
  %v169 = vlaneseq
  %v170 = vshrl.u32 %v169, 7
  %v171 = vsub.s32 %v168, %v170
  %v172 = vrot.slane %v156, %v171
  %v174 = vunpack.c.l.s4 1966171168
  %v175 = vunpack.c.0.s8 %v174
  %v176 = vlaneseq
  %v177 = vshrl.u32 %v176, 7
  %v178 = vsub.s32 %v175, %v177
  %v179 = vrot.slane %v157, %v178
  %v181 = vunpack.c.l.s4 1966171168
  %v182 = vunpack.c.0.s8 %v181
  %v183 = vlaneseq
  %v184 = vshrl.u32 %v183, 7
  %v185 = vsub.s32 %v182, %v184
  %v186 = vrot.slane %v158, %v185
  %v187 = vcombine.high %v165, %v165
  %v188 = vcombine.high %v172, %v172
  %v189 = vcombine.high %v179, %v179
  %v190 = vcombine.high %v186, %v186
  %v327 = vunpack.c.l.b16 %v13
  %v328 = vunpack.c.l.b16 %v14
  %v329 = vunpack.c.l.b16 %v15
  %v330 = vunpack.c.l.b16 %v16
  %v331 = vunpack.c.l.b16 %v17
  %v332 = vunpack.c.l.b16 %v18
  %v333 = vunpack.c.l.b16 %v19
  %v334 = vunpack.c.l.b16 %v20
  %v335 = vunpack.c.l.b16 %v21
  %v336 = vunpack.c.l.b16 %v22
  %v337 = vunpack.c.l.b16 %v23
  %v338 = vunpack.c.l.b16 %v24
  %v339 = vunpack.c.l.b16 %v25
  %v340 = vunpack.c.l.b16 %v26
  %v341 = vunpack.c.l.b16 %v27
  %v342 = vunpack.c.l.b16 %v28
  %v343 = vunpack.c.l.b16 %v29
  %v344 = vunpack.c.l.b16 %v30
  %v345 = vunpack.c.l.b16 %v31
  %v346 = vunpack.c.l.b16 %v32
  %v347 = vunpack.c.l.b16 %v33
  %v348 = vunpack.c.l.b16 %v34
  %v349 = vunpack.c.l.b16 %v35
  %v350 = vunpack.c.l.b16 %v36
  %v351 = vunpack.c.l.b16 %v37
  %v352 = vunpack.c.l.b16 %v38
  %v353 = vunpack.c.l.b16 %v39
  %v354 = vunpack.c.l.b16 %v40
  %v355 = vunpack.c.l.b16 %v41
  %v356 = vunpack.c.l.b16 %v42
  %v357 = vunpack.c.l.b16 %v43
  %v358 = vunpack.c.l.b16 %v44
  %v359 = vunpack.c.l.b16 %v45
  %v360 = vunpack.c.l.b16 %v46
  %v361 = vunpack.c.l.b16 %v47
  %v362 = vunpack.c.l.b16 %v48
  %v363 = vunpack.c.l.b16 %v49
  %v364 = vunpack.c.l.b16 %v50
  %v365 = vunpack.c.l.b16 %v51
  %v366 = vunpack.c.l.b16 %v52
  %v367 = vunpack.c.l.b16 %v53
  %v368 = vunpack.c.l.b16 %v54
  %v369 = vunpack.c.l.b16 %v55
  %v370 = vunpack.c.l.b16 %v56
  %v371 = vunpack.c.l.b16 %v57
  %v372 = vunpack.c.l.b16 %v58
  %v373 = vunpack.c.l.b16 %v59
  %v374 = vunpack.c.l.b16 %v60
  %v375 = vunpack.c.l.b16 %v61
  %v376 = vunpack.c.l.b16 %v62
  %v377 = vunpack.c.l.b16 %v63
  %v378 = vunpack.c.l.b16 %v64
  %v379 = vunpack.c.l.b16 %v65
  %v380 = vunpack.c.l.b16 %v66
  %v381 = vunpack.c.l.b16 %v67
  %v382 = vunpack.c.l.b16 %v68
  %v383 = vunpack.c.l.b16 %v69
  %v384 = vunpack.c.l.b16 %v70
  %v385 = vunpack.c.l.b16 %v71
  %v386 = vunpack.c.l.b16 %v72
  %v387 = vunpack.c.l.b16 %v73
  %v388 = vunpack.c.l.b16 %v74
  %v389 = vunpack.c.l.b16 %v75
  %v390 = vunpack.c.l.b16 %v76
  %v391 = vunpack.c.l.b16 %v77
  %v392 = vunpack.c.l.b16 %v78
  %v393 = vunpack.c.l.b16 %v79
  %v394 = vunpack.c.l.b16 %v80
  %v395 = vunpack.c.l.b16 %v81
  %v396 = vunpack.c.l.b16 %v82
  %v397 = vunpack.c.l.b16 %v83
  %v398 = vunpack.c.l.b16 %v84
  %v399 = vunpack.c.l.b16 %v85
  %v400 = vunpack.c.l.b16 %v86
  %v401 = vunpack.c.l.b16 %v87
  %v402 = vunpack.c.l.b16 %v88
  %v403 = vunpack.c.l.b16 %v89
  %v404 = vunpack.c.l.b16 %v90
  %v405 = vunpack.c.l.b16 %v91
  %v406 = vunpack.c.l.b16 %v92
  %v407 = vunpack.c.l.b16 %v93
  %v408 = vunpack.c.l.b16 %v94
  %v409 = vunpack.c.l.b16 %v95
  %v410 = vunpack.c.l.b16 %v96
  %v411 = vunpack.c.l.b16 %v97
  %v412 = vunpack.c.l.b16 %v98
  %v413 = vunpack.c.l.b16 %v99
  %v414 = vunpack.c.l.b16 %v100
  %v415 = vunpack.c.l.b16 %v101
  %v416 = vunpack.c.l.b16 %v102
  %v417 = vunpack.c.l.b16 %v103
  %v418 = vunpack.c.l.b16 %v104
  %v419 = vunpack.c.l.b16 %v105
  %v420 = vunpack.c.l.b16 %v106
  %v421 = vunpack.c.l.b16 %v107
  %v422 = vunpack.c.l.b16 %v108
  %v423 = vunpack.c.l.b16 %v109
  %v424 = vunpack.c.l.b16 %v110
  %v425 = vunpack.c.l.b16 %v111
  %v426 = vunpack.c.l.b16 %v112
  %v427 = vunpack.c.l.b16 %v113
  %v428 = vunpack.c.l.b16 %v114
  %v429 = vunpack.c.l.b16 %v115
  %v430 = vunpack.c.l.b16 %v116
  %v431 = vunpack.c.l.b16 %v117
  %v432 = vunpack.c.l.b16 %v118
  %v433 = vunpack.c.l.b16 %v119
  %v434 = vunpack.c.l.b16 %v120
  %v435 = vunpack.c.l.b16 %v121
  %v436 = vunpack.c.l.b16 %v122
  %v437 = vunpack.c.l.b16 %v123
  %v438 = vunpack.c.l.b16 %v124
  %v439 = vunpack.c.l.b16 %v125
  %v440 = vunpack.c.l.b16 %v126
  %v441 = vunpack.c.l.b16 %v127
  %v442 = vunpack.c.l.b16 %v128
  %v443 = vunpack.c.l.b16 %v129
  %v444 = vunpack.c.l.b16 %v130
  %v445 = vunpack.c.l.b16 %v131
  %v446 = vunpack.c.l.b16 %v132
  %v447 = vunpack.c.l.b16 %v133
  %v448 = vunpack.c.l.b16 %v134
  %v449 = vunpack.c.l.b16 %v135
  %v450 = vunpack.c.l.b16 %v136
  %v451 = vunpack.c.l.b16 %v137
  %v452 = vunpack.c.l.b16 %v138
  %v453 = vunpack.c.l.b16 %v139
  %v454 = vunpack.c.l.b16 %v140
  %v455 = vpack.c.b16 %v328, %v327
  %v456 = vpack.c.b16 %v330, %v329
  %v457 = vpack.c.b16 %v332, %v331
  %v458 = vpack.c.b16 %v334, %v333
  %v459 = vpack.c.b16 %v336, %v335
  %v460 = vpack.c.b16 %v338, %v337
  %v461 = vpack.c.b16 %v340, %v339
  %v462 = vpack.c.b16 %v342, %v341
  %v463 = vpack.c.b16 %v344, %v343
  %v464 = vpack.c.b16 %v346, %v345
  %v465 = vpack.c.b16 %v348, %v347
  %v466 = vpack.c.b16 %v350, %v349
  %v467 = vpack.c.b16 %v352, %v351
  %v468 = vpack.c.b16 %v354, %v353
  %v469 = vpack.c.b16 %v356, %v355
  %v470 = vpack.c.b16 %v358, %v357
  %v471 = vpack.c.b16 %v360, %v359
  %v472 = vpack.c.b16 %v362, %v361
  %v473 = vpack.c.b16 %v364, %v363
  %v474 = vpack.c.b16 %v366, %v365
  %v475 = vpack.c.b16 %v368, %v367
  %v476 = vpack.c.b16 %v370, %v369
  %v477 = vpack.c.b16 %v372, %v371
  %v478 = vpack.c.b16 %v374, %v373
  %v479 = vpack.c.b16 %v376, %v375
  %v480 = vpack.c.b16 %v378, %v377
  %v481 = vpack.c.b16 %v380, %v379
  %v482 = vpack.c.b16 %v382, %v381
  %v483 = vpack.c.b16 %v384, %v383
  %v484 = vpack.c.b16 %v386, %v385
  %v485 = vpack.c.b16 %v388, %v387
  %v486 = vpack.c.b16 %v390, %v389
  %v487 = vpack.c.b16 %v392, %v391
  %v488 = vpack.c.b16 %v394, %v393
  %v489 = vpack.c.b16 %v396, %v395
  %v490 = vpack.c.b16 %v398, %v397
  %v491 = vpack.c.b16 %v400, %v399
  %v492 = vpack.c.b16 %v402, %v401
  %v493 = vpack.c.b16 %v404, %v403
  %v494 = vpack.c.b16 %v406, %v405
  %v495 = vpack.c.b16 %v408, %v407
  %v496 = vpack.c.b16 %v410, %v409
  %v497 = vpack.c.b16 %v412, %v411
  %v498 = vpack.c.b16 %v414, %v413
  %v499 = vpack.c.b16 %v416, %v415
  %v500 = vpack.c.b16 %v418, %v417
  %v501 = vpack.c.b16 %v420, %v419
  %v502 = vpack.c.b16 %v422, %v421
  %v503 = vpack.c.b16 %v424, %v423
  %v504 = vpack.c.b16 %v426, %v425
  %v505 = vpack.c.b16 %v428, %v427
  %v506 = vpack.c.b16 %v430, %v429
  %v507 = vpack.c.b16 %v432, %v431
  %v508 = vpack.c.b16 %v434, %v433
  %v509 = vpack.c.b16 %v436, %v435
  %v510 = vpack.c.b16 %v438, %v437
  %v511 = vpack.c.b16 %v440, %v439
  %v512 = vpack.c.b16 %v442, %v441
  %v513 = vpack.c.b16 %v444, %v443
  %v514 = vpack.c.b16 %v446, %v445
  %v515 = vpack.c.b16 %v448, %v447
  %v516 = vpack.c.b16 %v450, %v449
  %v517 = vpack.c.b16 %v452, %v451
  %v518 = vpack.c.b16 %v454, %v453
  %583 = vmatprep.subr.bf16.mxu0 0
  %584 = vmatpush1.bf16.msra.mxu0 %v455
  %585 = vmatprep.subr.bf16.mxu0 0
  %586 = vmatpush1.bf16.msra.mxu0 %v456
  %587 = vmatprep.subr.bf16.mxu0 0
  %588 = vmatpush1.bf16.msra.mxu0 %v457
  %589 = vmatprep.subr.bf16.mxu0 0
  %590 = vmatpush1.bf16.msra.mxu0 %v458
  %591 = vmatprep.subr.bf16.mxu0 0
  %592 = vmatpush1.bf16.msra.mxu0 %v459
  %593 = vmatprep.subr.bf16.mxu0 0
  %594 = vmatpush1.bf16.msra.mxu0 %v460
  %595 = vmatprep.subr.bf16.mxu0 0
  %596 = vmatpush1.bf16.msra.mxu0 %v461
  %597 = vmatprep.subr.bf16.mxu0 0
  %598 = vmatpush1.bf16.msra.mxu0 %v462
  %599 = vmatprep.subr.bf16.mxu0 0
  %600 = vmatpush1.bf16.msra.mxu0 %v463
  %601 = vmatprep.subr.bf16.mxu0 0
  %602 = vmatpush1.bf16.msra.mxu0 %v464
  %603 = vmatprep.subr.bf16.mxu0 0
  %604 = vmatpush1.bf16.msra.mxu0 %v465
  %605 = vmatprep.subr.bf16.mxu0 0
  %606 = vmatpush1.bf16.msra.mxu0 %v466
  %607 = vmatprep.subr.bf16.mxu0 0
  %608 = vmatpush1.bf16.msra.mxu0 %v467
  %609 = vmatprep.subr.bf16.mxu0 0
  %610 = vmatpush1.bf16.msra.mxu0 %v468
  %611 = vmatprep.subr.bf16.mxu0 0
  %612 = vmatpush1.bf16.msra.mxu0 %v469
  %613 = vmatprep.subr.bf16.mxu0 0
  %614 = vmatpush1.bf16.msra.mxu0 %v470
  %615 = vmatprep.mubr.bf16.mxu0 %v179
  %616 = vmatmul.mubr.bf16.gmra.mrb[0].mxu0 %v165
  %v617 = vpop.f32.mrb[0].mxu0
  %v618 = vadd.f32 0.0, %v617
  %v619 = vpop.f32.mrb[0].mxu0
  %v620 = vpop.f32.mrb[0].mxu0
  %v621 = vpop.f32.mrb[0].mxu0
  %622 = vdwg.mxu0
  %623 = vmatprep.subr.bf16.mxu0 0
  %624 = vmatpush1.bf16.msra.mxu0 %v471
  %625 = vmatprep.subr.bf16.mxu0 0
  %626 = vmatpush1.bf16.msra.mxu0 %v472
  %627 = vmatprep.subr.bf16.mxu0 0
  %628 = vmatpush1.bf16.msra.mxu0 %v473
  %629 = vmatprep.subr.bf16.mxu0 0
  %630 = vmatpush1.bf16.msra.mxu0 %v474
  %631 = vmatprep.subr.bf16.mxu0 0
  %632 = vmatpush1.bf16.msra.mxu0 %v475
  %633 = vmatprep.subr.bf16.mxu0 0
  %634 = vmatpush1.bf16.msra.mxu0 %v476
  %635 = vmatprep.subr.bf16.mxu0 0
  %636 = vmatpush1.bf16.msra.mxu0 %v477
  %637 = vmatprep.subr.bf16.mxu0 0
  %638 = vmatpush1.bf16.msra.mxu0 %v478
  %639 = vmatprep.subr.bf16.mxu0 0
  %640 = vmatpush1.bf16.msra.mxu0 %v479
  %641 = vmatprep.subr.bf16.mxu0 0
  %642 = vmatpush1.bf16.msra.mxu0 %v480
  %643 = vmatprep.subr.bf16.mxu0 0
  %644 = vmatpush1.bf16.msra.mxu0 %v481
  %645 = vmatprep.subr.bf16.mxu0 0
  %646 = vmatpush1.bf16.msra.mxu0 %v482
  %647 = vmatprep.subr.bf16.mxu0 0
  %648 = vmatpush1.bf16.msra.mxu0 %v483
  %649 = vmatprep.subr.bf16.mxu0 0
  %650 = vmatpush1.bf16.msra.mxu0 %v484
  %651 = vmatprep.subr.bf16.mxu0 0
  %652 = vmatpush1.bf16.msra.mxu0 %v485
  %653 = vmatprep.subr.bf16.mxu0 0
  %654 = vmatpush1.bf16.msra.mxu0 %v486
  %655 = vmatprep.mubr.bf16.mxu0 %v189
  %656 = vmatmul.mubr.bf16.gmra.mrb[0].mxu0 %v187
  %v657 = vpop.f32.mrb[0].mxu0
  %v658 = vadd.f32 %v618, %v657
  %v659 = vpop.f32.mrb[0].mxu0
  %v660 = vpop.f32.mrb[0].mxu0
  %v661 = vpop.f32.mrb[0].mxu0
  %662 = vdwg.mxu0
  %663 = vmatprep.subr.bf16.mxu0 0
  %664 = vmatpush1.bf16.msra.mxu0 %v487
  %665 = vmatprep.subr.bf16.mxu0 0
  %666 = vmatpush1.bf16.msra.mxu0 %v488
  %667 = vmatprep.subr.bf16.mxu0 0
  %668 = vmatpush1.bf16.msra.mxu0 %v489
  %669 = vmatprep.subr.bf16.mxu0 0
  %670 = vmatpush1.bf16.msra.mxu0 %v490
  %671 = vmatprep.subr.bf16.mxu0 0
  %672 = vmatpush1.bf16.msra.mxu0 %v491
  %673 = vmatprep.subr.bf16.mxu0 0
  %674 = vmatpush1.bf16.msra.mxu0 %v492
  %675 = vmatprep.subr.bf16.mxu0 0
  %676 = vmatpush1.bf16.msra.mxu0 %v493
  %677 = vmatprep.subr.bf16.mxu0 0
  %678 = vmatpush1.bf16.msra.mxu0 %v494
  %679 = vmatprep.subr.bf16.mxu0 0
  %680 = vmatpush1.bf16.msra.mxu0 %v495
  %681 = vmatprep.subr.bf16.mxu0 0
  %682 = vmatpush1.bf16.msra.mxu0 %v496
  %683 = vmatprep.subr.bf16.mxu0 0
  %684 = vmatpush1.bf16.msra.mxu0 %v497
  %685 = vmatprep.subr.bf16.mxu0 0
  %686 = vmatpush1.bf16.msra.mxu0 %v498
  %687 = vmatprep.subr.bf16.mxu0 0
  %688 = vmatpush1.bf16.msra.mxu0 %v499
  %689 = vmatprep.subr.bf16.mxu0 0
  %690 = vmatpush1.bf16.msra.mxu0 %v500
  %691 = vmatprep.subr.bf16.mxu0 0
  %692 = vmatpush1.bf16.msra.mxu0 %v501
  %693 = vmatprep.subr.bf16.mxu0 0
  %694 = vmatpush1.bf16.msra.mxu0 %v502
  %695 = vmatprep.mubr.bf16.mxu0 %v186
  %696 = vmatmul.mubr.bf16.gmra.mrb[0].mxu0 %v172
  %v697 = vpop.f32.mrb[0].mxu0
  %v698 = vadd.f32 %v658, %v697
  %v699 = vpop.f32.mrb[0].mxu0
  %v700 = vpop.f32.mrb[0].mxu0
  %v701 = vpop.f32.mrb[0].mxu0
  %702 = vdwg.mxu0
  %703 = vmatprep.subr.bf16.mxu0 0
  %704 = vmatpush1.bf16.msra.mxu0 %v503
  %705 = vmatprep.subr.bf16.mxu0 0
  %706 = vmatpush1.bf16.msra.mxu0 %v504
  %707 = vmatprep.subr.bf16.mxu0 0
  %708 = vmatpush1.bf16.msra.mxu0 %v505
  %709 = vmatprep.subr.bf16.mxu0 0
  %710 = vmatpush1.bf16.msra.mxu0 %v506
  %711 = vmatprep.subr.bf16.mxu0 0
  %712 = vmatpush1.bf16.msra.mxu0 %v507
  %713 = vmatprep.subr.bf16.mxu0 0
  %714 = vmatpush1.bf16.msra.mxu0 %v508
  %715 = vmatprep.subr.bf16.mxu0 0
  %716 = vmatpush1.bf16.msra.mxu0 %v509
  %717 = vmatprep.subr.bf16.mxu0 0
  %718 = vmatpush1.bf16.msra.mxu0 %v510
  %719 = vmatprep.subr.bf16.mxu0 0
  %720 = vmatpush1.bf16.msra.mxu0 %v511
  %721 = vmatprep.subr.bf16.mxu0 0
  %722 = vmatpush1.bf16.msra.mxu0 %v512
  %723 = vmatprep.subr.bf16.mxu0 0
  %724 = vmatpush1.bf16.msra.mxu0 %v513
  %725 = vmatprep.subr.bf16.mxu0 0
  %726 = vmatpush1.bf16.msra.mxu0 %v514
  %727 = vmatprep.subr.bf16.mxu0 0
  %728 = vmatpush1.bf16.msra.mxu0 %v515
  %729 = vmatprep.subr.bf16.mxu0 0
  %730 = vmatpush1.bf16.msra.mxu0 %v516
  %731 = vmatprep.subr.bf16.mxu0 0
  %732 = vmatpush1.bf16.msra.mxu0 %v517
  %733 = vmatprep.subr.bf16.mxu0 0
  %734 = vmatpush1.bf16.msra.mxu0 %v518
  %735 = vmatprep.mubr.bf16.mxu0 %v190
  %736 = vmatmul.mubr.bf16.gmra.mrb[0].mxu0 %v188
  %v737 = vpop.f32.mrb[0].mxu0
  %v738 = vadd.f32 %v698, %v737
  %v739 = vpop.f32.mrb[0].mxu0
  %v740 = vpop.f32.mrb[0].mxu0
  %v741 = vpop.f32.mrb[0].mxu0
  %742 = vdwg.mxu0
  %v743 = vsub.f32 0.0, %v738
  %v744 = vmul.f32 %v743, 1.442695
  %v745 = vpow.pop %v744
  %v746 = vadd.f32 %v745, 1.0
  %v747 = vrcp.pop %v746
  %v748 = vmax.f32 %v747, 0.0
  %v749 = vmin.f32 %v748, 1.0
  %750 = vst [vmem:[%s2] sm:$0x3] %v749
  // Predicated region
  $region10: #{discriminator_forward.9} parent=0 // pred_check
    _
  $region11: #{discriminator_forward.9} parent=0 // pred_check_branch
    %752 = sbr.rel (0) target = $region13
  $region12: #{discriminator_forward.9} parent=0 // pred_region
    _
  $region13: #{discriminator_forward.9} parent=0 // pred_fallthru
    _
  // Predicated region
  $region14: #{discriminator_forward.9} parent=0 // pred_check
    _
  $region15: #{discriminator_forward.9} parent=0 // pred_check_branch
    %754 = sbr.rel (0) target = $region17
  $region16: #{discriminator_forward.9} parent=0 // pred_region
    _
  $region17: #{discriminator_forward.9} parent=0 // pred_fallthru
    _

</llo_original>
